<compile_context>
chip_gen: v7x
topology: tpu7x:2x2x1
jax: 0.10.0
libtpu: 0.0.40
codegen_flags: <defaults>
</compile_context>

<pallas_src>
import functools

import jax
import jax.numpy as jnp
from jax.experimental import pallas as pl
from jax.experimental.pallas import tpu as pltpu


def _lstm_kernel(x_ref, w0x_ref, w0h_ref, b0_ref,
                 w1_ref, b1_ref, wfc_ref, bfc_ref,
                 out_ref, *, seq_len, hidden_pad, input_size):
    Hp = hidden_pad
    Bp = x_ref.shape[1]

    # Hoist all weight/bias loads out of the time loop (loaded once).
    w0x = w0x_ref[...]          # (I, 4Hp)   layer-0 input weights (transposed)
    w0h = w0h_ref[...]          # (Hp, 4Hp)  layer-0 recurrent weights
    b0 = b0_ref[...]            # (1, 4Hp)   b_ih + b_hh, layer 0
    w1 = w1_ref[...]            # (2Hp, 4Hp) layer-1 fused [W_ih; W_hh]
    b1 = b1_ref[...]            # (1, 4Hp)   b_ih + b_hh, layer 1

    def gates_to_hc(gates, c_prev):
        # PyTorch gate order [i | f | g | o]; Hp=128 => lane-aligned slices.
        i = jax.nn.sigmoid(gates[:, 0 * Hp:1 * Hp])
        f = jax.nn.sigmoid(gates[:, 1 * Hp:2 * Hp])
        g = jnp.tanh(gates[:, 2 * Hp:3 * Hp])
        o = jax.nn.sigmoid(gates[:, 3 * Hp:4 * Hp])
        c_new = f * c_prev + i * g
        h_new = o * jnp.tanh(c_new)
        return h_new, c_new

    # Loop-carried state lives in vregs.
    h0 = jnp.zeros((Bp, Hp), jnp.float32)
    c0 = jnp.zeros((Bp, Hp), jnp.float32)
    h1 = jnp.zeros((Bp, Hp), jnp.float32)
    c1 = jnp.zeros((Bp, Hp), jnp.float32)

    # Full T-step recurrence inside one kernel invocation, fully unrolled
    # (T is small; total live state is a handful of vregs).
    for t in range(seq_len):
        x_t = x_ref[t]                                     # (Bp, I)
        if input_size == 1:
            # K=1 matmul replaced by a VPU broadcast-multiply.
            g0_in = x_t * w0x                              # (Bp, 4Hp)
        else:
            g0_in = jnp.dot(x_t, w0x, preferred_element_type=jnp.float32)
        gates0 = (g0_in
                  + jnp.dot(h0, w0h, preferred_element_type=jnp.float32)
                  + b0)
        h0, c0 = gates_to_hc(gates0, c0)

        # TODO(synk): nn.LSTM dropout(p=0.1) between layers is active only in
        # training mode; eval-mode (deterministic) forward is implemented.

        # Layer 1: single fused K=2Hp matmul over concat([h0, h1_prev]).
        hcat = jnp.concatenate([h0, h1], axis=-1)          # (Bp, 2Hp)
        gates1 = jnp.dot(hcat, w1, preferred_element_type=jnp.float32) + b1
        h1, c1 = gates_to_hc(gates1, c1)

    # Final FC on the last step's top-layer hidden state.
    out_ref[...] = (jnp.dot(h1, wfc_ref[...], preferred_element_type=jnp.float32)
                    + bfc_ref[...]).astype(out_ref.dtype)


def _pad_gate_cols(w, H, Hp):
    """(..., 4H) -> (..., 4Hp): each gate block of width H zero-padded to Hp."""
    parts = []
    for k in range(4):
        blk = w[..., k * H:(k + 1) * H]
        pad = [(0, 0)] * (w.ndim - 1) + [(0, Hp - H)]
        parts.append(jnp.pad(blk, pad))
    return jnp.concatenate(parts, axis=-1)


def lstm_model_forward(x, params, *, hidden_size):
    """x: (B, T, I) float32.  Returns (B, output_size)."""
    B, T, I = x.shape
    H = hidden_size
    O = params["wfc"].shape[1]

    Hp = ((H + 127) // 128) * 128       # lane-aligned hidden size (64 -> 128)
    Bp = ((B + 7) // 8) * 8             # sublane-aligned batch (2 -> 8)

    # --- repack / zero-pad parameters (padding keeps the math exact) ---
    w0x = _pad_gate_cols(params["wih0"], H, Hp)                           # (I, 4Hp)
    w0h = jnp.pad(_pad_gate_cols(params["whh0"], H, Hp),
                  ((0, Hp - H), (0, 0)))                                  # (Hp, 4Hp)
    b0 = _pad_gate_cols(params["b0"], H, Hp)                              # (1, 4Hp)
    wih1 = jnp.pad(_pad_gate_cols(params["wih1"], H, Hp), ((0, Hp - H), (0, 0)))
    whh1 = jnp.pad(_pad_gate_cols(params["whh1"], H, Hp), ((0, Hp - H), (0, 0)))
    w1 = jnp.concatenate([wih1, whh1], axis=0)                            # (2Hp, 4Hp)
    b1 = _pad_gate_cols(params["b1"], H, Hp)                              # (1, 4Hp)
    wfc = jnp.pad(params["wfc"], ((0, Hp - H), (0, 0)))                   # (Hp, O)
    bfc = params["bfc"]                                                   # (1, O)

    # (B, T, I) -> (T, Bp, I): time leading for per-step slicing; batch padded.
    x_tbi = jnp.transpose(x, (1, 0, 2))
    x_tbi = jnp.pad(x_tbi, ((0, 0), (0, Bp - B), (0, 0)))

    def full_spec(shape):
        nd = len(shape)
        return pl.BlockSpec(shape, lambda i, _nd=nd: (0,) * _nd)

    kernel = functools.partial(_lstm_kernel, seq_len=T, hidden_pad=Hp,
                               input_size=I)

    out = pl.pallas_call(
        kernel,
        out_shape=jax.ShapeDtypeStruct((Bp, O), jnp.float32),
        grid_spec=pltpu.PrefetchScalarGridSpec(
            num_scalar_prefetch=0,
            grid=(1,),                      # whole recurrence in one invocation
            in_specs=[
                full_spec((T, Bp, I)),      # x: entire sequence resident in VMEM
                full_spec((I, 4 * Hp)),     # W_ih layer 0
                full_spec((Hp, 4 * Hp)),    # W_hh layer 0
                full_spec((1, 4 * Hp)),     # b layer 0
                full_spec((2 * Hp, 4 * Hp)),  # fused [W_ih; W_hh] layer 1
                full_spec((1, 4 * Hp)),     # b layer 1
                full_spec((Hp, O)),         # fc weight
                full_spec((1, O)),          # fc bias
            ],
            out_specs=full_spec((Bp, O)),
        ),
        compiler_params=pltpu.CompilerParams(
            dimension_semantics=("arbitrary",)),
    )(x_tbi, w0x, w0h, b0, w1, b1, wfc, bfc)

    return out[:B]


def init_params(key, input_size, hidden_size, output_size):
    """Deterministic params, PyTorch-style uniform(-1/sqrt(H), 1/sqrt(H)) init."""
    H = hidden_size
    k = 1.0 / jnp.sqrt(jnp.float32(H))
    keys = jax.random.split(key, 10)

    def u(kk, shape):
        return jax.random.uniform(kk, shape, jnp.float32, -k, k)

    # Stored already transposed for right-multiplication: x @ W
    params = {
        "wih0": u(keys[0], (input_size, 4 * H)),
        "whh0": u(keys[1], (H, 4 * H)),
        "b0":   u(keys[2], (1, 4 * H)) + u(keys[3], (1, 4 * H)),  # b_ih + b_hh
        "wih1": u(keys[4], (H, 4 * H)),
        "whh1": u(keys[5], (H, 4 * H)),
        "b1":   u(keys[6], (1, 4 * H)) + u(keys[7], (1, 4 * H)),
        "wfc":  u(keys[8], (H, output_size)),
        "bfc":  u(keys[9], (1, output_size)),
    }
    return params


def reference_forward(x, params, *, hidden_size):
    """Pure-JAX reference of the same eval-mode forward (unpadded params)."""
    B, T, I = x.shape
    H = hidden_size

    def cell(x_in, h_prev, c_prev, wih, whh, b):
        gates = x_in @ wih + h_prev @ whh + b
        i = jax.nn.sigmoid(gates[:, 0:H])
        f = jax.nn.sigmoid(gates[:, H:2 * H])
        g = jnp.tanh(gates[:, 2 * H:3 * H])
        o = jax.nn.sigmoid(gates[:, 3 * H:4 * H])
        c_new = f * c_prev + i * g
        h_new = o * jnp.tanh(c_new)
        return h_new, c_new

    h0 = jnp.zeros((B, H), jnp.float32)
    c0 = jnp.zeros((B, H), jnp.float32)
    h1 = jnp.zeros((B, H), jnp.float32)
    c1 = jnp.zeros((B, H), jnp.float32)
    for t in range(T):
        x_t = x[:, t, :]
        h0, c0 = cell(x_t, h0, c0, params["wih0"], params["whh0"], params["b0"])
        h1, c1 = cell(h0, h1, c1, params["wih1"], params["whh1"], params["b1"])
    return h1 @ params["wfc"] + params["bfc"]


if __name__ == "__main__":
    # Module defaults: input_size=1, hidden_size=64, num_layers=2, output_size=1
    B, T, I, H, O = 2, 8, 1, 64, 1

    key = jax.random.PRNGKey(0)
    k_x, k_p = jax.random.split(key)
    x = jax.random.normal(k_x, (B, T, I), jnp.float32)
    params = init_params(k_p, I, H, O)

    out = lstm_model_forward(x, params, hidden_size=H)
    out = jax.block_until_ready(out)

    ref = reference_forward(x, params, hidden_size=H)
    assert out.shape == (B, O)
    assert jnp.allclose(out, ref, atol=1e-4, rtol=1e-4), (out, ref)

    print("KERNEL_OK")
</pallas_src>

<mosaic_0001>
module attributes {stable_mosaic.version = 11 : i64} {
  func.func @_lstm_kernel(%arg0: i32, %arg1: memref<8x8x1xf32, #tpu.memory_space<vmem>>, %arg2: memref<1x512xf32, #tpu.memory_space<vmem>>, %arg3: memref<128x512xf32, #tpu.memory_space<vmem>>, %arg4: memref<1x512xf32, #tpu.memory_space<vmem>>, %arg5: memref<256x512xf32, #tpu.memory_space<vmem>>, %arg6: memref<1x512xf32, #tpu.memory_space<vmem>>, %arg7: memref<128x1xf32, #tpu.memory_space<vmem>>, %arg8: memref<1x1xf32, #tpu.memory_space<vmem>>, %arg9: memref<8x1xf32, #tpu.memory_space<vmem>>) attributes {dimension_semantics = [#tpu.dimension_semantics<arbitrary>], iteration_bounds = array<i64: 1>, scalar_prefetch = 0 : i64, scratch_operands = 0 : i64, tpu.core_type = #tpu.core_type<tc>, window_params = [{pipeline_mode = #tpu.pipeline_mode<synchronous>, transform_indices = @transform_0, window_bounds = array<i64: 8, 8, 1>}, {pipeline_mode = #tpu.pipeline_mode<synchronous>, transform_indices = @transform_1, window_bounds = array<i64: 1, 512>}, {pipeline_mode = #tpu.pipeline_mode<synchronous>, transform_indices = @transform_2, window_bounds = array<i64: 128, 512>}, {pipeline_mode = #tpu.pipeline_mode<synchronous>, transform_indices = @transform_3, window_bounds = array<i64: 1, 512>}, {pipeline_mode = #tpu.pipeline_mode<synchronous>, transform_indices = @transform_4, window_bounds = array<i64: 256, 512>}, {pipeline_mode = #tpu.pipeline_mode<synchronous>, transform_indices = @transform_5, window_bounds = array<i64: 1, 512>}, {pipeline_mode = #tpu.pipeline_mode<synchronous>, transform_indices = @transform_6, window_bounds = array<i64: 128, 1>}, {pipeline_mode = #tpu.pipeline_mode<synchronous>, transform_indices = @transform_7, window_bounds = array<i64: 1, 1>}, {pipeline_mode = #tpu.pipeline_mode<synchronous>, transform_indices = @transform_8, window_bounds = array<i64: 8, 1>}]} {
    %c0 = arith.constant 0 : index
    %c0_0 = arith.constant 0 : index
    %0 = vector.load %arg2[%c0, %c0_0] : memref<1x512xf32, #tpu.memory_space<vmem>>, vector<1x512xf32>
    %c0_1 = arith.constant 0 : index
    %c0_2 = arith.constant 0 : index
    %1 = vector.load %arg3[%c0_1, %c0_2] : memref<128x512xf32, #tpu.memory_space<vmem>>, vector<128x512xf32>
    %c0_3 = arith.constant 0 : index
    %c0_4 = arith.constant 0 : index
    %2 = vector.load %arg4[%c0_3, %c0_4] : memref<1x512xf32, #tpu.memory_space<vmem>>, vector<1x512xf32>
    %c0_5 = arith.constant 0 : index
    %c0_6 = arith.constant 0 : index
    %3 = vector.load %arg5[%c0_5, %c0_6] : memref<256x512xf32, #tpu.memory_space<vmem>>, vector<256x512xf32>
    %c0_7 = arith.constant 0 : index
    %c0_8 = arith.constant 0 : index
    %4 = vector.load %arg6[%c0_7, %c0_8] : memref<1x512xf32, #tpu.memory_space<vmem>>, vector<1x512xf32>
    %cst = arith.constant 0.000000e+00 : f32
    %5 = vector.broadcast %cst : f32 to vector<8x128xf32>
    %cst_9 = arith.constant 0.000000e+00 : f32
    %6 = vector.broadcast %cst_9 : f32 to vector<8x128xf32>
    %cst_10 = arith.constant 0.000000e+00 : f32
    %7 = vector.broadcast %cst_10 : f32 to vector<8x128xf32>
    %cst_11 = arith.constant 0.000000e+00 : f32
    %8 = vector.broadcast %cst_11 : f32 to vector<8x128xf32>
    %c0_12 = arith.constant 0 : index
    %c0_13 = arith.constant 0 : index
    %c0_14 = arith.constant 0 : index
    %9 = vector.load %arg1[%c0_12, %c0_13, %c0_14] : memref<8x8x1xf32, #tpu.memory_space<vmem>>, vector<1x8x1xf32>
    %10 = vector.shape_cast %9 : vector<1x8x1xf32> to vector<8x1xf32>
    %11 = vector.broadcast %10 : vector<8x1xf32> to vector<8x512xf32>
    %12 = vector.broadcast %0 : vector<1x512xf32> to vector<8x512xf32>
    %13 = arith.mulf %11, %12 : vector<8x512xf32>
    %cst_15 = arith.constant dense<0.000000e+00> : vector<8x512xf32>
    %14 = tpu.matmul %5, %1, %cst_15 {dimension_numbers = #tpu.dot_dimension_numbers<[1], [0], [0], [1], [0, 0, 1, 1], [], []>} : vector<8x128xf32>, vector<128x512xf32>, vector<8x512xf32> -> vector<8x512xf32>
    %15 = arith.addf %13, %14 : vector<8x512xf32>
    %16 = vector.broadcast %2 : vector<1x512xf32> to vector<8x512xf32>
    %17 = arith.addf %15, %16 : vector<8x512xf32>
    %18 = vector.extract_strided_slice %17 {offsets = [0, 0], sizes = [8, 128], strides = [1, 1]} : vector<8x512xf32> to vector<8x128xf32>
    %19 = arith.negf %18 : vector<8x128xf32>
    %20 = math.exp %19 : vector<8x128xf32>
    %cst_16 = arith.constant 1.000000e+00 : f32
    %21 = vector.broadcast %cst_16 : f32 to vector<8x128xf32>
    %22 = arith.addf %21, %20 : vector<8x128xf32>
    %23 = arith.divf %21, %22 : vector<8x128xf32>
    %24 = vector.extract_strided_slice %17 {offsets = [0, 128], sizes = [8, 128], strides = [1, 1]} : vector<8x512xf32> to vector<8x128xf32>
    %25 = arith.negf %24 : vector<8x128xf32>
    %26 = math.exp %25 : vector<8x128xf32>
    %cst_17 = arith.constant 1.000000e+00 : f32
    %27 = vector.broadcast %cst_17 : f32 to vector<8x128xf32>
    %28 = arith.addf %27, %26 : vector<8x128xf32>
    %29 = arith.divf %27, %28 : vector<8x128xf32>
    %30 = vector.extract_strided_slice %17 {offsets = [0, 256], sizes = [8, 128], strides = [1, 1]} : vector<8x512xf32> to vector<8x128xf32>
    %31 = math.tanh %30 : vector<8x128xf32>
    %32 = vector.extract_strided_slice %17 {offsets = [0, 384], sizes = [8, 128], strides = [1, 1]} : vector<8x512xf32> to vector<8x128xf32>
    %33 = arith.negf %32 : vector<8x128xf32>
    %34 = math.exp %33 : vector<8x128xf32>
    %cst_18 = arith.constant 1.000000e+00 : f32
    %35 = vector.broadcast %cst_18 : f32 to vector<8x128xf32>
    %36 = arith.addf %35, %34 : vector<8x128xf32>
    %37 = arith.divf %35, %36 : vector<8x128xf32>
    %38 = arith.mulf %29, %6 : vector<8x128xf32>
    %39 = arith.mulf %23, %31 : vector<8x128xf32>
    %40 = arith.addf %38, %39 : vector<8x128xf32>
    %41 = math.tanh %40 : vector<8x128xf32>
    %42 = arith.mulf %37, %41 : vector<8x128xf32>
    %43 = tpu.concatenate %42, %7 in 1 : vector<8x128xf32>, vector<8x128xf32> -> vector<8x256xf32>
    %cst_19 = arith.constant dense<0.000000e+00> : vector<8x512xf32>
    %44 = tpu.matmul %43, %3, %cst_19 {dimension_numbers = #tpu.dot_dimension_numbers<[1], [0], [0], [1], [0, 0, 1, 1], [], []>} : vector<8x256xf32>, vector<256x512xf32>, vector<8x512xf32> -> vector<8x512xf32>
    %45 = vector.broadcast %4 : vector<1x512xf32> to vector<8x512xf32>
    %46 = arith.addf %44, %45 : vector<8x512xf32>
    %47 = vector.extract_strided_slice %46 {offsets = [0, 0], sizes = [8, 128], strides = [1, 1]} : vector<8x512xf32> to vector<8x128xf32>
    %48 = arith.negf %47 : vector<8x128xf32>
    %49 = math.exp %48 : vector<8x128xf32>
    %cst_20 = arith.constant 1.000000e+00 : f32
    %50 = vector.broadcast %cst_20 : f32 to vector<8x128xf32>
    %51 = arith.addf %50, %49 : vector<8x128xf32>
    %52 = arith.divf %50, %51 : vector<8x128xf32>
    %53 = vector.extract_strided_slice %46 {offsets = [0, 128], sizes = [8, 128], strides = [1, 1]} : vector<8x512xf32> to vector<8x128xf32>
    %54 = arith.negf %53 : vector<8x128xf32>
    %55 = math.exp %54 : vector<8x128xf32>
    %cst_21 = arith.constant 1.000000e+00 : f32
    %56 = vector.broadcast %cst_21 : f32 to vector<8x128xf32>
    %57 = arith.addf %56, %55 : vector<8x128xf32>
    %58 = arith.divf %56, %57 : vector<8x128xf32>
    %59 = vector.extract_strided_slice %46 {offsets = [0, 256], sizes = [8, 128], strides = [1, 1]} : vector<8x512xf32> to vector<8x128xf32>
    %60 = math.tanh %59 : vector<8x128xf32>
    %61 = vector.extract_strided_slice %46 {offsets = [0, 384], sizes = [8, 128], strides = [1, 1]} : vector<8x512xf32> to vector<8x128xf32>
    %62 = arith.negf %61 : vector<8x128xf32>
    %63 = math.exp %62 : vector<8x128xf32>
    %cst_22 = arith.constant 1.000000e+00 : f32
    %64 = vector.broadcast %cst_22 : f32 to vector<8x128xf32>
    %65 = arith.addf %64, %63 : vector<8x128xf32>
    %66 = arith.divf %64, %65 : vector<8x128xf32>
    %67 = arith.mulf %58, %8 : vector<8x128xf32>
    %68 = arith.mulf %52, %60 : vector<8x128xf32>
    %69 = arith.addf %67, %68 : vector<8x128xf32>
    %70 = math.tanh %69 : vector<8x128xf32>
    %71 = arith.mulf %66, %70 : vector<8x128xf32>
    %c1 = arith.constant 1 : index
    %c0_23 = arith.constant 0 : index
    %c0_24 = arith.constant 0 : index
    %72 = vector.load %arg1[%c1, %c0_23, %c0_24] : memref<8x8x1xf32, #tpu.memory_space<vmem>>, vector<1x8x1xf32>
    %73 = vector.shape_cast %72 : vector<1x8x1xf32> to vector<8x1xf32>
    %74 = vector.broadcast %73 : vector<8x1xf32> to vector<8x512xf32>
    %75 = vector.broadcast %0 : vector<1x512xf32> to vector<8x512xf32>
    %76 = arith.mulf %74, %75 : vector<8x512xf32>
    %cst_25 = arith.constant dense<0.000000e+00> : vector<8x512xf32>
    %77 = tpu.matmul %42, %1, %cst_25 {dimension_numbers = #tpu.dot_dimension_numbers<[1], [0], [0], [1], [0, 0, 1, 1], [], []>} : vector<8x128xf32>, vector<128x512xf32>, vector<8x512xf32> -> vector<8x512xf32>
    %78 = arith.addf %76, %77 : vector<8x512xf32>
    %79 = vector.broadcast %2 : vector<1x512xf32> to vector<8x512xf32>
    %80 = arith.addf %78, %79 : vector<8x512xf32>
    %81 = vector.extract_strided_slice %80 {offsets = [0, 0], sizes = [8, 128], strides = [1, 1]} : vector<8x512xf32> to vector<8x128xf32>
    %82 = arith.negf %81 : vector<8x128xf32>
    %83 = math.exp %82 : vector<8x128xf32>
    %cst_26 = arith.constant 1.000000e+00 : f32
    %84 = vector.broadcast %cst_26 : f32 to vector<8x128xf32>
    %85 = arith.addf %84, %83 : vector<8x128xf32>
    %86 = arith.divf %84, %85 : vector<8x128xf32>
    %87 = vector.extract_strided_slice %80 {offsets = [0, 128], sizes = [8, 128], strides = [1, 1]} : vector<8x512xf32> to vector<8x128xf32>
    %88 = arith.negf %87 : vector<8x128xf32>
    %89 = math.exp %88 : vector<8x128xf32>
    %cst_27 = arith.constant 1.000000e+00 : f32
    %90 = vector.broadcast %cst_27 : f32 to vector<8x128xf32>
    %91 = arith.addf %90, %89 : vector<8x128xf32>
    %92 = arith.divf %90, %91 : vector<8x128xf32>
    %93 = vector.extract_strided_slice %80 {offsets = [0, 256], sizes = [8, 128], strides = [1, 1]} : vector<8x512xf32> to vector<8x128xf32>
    %94 = math.tanh %93 : vector<8x128xf32>
    %95 = vector.extract_strided_slice %80 {offsets = [0, 384], sizes = [8, 128], strides = [1, 1]} : vector<8x512xf32> to vector<8x128xf32>
    %96 = arith.negf %95 : vector<8x128xf32>
    %97 = math.exp %96 : vector<8x128xf32>
    %cst_28 = arith.constant 1.000000e+00 : f32
    %98 = vector.broadcast %cst_28 : f32 to vector<8x128xf32>
    %99 = arith.addf %98, %97 : vector<8x128xf32>
    %100 = arith.divf %98, %99 : vector<8x128xf32>
    %101 = arith.mulf %92, %40 : vector<8x128xf32>
    %102 = arith.mulf %86, %94 : vector<8x128xf32>
    %103 = arith.addf %101, %102 : vector<8x128xf32>
    %104 = math.tanh %103 : vector<8x128xf32>
    %105 = arith.mulf %100, %104 : vector<8x128xf32>
    %106 = tpu.concatenate %105, %71 in 1 : vector<8x128xf32>, vector<8x128xf32> -> vector<8x256xf32>
    %cst_29 = arith.constant dense<0.000000e+00> : vector<8x512xf32>
    %107 = tpu.matmul %106, %3, %cst_29 {dimension_numbers = #tpu.dot_dimension_numbers<[1], [0], [0], [1], [0, 0, 1, 1], [], []>} : vector<8x256xf32>, vector<256x512xf32>, vector<8x512xf32> -> vector<8x512xf32>
    %108 = vector.broadcast %4 : vector<1x512xf32> to vector<8x512xf32>
    %109 = arith.addf %107, %108 : vector<8x512xf32>
    %110 = vector.extract_strided_slice %109 {offsets = [0, 0], sizes = [8, 128], strides = [1, 1]} : vector<8x512xf32> to vector<8x128xf32>
    %111 = arith.negf %110 : vector<8x128xf32>
    %112 = math.exp %111 : vector<8x128xf32>
    %cst_30 = arith.constant 1.000000e+00 : f32
    %113 = vector.broadcast %cst_30 : f32 to vector<8x128xf32>
    %114 = arith.addf %113, %112 : vector<8x128xf32>
    %115 = arith.divf %113, %114 : vector<8x128xf32>
    %116 = vector.extract_strided_slice %109 {offsets = [0, 128], sizes = [8, 128], strides = [1, 1]} : vector<8x512xf32> to vector<8x128xf32>
    %117 = arith.negf %116 : vector<8x128xf32>
    %118 = math.exp %117 : vector<8x128xf32>
    %cst_31 = arith.constant 1.000000e+00 : f32
    %119 = vector.broadcast %cst_31 : f32 to vector<8x128xf32>
    %120 = arith.addf %119, %118 : vector<8x128xf32>
    %121 = arith.divf %119, %120 : vector<8x128xf32>
    %122 = vector.extract_strided_slice %109 {offsets = [0, 256], sizes = [8, 128], strides = [1, 1]} : vector<8x512xf32> to vector<8x128xf32>
    %123 = math.tanh %122 : vector<8x128xf32>
    %124 = vector.extract_strided_slice %109 {offsets = [0, 384], sizes = [8, 128], strides = [1, 1]} : vector<8x512xf32> to vector<8x128xf32>
    %125 = arith.negf %124 : vector<8x128xf32>
    %126 = math.exp %125 : vector<8x128xf32>
    %cst_32 = arith.constant 1.000000e+00 : f32
    %127 = vector.broadcast %cst_32 : f32 to vector<8x128xf32>
    %128 = arith.addf %127, %126 : vector<8x128xf32>
    %129 = arith.divf %127, %128 : vector<8x128xf32>
    %130 = arith.mulf %121, %69 : vector<8x128xf32>
    %131 = arith.mulf %115, %123 : vector<8x128xf32>
    %132 = arith.addf %130, %131 : vector<8x128xf32>
    %133 = math.tanh %132 : vector<8x128xf32>
    %134 = arith.mulf %129, %133 : vector<8x128xf32>
    %c2 = arith.constant 2 : index
    %c0_33 = arith.constant 0 : index
    %c0_34 = arith.constant 0 : index
    %135 = vector.load %arg1[%c2, %c0_33, %c0_34] : memref<8x8x1xf32, #tpu.memory_space<vmem>>, vector<1x8x1xf32>
    %136 = vector.shape_cast %135 : vector<1x8x1xf32> to vector<8x1xf32>
    %137 = vector.broadcast %136 : vector<8x1xf32> to vector<8x512xf32>
    %138 = vector.broadcast %0 : vector<1x512xf32> to vector<8x512xf32>
    %139 = arith.mulf %137, %138 : vector<8x512xf32>
    %cst_35 = arith.constant dense<0.000000e+00> : vector<8x512xf32>
    %140 = tpu.matmul %105, %1, %cst_35 {dimension_numbers = #tpu.dot_dimension_numbers<[1], [0], [0], [1], [0, 0, 1, 1], [], []>} : vector<8x128xf32>, vector<128x512xf32>, vector<8x512xf32> -> vector<8x512xf32>
    %141 = arith.addf %139, %140 : vector<8x512xf32>
    %142 = vector.broadcast %2 : vector<1x512xf32> to vector<8x512xf32>
    %143 = arith.addf %141, %142 : vector<8x512xf32>
    %144 = vector.extract_strided_slice %143 {offsets = [0, 0], sizes = [8, 128], strides = [1, 1]} : vector<8x512xf32> to vector<8x128xf32>
    %145 = arith.negf %144 : vector<8x128xf32>
    %146 = math.exp %145 : vector<8x128xf32>
    %cst_36 = arith.constant 1.000000e+00 : f32
    %147 = vector.broadcast %cst_36 : f32 to vector<8x128xf32>
    %148 = arith.addf %147, %146 : vector<8x128xf32>
    %149 = arith.divf %147, %148 : vector<8x128xf32>
    %150 = vector.extract_strided_slice %143 {offsets = [0, 128], sizes = [8, 128], strides = [1, 1]} : vector<8x512xf32> to vector<8x128xf32>
    %151 = arith.negf %150 : vector<8x128xf32>
    %152 = math.exp %151 : vector<8x128xf32>
    %cst_37 = arith.constant 1.000000e+00 : f32
    %153 = vector.broadcast %cst_37 : f32 to vector<8x128xf32>
    %154 = arith.addf %153, %152 : vector<8x128xf32>
    %155 = arith.divf %153, %154 : vector<8x128xf32>
    %156 = vector.extract_strided_slice %143 {offsets = [0, 256], sizes = [8, 128], strides = [1, 1]} : vector<8x512xf32> to vector<8x128xf32>
    %157 = math.tanh %156 : vector<8x128xf32>
    %158 = vector.extract_strided_slice %143 {offsets = [0, 384], sizes = [8, 128], strides = [1, 1]} : vector<8x512xf32> to vector<8x128xf32>
    %159 = arith.negf %158 : vector<8x128xf32>
    %160 = math.exp %159 : vector<8x128xf32>
    %cst_38 = arith.constant 1.000000e+00 : f32
    %161 = vector.broadcast %cst_38 : f32 to vector<8x128xf32>
    %162 = arith.addf %161, %160 : vector<8x128xf32>
    %163 = arith.divf %161, %162 : vector<8x128xf32>
    %164 = arith.mulf %155, %103 : vector<8x128xf32>
    %165 = arith.mulf %149, %157 : vector<8x128xf32>
    %166 = arith.addf %164, %165 : vector<8x128xf32>
    %167 = math.tanh %166 : vector<8x128xf32>
    %168 = arith.mulf %163, %167 : vector<8x128xf32>
    %169 = tpu.concatenate %168, %134 in 1 : vector<8x128xf32>, vector<8x128xf32> -> vector<8x256xf32>
    %cst_39 = arith.constant dense<0.000000e+00> : vector<8x512xf32>
    %170 = tpu.matmul %169, %3, %cst_39 {dimension_numbers = #tpu.dot_dimension_numbers<[1], [0], [0], [1], [0, 0, 1, 1], [], []>} : vector<8x256xf32>, vector<256x512xf32>, vector<8x512xf32> -> vector<8x512xf32>
    %171 = vector.broadcast %4 : vector<1x512xf32> to vector<8x512xf32>
    %172 = arith.addf %170, %171 : vector<8x512xf32>
    %173 = vector.extract_strided_slice %172 {offsets = [0, 0], sizes = [8, 128], strides = [1, 1]} : vector<8x512xf32> to vector<8x128xf32>
    %174 = arith.negf %173 : vector<8x128xf32>
    %175 = math.exp %174 : vector<8x128xf32>
    %cst_40 = arith.constant 1.000000e+00 : f32
    %176 = vector.broadcast %cst_40 : f32 to vector<8x128xf32>
    %177 = arith.addf %176, %175 : vector<8x128xf32>
    %178 = arith.divf %176, %177 : vector<8x128xf32>
    %179 = vector.extract_strided_slice %172 {offsets = [0, 128], sizes = [8, 128], strides = [1, 1]} : vector<8x512xf32> to vector<8x128xf32>
    %180 = arith.negf %179 : vector<8x128xf32>
    %181 = math.exp %180 : vector<8x128xf32>
    %cst_41 = arith.constant 1.000000e+00 : f32
    %182 = vector.broadcast %cst_41 : f32 to vector<8x128xf32>
    %183 = arith.addf %182, %181 : vector<8x128xf32>
    %184 = arith.divf %182, %183 : vector<8x128xf32>
    %185 = vector.extract_strided_slice %172 {offsets = [0, 256], sizes = [8, 128], strides = [1, 1]} : vector<8x512xf32> to vector<8x128xf32>
    %186 = math.tanh %185 : vector<8x128xf32>
    %187 = vector.extract_strided_slice %172 {offsets = [0, 384], sizes = [8, 128], strides = [1, 1]} : vector<8x512xf32> to vector<8x128xf32>
    %188 = arith.negf %187 : vector<8x128xf32>
    %189 = math.exp %188 : vector<8x128xf32>
    %cst_42 = arith.constant 1.000000e+00 : f32
    %190 = vector.broadcast %cst_42 : f32 to vector<8x128xf32>
    %191 = arith.addf %190, %189 : vector<8x128xf32>
    %192 = arith.divf %190, %191 : vector<8x128xf32>
    %193 = arith.mulf %184, %132 : vector<8x128xf32>
    %194 = arith.mulf %178, %186 : vector<8x128xf32>
    %195 = arith.addf %193, %194 : vector<8x128xf32>
    %196 = math.tanh %195 : vector<8x128xf32>
    %197 = arith.mulf %192, %196 : vector<8x128xf32>
    %c3 = arith.constant 3 : index
    %c0_43 = arith.constant 0 : index
    %c0_44 = arith.constant 0 : index
    %198 = vector.load %arg1[%c3, %c0_43, %c0_44] : memref<8x8x1xf32, #tpu.memory_space<vmem>>, vector<1x8x1xf32>
    %199 = vector.shape_cast %198 : vector<1x8x1xf32> to vector<8x1xf32>
    %200 = vector.broadcast %199 : vector<8x1xf32> to vector<8x512xf32>
    %201 = vector.broadcast %0 : vector<1x512xf32> to vector<8x512xf32>
    %202 = arith.mulf %200, %201 : vector<8x512xf32>
    %cst_45 = arith.constant dense<0.000000e+00> : vector<8x512xf32>
    %203 = tpu.matmul %168, %1, %cst_45 {dimension_numbers = #tpu.dot_dimension_numbers<[1], [0], [0], [1], [0, 0, 1, 1], [], []>} : vector<8x128xf32>, vector<128x512xf32>, vector<8x512xf32> -> vector<8x512xf32>
    %204 = arith.addf %202, %203 : vector<8x512xf32>
    %205 = vector.broadcast %2 : vector<1x512xf32> to vector<8x512xf32>
    %206 = arith.addf %204, %205 : vector<8x512xf32>
    %207 = vector.extract_strided_slice %206 {offsets = [0, 0], sizes = [8, 128], strides = [1, 1]} : vector<8x512xf32> to vector<8x128xf32>
    %208 = arith.negf %207 : vector<8x128xf32>
    %209 = math.exp %208 : vector<8x128xf32>
    %cst_46 = arith.constant 1.000000e+00 : f32
    %210 = vector.broadcast %cst_46 : f32 to vector<8x128xf32>
    %211 = arith.addf %210, %209 : vector<8x128xf32>
    %212 = arith.divf %210, %211 : vector<8x128xf32>
    %213 = vector.extract_strided_slice %206 {offsets = [0, 128], sizes = [8, 128], strides = [1, 1]} : vector<8x512xf32> to vector<8x128xf32>
    %214 = arith.negf %213 : vector<8x128xf32>
    %215 = math.exp %214 : vector<8x128xf32>
    %cst_47 = arith.constant 1.000000e+00 : f32
    %216 = vector.broadcast %cst_47 : f32 to vector<8x128xf32>
    %217 = arith.addf %216, %215 : vector<8x128xf32>
    %218 = arith.divf %216, %217 : vector<8x128xf32>
    %219 = vector.extract_strided_slice %206 {offsets = [0, 256], sizes = [8, 128], strides = [1, 1]} : vector<8x512xf32> to vector<8x128xf32>
    %220 = math.tanh %219 : vector<8x128xf32>
    %221 = vector.extract_strided_slice %206 {offsets = [0, 384], sizes = [8, 128], strides = [1, 1]} : vector<8x512xf32> to vector<8x128xf32>
    %222 = arith.negf %221 : vector<8x128xf32>
    %223 = math.exp %222 : vector<8x128xf32>
    %cst_48 = arith.constant 1.000000e+00 : f32
    %224 = vector.broadcast %cst_48 : f32 to vector<8x128xf32>
    %225 = arith.addf %224, %223 : vector<8x128xf32>
    %226 = arith.divf %224, %225 : vector<8x128xf32>
    %227 = arith.mulf %218, %166 : vector<8x128xf32>
    %228 = arith.mulf %212, %220 : vector<8x128xf32>
    %229 = arith.addf %227, %228 : vector<8x128xf32>
    %230 = math.tanh %229 : vector<8x128xf32>
    %231 = arith.mulf %226, %230 : vector<8x128xf32>
    %232 = tpu.concatenate %231, %197 in 1 : vector<8x128xf32>, vector<8x128xf32> -> vector<8x256xf32>
    %cst_49 = arith.constant dense<0.000000e+00> : vector<8x512xf32>
    %233 = tpu.matmul %232, %3, %cst_49 {dimension_numbers = #tpu.dot_dimension_numbers<[1], [0], [0], [1], [0, 0, 1, 1], [], []>} : vector<8x256xf32>, vector<256x512xf32>, vector<8x512xf32> -> vector<8x512xf32>
    %234 = vector.broadcast %4 : vector<1x512xf32> to vector<8x512xf32>
    %235 = arith.addf %233, %234 : vector<8x512xf32>
    %236 = vector.extract_strided_slice %235 {offsets = [0, 0], sizes = [8, 128], strides = [1, 1]} : vector<8x512xf32> to vector<8x128xf32>
    %237 = arith.negf %236 : vector<8x128xf32>
    %238 = math.exp %237 : vector<8x128xf32>
    %cst_50 = arith.constant 1.000000e+00 : f32
    %239 = vector.broadcast %cst_50 : f32 to vector<8x128xf32>
    %240 = arith.addf %239, %238 : vector<8x128xf32>
    %241 = arith.divf %239, %240 : vector<8x128xf32>
    %242 = vector.extract_strided_slice %235 {offsets = [0, 128], sizes = [8, 128], strides = [1, 1]} : vector<8x512xf32> to vector<8x128xf32>
    %243 = arith.negf %242 : vector<8x128xf32>
    %244 = math.exp %243 : vector<8x128xf32>
    %cst_51 = arith.constant 1.000000e+00 : f32
    %245 = vector.broadcast %cst_51 : f32 to vector<8x128xf32>
    %246 = arith.addf %245, %244 : vector<8x128xf32>
    %247 = arith.divf %245, %246 : vector<8x128xf32>
    %248 = vector.extract_strided_slice %235 {offsets = [0, 256], sizes = [8, 128], strides = [1, 1]} : vector<8x512xf32> to vector<8x128xf32>
    %249 = math.tanh %248 : vector<8x128xf32>
    %250 = vector.extract_strided_slice %235 {offsets = [0, 384], sizes = [8, 128], strides = [1, 1]} : vector<8x512xf32> to vector<8x128xf32>
    %251 = arith.negf %250 : vector<8x128xf32>
    %252 = math.exp %251 : vector<8x128xf32>
    %cst_52 = arith.constant 1.000000e+00 : f32
    %253 = vector.broadcast %cst_52 : f32 to vector<8x128xf32>
    %254 = arith.addf %253, %252 : vector<8x128xf32>
    %255 = arith.divf %253, %254 : vector<8x128xf32>
    %256 = arith.mulf %247, %195 : vector<8x128xf32>
    %257 = arith.mulf %241, %249 : vector<8x128xf32>
    %258 = arith.addf %256, %257 : vector<8x128xf32>
    %259 = math.tanh %258 : vector<8x128xf32>
    %260 = arith.mulf %255, %259 : vector<8x128xf32>
    %c4 = arith.constant 4 : index
    %c0_53 = arith.constant 0 : index
    %c0_54 = arith.constant 0 : index
    %261 = vector.load %arg1[%c4, %c0_53, %c0_54] : memref<8x8x1xf32, #tpu.memory_space<vmem>>, vector<1x8x1xf32>
    %262 = vector.shape_cast %261 : vector<1x8x1xf32> to vector<8x1xf32>
    %263 = vector.broadcast %262 : vector<8x1xf32> to vector<8x512xf32>
    %264 = vector.broadcast %0 : vector<1x512xf32> to vector<8x512xf32>
    %265 = arith.mulf %263, %264 : vector<8x512xf32>
    %cst_55 = arith.constant dense<0.000000e+00> : vector<8x512xf32>
    %266 = tpu.matmul %231, %1, %cst_55 {dimension_numbers = #tpu.dot_dimension_numbers<[1], [0], [0], [1], [0, 0, 1, 1], [], []>} : vector<8x128xf32>, vector<128x512xf32>, vector<8x512xf32> -> vector<8x512xf32>
    %267 = arith.addf %265, %266 : vector<8x512xf32>
    %268 = vector.broadcast %2 : vector<1x512xf32> to vector<8x512xf32>
    %269 = arith.addf %267, %268 : vector<8x512xf32>
    %270 = vector.extract_strided_slice %269 {offsets = [0, 0], sizes = [8, 128], strides = [1, 1]} : vector<8x512xf32> to vector<8x128xf32>
    %271 = arith.negf %270 : vector<8x128xf32>
    %272 = math.exp %271 : vector<8x128xf32>
    %cst_56 = arith.constant 1.000000e+00 : f32
    %273 = vector.broadcast %cst_56 : f32 to vector<8x128xf32>
    %274 = arith.addf %273, %272 : vector<8x128xf32>
    %275 = arith.divf %273, %274 : vector<8x128xf32>
    %276 = vector.extract_strided_slice %269 {offsets = [0, 128], sizes = [8, 128], strides = [1, 1]} : vector<8x512xf32> to vector<8x128xf32>
    %277 = arith.negf %276 : vector<8x128xf32>
    %278 = math.exp %277 : vector<8x128xf32>
    %cst_57 = arith.constant 1.000000e+00 : f32
    %279 = vector.broadcast %cst_57 : f32 to vector<8x128xf32>
    %280 = arith.addf %279, %278 : vector<8x128xf32>
    %281 = arith.divf %279, %280 : vector<8x128xf32>
    %282 = vector.extract_strided_slice %269 {offsets = [0, 256], sizes = [8, 128], strides = [1, 1]} : vector<8x512xf32> to vector<8x128xf32>
    %283 = math.tanh %282 : vector<8x128xf32>
    %284 = vector.extract_strided_slice %269 {offsets = [0, 384], sizes = [8, 128], strides = [1, 1]} : vector<8x512xf32> to vector<8x128xf32>
    %285 = arith.negf %284 : vector<8x128xf32>
    %286 = math.exp %285 : vector<8x128xf32>
    %cst_58 = arith.constant 1.000000e+00 : f32
    %287 = vector.broadcast %cst_58 : f32 to vector<8x128xf32>
    %288 = arith.addf %287, %286 : vector<8x128xf32>
    %289 = arith.divf %287, %288 : vector<8x128xf32>
    %290 = arith.mulf %281, %229 : vector<8x128xf32>
    %291 = arith.mulf %275, %283 : vector<8x128xf32>
    %292 = arith.addf %290, %291 : vector<8x128xf32>
    %293 = math.tanh %292 : vector<8x128xf32>
    %294 = arith.mulf %289, %293 : vector<8x128xf32>
    %295 = tpu.concatenate %294, %260 in 1 : vector<8x128xf32>, vector<8x128xf32> -> vector<8x256xf32>
    %cst_59 = arith.constant dense<0.000000e+00> : vector<8x512xf32>
    %296 = tpu.matmul %295, %3, %cst_59 {dimension_numbers = #tpu.dot_dimension_numbers<[1], [0], [0], [1], [0, 0, 1, 1], [], []>} : vector<8x256xf32>, vector<256x512xf32>, vector<8x512xf32> -> vector<8x512xf32>
    %297 = vector.broadcast %4 : vector<1x512xf32> to vector<8x512xf32>
    %298 = arith.addf %296, %297 : vector<8x512xf32>
    %299 = vector.extract_strided_slice %298 {offsets = [0, 0], sizes = [8, 128], strides = [1, 1]} : vector<8x512xf32> to vector<8x128xf32>
    %300 = arith.negf %299 : vector<8x128xf32>
    %301 = math.exp %300 : vector<8x128xf32>
    %cst_60 = arith.constant 1.000000e+00 : f32
    %302 = vector.broadcast %cst_60 : f32 to vector<8x128xf32>
    %303 = arith.addf %302, %301 : vector<8x128xf32>
    %304 = arith.divf %302, %303 : vector<8x128xf32>
    %305 = vector.extract_strided_slice %298 {offsets = [0, 128], sizes = [8, 128], strides = [1, 1]} : vector<8x512xf32> to vector<8x128xf32>
    %306 = arith.negf %305 : vector<8x128xf32>
    %307 = math.exp %306 : vector<8x128xf32>
    %cst_61 = arith.constant 1.000000e+00 : f32
    %308 = vector.broadcast %cst_61 : f32 to vector<8x128xf32>
    %309 = arith.addf %308, %307 : vector<8x128xf32>
    %310 = arith.divf %308, %309 : vector<8x128xf32>
    %311 = vector.extract_strided_slice %298 {offsets = [0, 256], sizes = [8, 128], strides = [1, 1]} : vector<8x512xf32> to vector<8x128xf32>
    %312 = math.tanh %311 : vector<8x128xf32>
    %313 = vector.extract_strided_slice %298 {offsets = [0, 384], sizes = [8, 128], strides = [1, 1]} : vector<8x512xf32> to vector<8x128xf32>
    %314 = arith.negf %313 : vector<8x128xf32>
    %315 = math.exp %314 : vector<8x128xf32>
    %cst_62 = arith.constant 1.000000e+00 : f32
    %316 = vector.broadcast %cst_62 : f32 to vector<8x128xf32>
    %317 = arith.addf %316, %315 : vector<8x128xf32>
    %318 = arith.divf %316, %317 : vector<8x128xf32>
    %319 = arith.mulf %310, %258 : vector<8x128xf32>
    %320 = arith.mulf %304, %312 : vector<8x128xf32>
    %321 = arith.addf %319, %320 : vector<8x128xf32>
    %322 = math.tanh %321 : vector<8x128xf32>
    %323 = arith.mulf %318, %322 : vector<8x128xf32>
    %c5 = arith.constant 5 : index
    %c0_63 = arith.constant 0 : index
    %c0_64 = arith.constant 0 : index
    %324 = vector.load %arg1[%c5, %c0_63, %c0_64] : memref<8x8x1xf32, #tpu.memory_space<vmem>>, vector<1x8x1xf32>
    %325 = vector.shape_cast %324 : vector<1x8x1xf32> to vector<8x1xf32>
    %326 = vector.broadcast %325 : vector<8x1xf32> to vector<8x512xf32>
    %327 = vector.broadcast %0 : vector<1x512xf32> to vector<8x512xf32>
    %328 = arith.mulf %326, %327 : vector<8x512xf32>
    %cst_65 = arith.constant dense<0.000000e+00> : vector<8x512xf32>
    %329 = tpu.matmul %294, %1, %cst_65 {dimension_numbers = #tpu.dot_dimension_numbers<[1], [0], [0], [1], [0, 0, 1, 1], [], []>} : vector<8x128xf32>, vector<128x512xf32>, vector<8x512xf32> -> vector<8x512xf32>
    %330 = arith.addf %328, %329 : vector<8x512xf32>
    %331 = vector.broadcast %2 : vector<1x512xf32> to vector<8x512xf32>
    %332 = arith.addf %330, %331 : vector<8x512xf32>
    %333 = vector.extract_strided_slice %332 {offsets = [0, 0], sizes = [8, 128], strides = [1, 1]} : vector<8x512xf32> to vector<8x128xf32>
    %334 = arith.negf %333 : vector<8x128xf32>
    %335 = math.exp %334 : vector<8x128xf32>
    %cst_66 = arith.constant 1.000000e+00 : f32
    %336 = vector.broadcast %cst_66 : f32 to vector<8x128xf32>
    %337 = arith.addf %336, %335 : vector<8x128xf32>
    %338 = arith.divf %336, %337 : vector<8x128xf32>
    %339 = vector.extract_strided_slice %332 {offsets = [0, 128], sizes = [8, 128], strides = [1, 1]} : vector<8x512xf32> to vector<8x128xf32>
    %340 = arith.negf %339 : vector<8x128xf32>
    %341 = math.exp %340 : vector<8x128xf32>
    %cst_67 = arith.constant 1.000000e+00 : f32
    %342 = vector.broadcast %cst_67 : f32 to vector<8x128xf32>
    %343 = arith.addf %342, %341 : vector<8x128xf32>
    %344 = arith.divf %342, %343 : vector<8x128xf32>
    %345 = vector.extract_strided_slice %332 {offsets = [0, 256], sizes = [8, 128], strides = [1, 1]} : vector<8x512xf32> to vector<8x128xf32>
    %346 = math.tanh %345 : vector<8x128xf32>
    %347 = vector.extract_strided_slice %332 {offsets = [0, 384], sizes = [8, 128], strides = [1, 1]} : vector<8x512xf32> to vector<8x128xf32>
    %348 = arith.negf %347 : vector<8x128xf32>
    %349 = math.exp %348 : vector<8x128xf32>
    %cst_68 = arith.constant 1.000000e+00 : f32
    %350 = vector.broadcast %cst_68 : f32 to vector<8x128xf32>
    %351 = arith.addf %350, %349 : vector<8x128xf32>
    %352 = arith.divf %350, %351 : vector<8x128xf32>
    %353 = arith.mulf %344, %292 : vector<8x128xf32>
    %354 = arith.mulf %338, %346 : vector<8x128xf32>
    %355 = arith.addf %353, %354 : vector<8x128xf32>
    %356 = math.tanh %355 : vector<8x128xf32>
    %357 = arith.mulf %352, %356 : vector<8x128xf32>
    %358 = tpu.concatenate %357, %323 in 1 : vector<8x128xf32>, vector<8x128xf32> -> vector<8x256xf32>
    %cst_69 = arith.constant dense<0.000000e+00> : vector<8x512xf32>
    %359 = tpu.matmul %358, %3, %cst_69 {dimension_numbers = #tpu.dot_dimension_numbers<[1], [0], [0], [1], [0, 0, 1, 1], [], []>} : vector<8x256xf32>, vector<256x512xf32>, vector<8x512xf32> -> vector<8x512xf32>
    %360 = vector.broadcast %4 : vector<1x512xf32> to vector<8x512xf32>
    %361 = arith.addf %359, %360 : vector<8x512xf32>
    %362 = vector.extract_strided_slice %361 {offsets = [0, 0], sizes = [8, 128], strides = [1, 1]} : vector<8x512xf32> to vector<8x128xf32>
    %363 = arith.negf %362 : vector<8x128xf32>
    %364 = math.exp %363 : vector<8x128xf32>
    %cst_70 = arith.constant 1.000000e+00 : f32
    %365 = vector.broadcast %cst_70 : f32 to vector<8x128xf32>
    %366 = arith.addf %365, %364 : vector<8x128xf32>
    %367 = arith.divf %365, %366 : vector<8x128xf32>
    %368 = vector.extract_strided_slice %361 {offsets = [0, 128], sizes = [8, 128], strides = [1, 1]} : vector<8x512xf32> to vector<8x128xf32>
    %369 = arith.negf %368 : vector<8x128xf32>
    %370 = math.exp %369 : vector<8x128xf32>
    %cst_71 = arith.constant 1.000000e+00 : f32
    %371 = vector.broadcast %cst_71 : f32 to vector<8x128xf32>
    %372 = arith.addf %371, %370 : vector<8x128xf32>
    %373 = arith.divf %371, %372 : vector<8x128xf32>
    %374 = vector.extract_strided_slice %361 {offsets = [0, 256], sizes = [8, 128], strides = [1, 1]} : vector<8x512xf32> to vector<8x128xf32>
    %375 = math.tanh %374 : vector<8x128xf32>
    %376 = vector.extract_strided_slice %361 {offsets = [0, 384], sizes = [8, 128], strides = [1, 1]} : vector<8x512xf32> to vector<8x128xf32>
    %377 = arith.negf %376 : vector<8x128xf32>
    %378 = math.exp %377 : vector<8x128xf32>
    %cst_72 = arith.constant 1.000000e+00 : f32
    %379 = vector.broadcast %cst_72 : f32 to vector<8x128xf32>
    %380 = arith.addf %379, %378 : vector<8x128xf32>
    %381 = arith.divf %379, %380 : vector<8x128xf32>
    %382 = arith.mulf %373, %321 : vector<8x128xf32>
    %383 = arith.mulf %367, %375 : vector<8x128xf32>
    %384 = arith.addf %382, %383 : vector<8x128xf32>
    %385 = math.tanh %384 : vector<8x128xf32>
    %386 = arith.mulf %381, %385 : vector<8x128xf32>
    %c6 = arith.constant 6 : index
    %c0_73 = arith.constant 0 : index
    %c0_74 = arith.constant 0 : index
    %387 = vector.load %arg1[%c6, %c0_73, %c0_74] : memref<8x8x1xf32, #tpu.memory_space<vmem>>, vector<1x8x1xf32>
    %388 = vector.shape_cast %387 : vector<1x8x1xf32> to vector<8x1xf32>
    %389 = vector.broadcast %388 : vector<8x1xf32> to vector<8x512xf32>
    %390 = vector.broadcast %0 : vector<1x512xf32> to vector<8x512xf32>
    %391 = arith.mulf %389, %390 : vector<8x512xf32>
    %cst_75 = arith.constant dense<0.000000e+00> : vector<8x512xf32>
    %392 = tpu.matmul %357, %1, %cst_75 {dimension_numbers = #tpu.dot_dimension_numbers<[1], [0], [0], [1], [0, 0, 1, 1], [], []>} : vector<8x128xf32>, vector<128x512xf32>, vector<8x512xf32> -> vector<8x512xf32>
    %393 = arith.addf %391, %392 : vector<8x512xf32>
    %394 = vector.broadcast %2 : vector<1x512xf32> to vector<8x512xf32>
    %395 = arith.addf %393, %394 : vector<8x512xf32>
    %396 = vector.extract_strided_slice %395 {offsets = [0, 0], sizes = [8, 128], strides = [1, 1]} : vector<8x512xf32> to vector<8x128xf32>
    %397 = arith.negf %396 : vector<8x128xf32>
    %398 = math.exp %397 : vector<8x128xf32>
    %cst_76 = arith.constant 1.000000e+00 : f32
    %399 = vector.broadcast %cst_76 : f32 to vector<8x128xf32>
    %400 = arith.addf %399, %398 : vector<8x128xf32>
    %401 = arith.divf %399, %400 : vector<8x128xf32>
    %402 = vector.extract_strided_slice %395 {offsets = [0, 128], sizes = [8, 128], strides = [1, 1]} : vector<8x512xf32> to vector<8x128xf32>
    %403 = arith.negf %402 : vector<8x128xf32>
    %404 = math.exp %403 : vector<8x128xf32>
    %cst_77 = arith.constant 1.000000e+00 : f32
    %405 = vector.broadcast %cst_77 : f32 to vector<8x128xf32>
    %406 = arith.addf %405, %404 : vector<8x128xf32>
    %407 = arith.divf %405, %406 : vector<8x128xf32>
    %408 = vector.extract_strided_slice %395 {offsets = [0, 256], sizes = [8, 128], strides = [1, 1]} : vector<8x512xf32> to vector<8x128xf32>
    %409 = math.tanh %408 : vector<8x128xf32>
    %410 = vector.extract_strided_slice %395 {offsets = [0, 384], sizes = [8, 128], strides = [1, 1]} : vector<8x512xf32> to vector<8x128xf32>
    %411 = arith.negf %410 : vector<8x128xf32>
    %412 = math.exp %411 : vector<8x128xf32>
    %cst_78 = arith.constant 1.000000e+00 : f32
    %413 = vector.broadcast %cst_78 : f32 to vector<8x128xf32>
    %414 = arith.addf %413, %412 : vector<8x128xf32>
    %415 = arith.divf %413, %414 : vector<8x128xf32>
    %416 = arith.mulf %407, %355 : vector<8x128xf32>
    %417 = arith.mulf %401, %409 : vector<8x128xf32>
    %418 = arith.addf %416, %417 : vector<8x128xf32>
    %419 = math.tanh %418 : vector<8x128xf32>
    %420 = arith.mulf %415, %419 : vector<8x128xf32>
    %421 = tpu.concatenate %420, %386 in 1 : vector<8x128xf32>, vector<8x128xf32> -> vector<8x256xf32>
    %cst_79 = arith.constant dense<0.000000e+00> : vector<8x512xf32>
    %422 = tpu.matmul %421, %3, %cst_79 {dimension_numbers = #tpu.dot_dimension_numbers<[1], [0], [0], [1], [0, 0, 1, 1], [], []>} : vector<8x256xf32>, vector<256x512xf32>, vector<8x512xf32> -> vector<8x512xf32>
    %423 = vector.broadcast %4 : vector<1x512xf32> to vector<8x512xf32>
    %424 = arith.addf %422, %423 : vector<8x512xf32>
    %425 = vector.extract_strided_slice %424 {offsets = [0, 0], sizes = [8, 128], strides = [1, 1]} : vector<8x512xf32> to vector<8x128xf32>
    %426 = arith.negf %425 : vector<8x128xf32>
    %427 = math.exp %426 : vector<8x128xf32>
    %cst_80 = arith.constant 1.000000e+00 : f32
    %428 = vector.broadcast %cst_80 : f32 to vector<8x128xf32>
    %429 = arith.addf %428, %427 : vector<8x128xf32>
    %430 = arith.divf %428, %429 : vector<8x128xf32>
    %431 = vector.extract_strided_slice %424 {offsets = [0, 128], sizes = [8, 128], strides = [1, 1]} : vector<8x512xf32> to vector<8x128xf32>
    %432 = arith.negf %431 : vector<8x128xf32>
    %433 = math.exp %432 : vector<8x128xf32>
    %cst_81 = arith.constant 1.000000e+00 : f32
    %434 = vector.broadcast %cst_81 : f32 to vector<8x128xf32>
    %435 = arith.addf %434, %433 : vector<8x128xf32>
    %436 = arith.divf %434, %435 : vector<8x128xf32>
    %437 = vector.extract_strided_slice %424 {offsets = [0, 256], sizes = [8, 128], strides = [1, 1]} : vector<8x512xf32> to vector<8x128xf32>
    %438 = math.tanh %437 : vector<8x128xf32>
    %439 = vector.extract_strided_slice %424 {offsets = [0, 384], sizes = [8, 128], strides = [1, 1]} : vector<8x512xf32> to vector<8x128xf32>
    %440 = arith.negf %439 : vector<8x128xf32>
    %441 = math.exp %440 : vector<8x128xf32>
    %cst_82 = arith.constant 1.000000e+00 : f32
    %442 = vector.broadcast %cst_82 : f32 to vector<8x128xf32>
    %443 = arith.addf %442, %441 : vector<8x128xf32>
    %444 = arith.divf %442, %443 : vector<8x128xf32>
    %445 = arith.mulf %436, %384 : vector<8x128xf32>
    %446 = arith.mulf %430, %438 : vector<8x128xf32>
    %447 = arith.addf %445, %446 : vector<8x128xf32>
    %448 = math.tanh %447 : vector<8x128xf32>
    %449 = arith.mulf %444, %448 : vector<8x128xf32>
    %c7 = arith.constant 7 : index
    %c0_83 = arith.constant 0 : index
    %c0_84 = arith.constant 0 : index
    %450 = vector.load %arg1[%c7, %c0_83, %c0_84] : memref<8x8x1xf32, #tpu.memory_space<vmem>>, vector<1x8x1xf32>
    %451 = vector.shape_cast %450 : vector<1x8x1xf32> to vector<8x1xf32>
    %452 = vector.broadcast %451 : vector<8x1xf32> to vector<8x512xf32>
    %453 = vector.broadcast %0 : vector<1x512xf32> to vector<8x512xf32>
    %454 = arith.mulf %452, %453 : vector<8x512xf32>
    %cst_85 = arith.constant dense<0.000000e+00> : vector<8x512xf32>
    %455 = tpu.matmul %420, %1, %cst_85 {dimension_numbers = #tpu.dot_dimension_numbers<[1], [0], [0], [1], [0, 0, 1, 1], [], []>} : vector<8x128xf32>, vector<128x512xf32>, vector<8x512xf32> -> vector<8x512xf32>
    %456 = arith.addf %454, %455 : vector<8x512xf32>
    %457 = vector.broadcast %2 : vector<1x512xf32> to vector<8x512xf32>
    %458 = arith.addf %456, %457 : vector<8x512xf32>
    %459 = vector.extract_strided_slice %458 {offsets = [0, 0], sizes = [8, 128], strides = [1, 1]} : vector<8x512xf32> to vector<8x128xf32>
    %460 = arith.negf %459 : vector<8x128xf32>
    %461 = math.exp %460 : vector<8x128xf32>
    %cst_86 = arith.constant 1.000000e+00 : f32
    %462 = vector.broadcast %cst_86 : f32 to vector<8x128xf32>
    %463 = arith.addf %462, %461 : vector<8x128xf32>
    %464 = arith.divf %462, %463 : vector<8x128xf32>
    %465 = vector.extract_strided_slice %458 {offsets = [0, 128], sizes = [8, 128], strides = [1, 1]} : vector<8x512xf32> to vector<8x128xf32>
    %466 = arith.negf %465 : vector<8x128xf32>
    %467 = math.exp %466 : vector<8x128xf32>
    %cst_87 = arith.constant 1.000000e+00 : f32
    %468 = vector.broadcast %cst_87 : f32 to vector<8x128xf32>
    %469 = arith.addf %468, %467 : vector<8x128xf32>
    %470 = arith.divf %468, %469 : vector<8x128xf32>
    %471 = vector.extract_strided_slice %458 {offsets = [0, 256], sizes = [8, 128], strides = [1, 1]} : vector<8x512xf32> to vector<8x128xf32>
    %472 = math.tanh %471 : vector<8x128xf32>
    %473 = vector.extract_strided_slice %458 {offsets = [0, 384], sizes = [8, 128], strides = [1, 1]} : vector<8x512xf32> to vector<8x128xf32>
    %474 = arith.negf %473 : vector<8x128xf32>
    %475 = math.exp %474 : vector<8x128xf32>
    %cst_88 = arith.constant 1.000000e+00 : f32
    %476 = vector.broadcast %cst_88 : f32 to vector<8x128xf32>
    %477 = arith.addf %476, %475 : vector<8x128xf32>
    %478 = arith.divf %476, %477 : vector<8x128xf32>
    %479 = arith.mulf %470, %418 : vector<8x128xf32>
    %480 = arith.mulf %464, %472 : vector<8x128xf32>
    %481 = arith.addf %479, %480 : vector<8x128xf32>
    %482 = math.tanh %481 : vector<8x128xf32>
    %483 = arith.mulf %478, %482 : vector<8x128xf32>
    %484 = tpu.concatenate %483, %449 in 1 : vector<8x128xf32>, vector<8x128xf32> -> vector<8x256xf32>
    %cst_89 = arith.constant dense<0.000000e+00> : vector<8x512xf32>
    %485 = tpu.matmul %484, %3, %cst_89 {dimension_numbers = #tpu.dot_dimension_numbers<[1], [0], [0], [1], [0, 0, 1, 1], [], []>} : vector<8x256xf32>, vector<256x512xf32>, vector<8x512xf32> -> vector<8x512xf32>
    %486 = vector.broadcast %4 : vector<1x512xf32> to vector<8x512xf32>
    %487 = arith.addf %485, %486 : vector<8x512xf32>
    %488 = vector.extract_strided_slice %487 {offsets = [0, 0], sizes = [8, 128], strides = [1, 1]} : vector<8x512xf32> to vector<8x128xf32>
    %489 = arith.negf %488 : vector<8x128xf32>
    %490 = math.exp %489 : vector<8x128xf32>
    %cst_90 = arith.constant 1.000000e+00 : f32
    %491 = vector.broadcast %cst_90 : f32 to vector<8x128xf32>
    %492 = arith.addf %491, %490 : vector<8x128xf32>
    %493 = arith.divf %491, %492 : vector<8x128xf32>
    %494 = vector.extract_strided_slice %487 {offsets = [0, 128], sizes = [8, 128], strides = [1, 1]} : vector<8x512xf32> to vector<8x128xf32>
    %495 = arith.negf %494 : vector<8x128xf32>
    %496 = math.exp %495 : vector<8x128xf32>
    %cst_91 = arith.constant 1.000000e+00 : f32
    %497 = vector.broadcast %cst_91 : f32 to vector<8x128xf32>
    %498 = arith.addf %497, %496 : vector<8x128xf32>
    %499 = arith.divf %497, %498 : vector<8x128xf32>
    %500 = vector.extract_strided_slice %487 {offsets = [0, 256], sizes = [8, 128], strides = [1, 1]} : vector<8x512xf32> to vector<8x128xf32>
    %501 = math.tanh %500 : vector<8x128xf32>
    %502 = vector.extract_strided_slice %487 {offsets = [0, 384], sizes = [8, 128], strides = [1, 1]} : vector<8x512xf32> to vector<8x128xf32>
    %503 = arith.negf %502 : vector<8x128xf32>
    %504 = math.exp %503 : vector<8x128xf32>
    %cst_92 = arith.constant 1.000000e+00 : f32
    %505 = vector.broadcast %cst_92 : f32 to vector<8x128xf32>
    %506 = arith.addf %505, %504 : vector<8x128xf32>
    %507 = arith.divf %505, %506 : vector<8x128xf32>
    %508 = arith.mulf %499, %447 : vector<8x128xf32>
    %509 = arith.mulf %493, %501 : vector<8x128xf32>
    %510 = arith.addf %508, %509 : vector<8x128xf32>
    %511 = math.tanh %510 : vector<8x128xf32>
    %512 = arith.mulf %507, %511 : vector<8x128xf32>
    %c0_93 = arith.constant 0 : index
    %c0_94 = arith.constant 0 : index
    %513 = vector.load %arg7[%c0_93, %c0_94] : memref<128x1xf32, #tpu.memory_space<vmem>>, vector<128x1xf32>
    %cst_95 = arith.constant dense<0.000000e+00> : vector<8x1xf32>
    %514 = tpu.matmul %512, %513, %cst_95 {dimension_numbers = #tpu.dot_dimension_numbers<[1], [0], [0], [1], [0, 0, 1, 1], [], []>} : vector<8x128xf32>, vector<128x1xf32>, vector<8x1xf32> -> vector<8x1xf32>
    %c0_96 = arith.constant 0 : index
    %c0_97 = arith.constant 0 : index
    %515 = vector.load %arg8[%c0_96, %c0_97] : memref<1x1xf32, #tpu.memory_space<vmem>>, vector<1x1xf32>
    %516 = vector.broadcast %515 : vector<1x1xf32> to vector<8x1xf32>
    %517 = arith.addf %514, %516 : vector<8x1xf32>
    %c0_98 = arith.constant 0 : index
    %c0_99 = arith.constant 0 : index
    %518 = vector.load %arg9[%c0_98, %c0_99] : memref<8x1xf32, #tpu.memory_space<vmem>>, vector<8x1xf32>
    tpu.vector_store %arg9[%c0_98, %c0_99], %517 {strides = array<i32>} : memref<8x1xf32, #tpu.memory_space<vmem>>, vector<8x1xf32>,
    return
  }
  func.func @transform_0(%arg0: i32) -> (i32, i32, i32) {
    %c0_i32 = arith.constant 0 : i32
    %c0_i32_0 = arith.constant 0 : i32
    %c0_i32_1 = arith.constant 0 : i32
    %c0_i32_2 = arith.constant 0 : i32
    return %c0_i32, %c0_i32_0, %c0_i32_1 : i32, i32, i32
  }
  func.func @transform_1(%arg0: i32) -> (i32, i32) {
    %c0_i32 = arith.constant 0 : i32
    %c0_i32_0 = arith.constant 0 : i32
    %c0_i32_1 = arith.constant 0 : i32
    return %c0_i32, %c0_i32_0 : i32, i32
  }
  func.func @transform_2(%arg0: i32) -> (i32, i32) {
    %c0_i32 = arith.constant 0 : i32
    %c0_i32_0 = arith.constant 0 : i32
    %c0_i32_1 = arith.constant 0 : i32
    return %c0_i32, %c0_i32_0 : i32, i32
  }
  func.func @transform_3(%arg0: i32) -> (i32, i32) {
    %c0_i32 = arith.constant 0 : i32
    %c0_i32_0 = arith.constant 0 : i32
    %c0_i32_1 = arith.constant 0 : i32
    return %c0_i32, %c0_i32_0 : i32, i32
  }
  func.func @transform_4(%arg0: i32) -> (i32, i32) {
    %c0_i32 = arith.constant 0 : i32
    %c0_i32_0 = arith.constant 0 : i32
    %c0_i32_1 = arith.constant 0 : i32
    return %c0_i32, %c0_i32_0 : i32, i32
  }
  func.func @transform_5(%arg0: i32) -> (i32, i32) {
    %c0_i32 = arith.constant 0 : i32
    %c0_i32_0 = arith.constant 0 : i32
    %c0_i32_1 = arith.constant 0 : i32
    return %c0_i32, %c0_i32_0 : i32, i32
  }
  func.func @transform_6(%arg0: i32) -> (i32, i32) {
    %c0_i32 = arith.constant 0 : i32
    %c0_i32_0 = arith.constant 0 : i32
    %c0_i32_1 = arith.constant 0 : i32
    return %c0_i32, %c0_i32_0 : i32, i32
  }
  func.func @transform_7(%arg0: i32) -> (i32, i32) {
    %c0_i32 = arith.constant 0 : i32
    %c0_i32_0 = arith.constant 0 : i32
    %c0_i32_1 = arith.constant 0 : i32
    return %c0_i32, %c0_i32_0 : i32, i32
  }
  func.func @transform_8(%arg0: i32) -> (i32, i32) {
    %c0_i32 = arith.constant 0 : i32
    %c0_i32_0 = arith.constant 0 : i32
    %c0_i32_1 = arith.constant 0 : i32
    return %c0_i32, %c0_i32_0 : i32, i32
  }
}

</mosaic_0001>

<llo_original>
// kernel: tpu_custom_call.1
$region0: #{tpu_custom_call.1}
  #allocation0 [shape = 'u32[]', space=smem, size = 0x4, offset = 0x4, fixed_abs, tag = 'smem constant byte address 0x4 - core index']
  #allocation1 [shape = 'u32[144,128]{1,0:T(1,128)}', space=vmem, size = 0x12000, scoped, tag = 'internal scratch']
  #allocation2 [shape = 'f32[1,1]{1,0:T(1,128)S(1)}', space=vmem, size = 0x200, scoped, tag = 'scoped memory for tpu_custom_call.1']
  %s0 = inlined_call_operand.vmem [shape: f32[8,8,1], index: 0, kind: input, shape index: {}]
  %s1 = inlined_call_operand.vmem [shape: f32[1,512], index: 1, kind: input, shape index: {}]
  %s2 = inlined_call_operand.hbm [shape: f32[128,512], index: 2, kind: input, shape index: {}]
  %s3 = inlined_call_operand.vmem [shape: f32[1,512], index: 3, kind: input, shape index: {}]
  %s4 = inlined_call_operand.hbm [shape: f32[256,512], index: 4, kind: input, shape index: {}]
  %s5 = inlined_call_operand.vmem [shape: f32[1,512], index: 5, kind: input, shape index: {}]
  %s6 = inlined_call_operand.vmem [shape: f32[128,1], index: 6, kind: input, shape index: {}]
  %s7 = inlined_call_operand.<no memory space> [shape: f32[1,1], index: 7, kind: input, shape index: {}]
  %s8 = inlined_call_operand.vmem [shape: f32[8,1], index: 8, kind: output, shape index: {}]
  %s9 = sld [smem:[#allocation0]]
  $region50: #{tpu_custom_call.1} parent=0
    _
  %s11 = ssub.s32 1, %s9
  %s12 = scalar_select 0, %s11, %s9
  %v13 = vstv %s7
  %14 = vst [vmem:[#allocation2] sm:$0x1] %v13
  $region1: #{tpu_custom_call.1} parent=0
    #allocation3 [shape = 'u8[262144]{0}', space=vmem, size = 0x40000, scoped, tag = 'input window, operand 2, single buffered']
    #allocation4 [shape = 's32[1]{0}', space=sflag, size = 0x4, scoped, tag = 'scoped memory for tpu_custom_call.1']
    #allocation5 [shape = 'u8[524288]{0}', space=vmem, size = 0x80000, scoped, tag = 'input window, operand 4, single buffered']
    #allocation6 [shape = 's32[1]{0}', space=sflag, size = 0x4, scoped, tag = 'scoped memory for tpu_custom_call.1']
    %15 = vsyncpa [#allocation4], 0
    %16 = vsyncpa [#allocation6], 0
    // Predicated region
    $region2: #{tpu_custom_call.1} parent=1 // pred_check
      _
    $region3: #{tpu_custom_call.1} parent=1 // pred_check_branch
      %18 = sbr.rel (0) target = $region5
    $region4: #{tpu_custom_call.1} parent=1 // pred_region
      _
    $region5: #{tpu_custom_call.1} parent=1 // pred_fallthru
      _
    // Predicated region
    $region6: #{tpu_custom_call.1} parent=1 // pred_check
      _
    $region7: #{tpu_custom_call.1} parent=1 // pred_check_branch
      %20 = sbr.rel (0) target = $region9
    $region8: #{tpu_custom_call.1} parent=1 // pred_region
      _
    $region9: #{tpu_custom_call.1} parent=1 // pred_fallthru
      _
    // Predicated region
    $region10: #{tpu_custom_call.1} parent=1 // pred_check
      _
    $region11: #{tpu_custom_call.1} parent=1 // pred_check_branch
      %22 = sbr.rel (0) target = $region13
    $region12: #{tpu_custom_call.1} parent=1 // pred_region
      %s24 = ssub.s32 8192, 8192
      %25 = vsyncadd [#allocation4], %s24
      %s26 = sshll.u32 [#allocation3], 4
      %s27 = int_to_ptr.vmem [resolvable:$true] %s26
      %32 = dma.hbm_to_vmem [thread:$0]  %s2, 8192, %s27, [#allocation4], 512, 512, 32
    $region13: #{tpu_custom_call.1} parent=1 // pred_fallthru
      _
    // Predicated region
    $region14: #{tpu_custom_call.1} parent=1 // pred_check
      _
    $region15: #{tpu_custom_call.1} parent=1 // pred_check_branch
      %34 = sbr.rel (0) target = $region17
    $region16: #{tpu_custom_call.1} parent=1 // pred_region
      _
    $region17: #{tpu_custom_call.1} parent=1 // pred_fallthru
      _
    // Predicated region
    $region18: #{tpu_custom_call.1} parent=1 // pred_check
      _
    $region19: #{tpu_custom_call.1} parent=1 // pred_check_branch
      %36 = sbr.rel (0) target = $region21
    $region20: #{tpu_custom_call.1} parent=1 // pred_region
      %s38 = ssub.s32 16384, 16384
      %39 = vsyncadd [#allocation6], %s38
      %s40 = sshll.u32 [#allocation5], 4
      %s41 = int_to_ptr.vmem [resolvable:$true] %s40
      %46 = dma.hbm_to_vmem [thread:$0]  %s4, 16384, %s41, [#allocation6], 512, 512, 32
    $region21: #{tpu_custom_call.1} parent=1 // pred_fallthru
      _
    // Predicated region
    $region22: #{tpu_custom_call.1} parent=1 // pred_check
      _
    $region23: #{tpu_custom_call.1} parent=1 // pred_check_branch
      %48 = sbr.rel (0) target = $region25
    $region24: #{tpu_custom_call.1} parent=1 // pred_region
      _
    $region25: #{tpu_custom_call.1} parent=1 // pred_fallthru
      _
    // Predicated region
    $region26: #{tpu_custom_call.1} parent=1 // pred_check
      _
    $region27: #{tpu_custom_call.1} parent=1 // pred_check_branch
      %50 = sbr.rel (0) target = $region29
    $region28: #{tpu_custom_call.1} parent=1 // pred_region
      _
    $region29: #{tpu_custom_call.1} parent=1 // pred_fallthru
      _
    // Predicated region
    $region30: #{tpu_custom_call.1} parent=1 // pred_check
      _
    $region31: #{tpu_custom_call.1} parent=1 // pred_check_branch
      %52 = sbr.rel (0) target = $region33
    $region32: #{tpu_custom_call.1} parent=1 // pred_region
      _
    $region33: #{tpu_custom_call.1} parent=1 // pred_fallthru
      _
    // Predicated region
    $region34: #{tpu_custom_call.1} parent=1 // pred_check
      _
    $region35: #{tpu_custom_call.1} parent=1 // pred_check_branch
      %54 = sbr.rel (0) target = $region37
    $region36: #{tpu_custom_call.1} parent=1 // pred_region
      %55 = dma.done [#allocation4], 8192
    $region37: #{tpu_custom_call.1} parent=1 // pred_fallthru
      _
    // Predicated region
    $region38: #{tpu_custom_call.1} parent=1 // pred_check
      _
    $region39: #{tpu_custom_call.1} parent=1 // pred_check_branch
      %57 = sbr.rel (0) target = $region41
    $region40: #{tpu_custom_call.1} parent=1 // pred_region
      %58 = dma.done [#allocation6], 16384
    $region41: #{tpu_custom_call.1} parent=1 // pred_fallthru
      _
    %v59 = vld [vmem:[%s1] sm:$0xf]
    %v60 = vld [vmem:[#allocation3] sm:$0xff]
    %v61 = vld [vmem:[#allocation3 + $0x8] sm:$0xff]
    %v62 = vld [vmem:[#allocation3 + $0x10] sm:$0xff]
    %v63 = vld [vmem:[#allocation3 + $0x18] sm:$0xff]
    %v64 = vld [vmem:[#allocation3 + $0x20] sm:$0xff]
    %v65 = vld [vmem:[#allocation3 + $0x28] sm:$0xff]
    %v66 = vld [vmem:[#allocation3 + $0x30] sm:$0xff]
    %v67 = vld [vmem:[#allocation3 + $0x38] sm:$0xff]
    %v68 = vld [vmem:[#allocation3 + $0x40] sm:$0xff]
    %v69 = vld [vmem:[#allocation3 + $0x48] sm:$0xff]
    %v70 = vld [vmem:[#allocation3 + $0x50] sm:$0xff]
    %v71 = vld [vmem:[#allocation3 + $0x58] sm:$0xff]
    %v72 = vld [vmem:[#allocation3 + $0x60] sm:$0xff]
    %v73 = vld [vmem:[#allocation3 + $0x68] sm:$0xff]
    %v74 = vld [vmem:[#allocation3 + $0x70] sm:$0xff]
    %v75 = vld [vmem:[#allocation3 + $0x78] sm:$0xff]
    %v76 = vld [vmem:[#allocation3 + $0x80] sm:$0xff]
    %v77 = vld [vmem:[#allocation3 + $0x88] sm:$0xff]
    %v78 = vld [vmem:[#allocation3 + $0x90] sm:$0xff]
    %v79 = vld [vmem:[#allocation3 + $0x98] sm:$0xff]
    %v80 = vld [vmem:[#allocation3 + $0xa0] sm:$0xff]
    %v81 = vld [vmem:[#allocation3 + $0xa8] sm:$0xff]
    %v82 = vld [vmem:[#allocation3 + $0xb0] sm:$0xff]
    %v83 = vld [vmem:[#allocation3 + $0xb8] sm:$0xff]
    %v84 = vld [vmem:[#allocation3 + $0xc0] sm:$0xff]
    %v85 = vld [vmem:[#allocation3 + $0xc8] sm:$0xff]
    %v86 = vld [vmem:[#allocation3 + $0xd0] sm:$0xff]
    %v87 = vld [vmem:[#allocation3 + $0xd8] sm:$0xff]
    %v88 = vld [vmem:[#allocation3 + $0xe0] sm:$0xff]
    %v89 = vld [vmem:[#allocation3 + $0xe8] sm:$0xff]
    %v90 = vld [vmem:[#allocation3 + $0xf0] sm:$0xff]
    %v91 = vld [vmem:[#allocation3 + $0xf8] sm:$0xff]
    %v92 = vld [vmem:[#allocation3 + $0x100] sm:$0xff]
    %v93 = vld [vmem:[#allocation3 + $0x108] sm:$0xff]
    %v94 = vld [vmem:[#allocation3 + $0x110] sm:$0xff]
    %v95 = vld [vmem:[#allocation3 + $0x118] sm:$0xff]
    %v96 = vld [vmem:[#allocation3 + $0x120] sm:$0xff]
    %v97 = vld [vmem:[#allocation3 + $0x128] sm:$0xff]
    %v98 = vld [vmem:[#allocation3 + $0x130] sm:$0xff]
    %v99 = vld [vmem:[#allocation3 + $0x138] sm:$0xff]
    %v100 = vld [vmem:[#allocation3 + $0x140] sm:$0xff]
    %v101 = vld [vmem:[#allocation3 + $0x148] sm:$0xff]
    %v102 = vld [vmem:[#allocation3 + $0x150] sm:$0xff]
    %v103 = vld [vmem:[#allocation3 + $0x158] sm:$0xff]
    %v104 = vld [vmem:[#allocation3 + $0x160] sm:$0xff]
    %v105 = vld [vmem:[#allocation3 + $0x168] sm:$0xff]
    %v106 = vld [vmem:[#allocation3 + $0x170] sm:$0xff]
    %v107 = vld [vmem:[#allocation3 + $0x178] sm:$0xff]
    %v108 = vld [vmem:[#allocation3 + $0x180] sm:$0xff]
    %v109 = vld [vmem:[#allocation3 + $0x188] sm:$0xff]
    %v110 = vld [vmem:[#allocation3 + $0x190] sm:$0xff]
    %v111 = vld [vmem:[#allocation3 + $0x198] sm:$0xff]
    %v112 = vld [vmem:[#allocation3 + $0x1a0] sm:$0xff]
    %v113 = vld [vmem:[#allocation3 + $0x1a8] sm:$0xff]
    %v114 = vld [vmem:[#allocation3 + $0x1b0] sm:$0xff]
    %v115 = vld [vmem:[#allocation3 + $0x1b8] sm:$0xff]
    %v116 = vld [vmem:[#allocation3 + $0x1c0] sm:$0xff]
    %v117 = vld [vmem:[#allocation3 + $0x1c8] sm:$0xff]
    %v118 = vld [vmem:[#allocation3 + $0x1d0] sm:$0xff]
    %v119 = vld [vmem:[#allocation3 + $0x1d8] sm:$0xff]
    %v120 = vld [vmem:[#allocation3 + $0x1e0] sm:$0xff]
    %v121 = vld [vmem:[#allocation3 + $0x1e8] sm:$0xff]
    %v122 = vld [vmem:[#allocation3 + $0x1f0] sm:$0xff]
    %v123 = vld [vmem:[#allocation3 + $0x1f8] sm:$0xff]
    %v124 = vld [vmem:[%s3] sm:$0xf]
    %v125 = vld [vmem:[#allocation5] sm:$0xff]
    %v126 = vld [vmem:[#allocation5 + $0x8] sm:$0xff]
    %v127 = vld [vmem:[#allocation5 + $0x10] sm:$0xff]
    %v128 = vld [vmem:[#allocation5 + $0x18] sm:$0xff]
    %v129 = vld [vmem:[#allocation5 + $0x20] sm:$0xff]
    %v130 = vld [vmem:[#allocation5 + $0x28] sm:$0xff]
    %v131 = vld [vmem:[#allocation5 + $0x30] sm:$0xff]
    %v132 = vld [vmem:[#allocation5 + $0x38] sm:$0xff]
    %v133 = vld [vmem:[#allocation5 + $0x40] sm:$0xff]
    %v134 = vld [vmem:[#allocation5 + $0x48] sm:$0xff]
    %v135 = vld [vmem:[#allocation5 + $0x50] sm:$0xff]
    %v136 = vld [vmem:[#allocation5 + $0x58] sm:$0xff]
    %v137 = vld [vmem:[#allocation5 + $0x60] sm:$0xff]
    %v138 = vld [vmem:[#allocation5 + $0x68] sm:$0xff]
    %v139 = vld [vmem:[#allocation5 + $0x70] sm:$0xff]
    %v140 = vld [vmem:[#allocation5 + $0x78] sm:$0xff]
    %v141 = vld [vmem:[#allocation5 + $0x80] sm:$0xff]
    %v142 = vld [vmem:[#allocation5 + $0x88] sm:$0xff]
    %v143 = vld [vmem:[#allocation5 + $0x90] sm:$0xff]
    %v144 = vld [vmem:[#allocation5 + $0x98] sm:$0xff]
    %v145 = vld [vmem:[#allocation5 + $0xa0] sm:$0xff]
    %v146 = vld [vmem:[#allocation5 + $0xa8] sm:$0xff]
    %v147 = vld [vmem:[#allocation5 + $0xb0] sm:$0xff]
    %v148 = vld [vmem:[#allocation5 + $0xb8] sm:$0xff]
    %v149 = vld [vmem:[#allocation5 + $0xc0] sm:$0xff]
    %v150 = vld [vmem:[#allocation5 + $0xc8] sm:$0xff]
    %v151 = vld [vmem:[#allocation5 + $0xd0] sm:$0xff]
    %v152 = vld [vmem:[#allocation5 + $0xd8] sm:$0xff]
    %v153 = vld [vmem:[#allocation5 + $0xe0] sm:$0xff]
    %v154 = vld [vmem:[#allocation5 + $0xe8] sm:$0xff]
    %v155 = vld [vmem:[#allocation5 + $0xf0] sm:$0xff]
    %v156 = vld [vmem:[#allocation5 + $0xf8] sm:$0xff]
    %v157 = vld [vmem:[#allocation5 + $0x100] sm:$0xff]
    %v158 = vld [vmem:[#allocation5 + $0x108] sm:$0xff]
    %v159 = vld [vmem:[#allocation5 + $0x110] sm:$0xff]
    %v160 = vld [vmem:[#allocation5 + $0x118] sm:$0xff]
    %v161 = vld [vmem:[#allocation5 + $0x120] sm:$0xff]
    %v162 = vld [vmem:[#allocation5 + $0x128] sm:$0xff]
    %v163 = vld [vmem:[#allocation5 + $0x130] sm:$0xff]
    %v164 = vld [vmem:[#allocation5 + $0x138] sm:$0xff]
    %v165 = vld [vmem:[#allocation5 + $0x140] sm:$0xff]
    %v166 = vld [vmem:[#allocation5 + $0x148] sm:$0xff]
    %v167 = vld [vmem:[#allocation5 + $0x150] sm:$0xff]
    %v168 = vld [vmem:[#allocation5 + $0x158] sm:$0xff]
    %v169 = vld [vmem:[#allocation5 + $0x160] sm:$0xff]
    %v170 = vld [vmem:[#allocation5 + $0x168] sm:$0xff]
    %v171 = vld [vmem:[#allocation5 + $0x170] sm:$0xff]
    %v172 = vld [vmem:[#allocation5 + $0x178] sm:$0xff]
    %v173 = vld [vmem:[#allocation5 + $0x180] sm:$0xff]
    %v174 = vld [vmem:[#allocation5 + $0x188] sm:$0xff]
    %v175 = vld [vmem:[#allocation5 + $0x190] sm:$0xff]
    %v176 = vld [vmem:[#allocation5 + $0x198] sm:$0xff]
    %v177 = vld [vmem:[#allocation5 + $0x1a0] sm:$0xff]
    %v178 = vld [vmem:[#allocation5 + $0x1a8] sm:$0xff]
    %v179 = vld [vmem:[#allocation5 + $0x1b0] sm:$0xff]
    %v180 = vld [vmem:[#allocation5 + $0x1b8] sm:$0xff]
    %v181 = vld [vmem:[#allocation5 + $0x1c0] sm:$0xff]
    %v182 = vld [vmem:[#allocation5 + $0x1c8] sm:$0xff]
    %v183 = vld [vmem:[#allocation5 + $0x1d0] sm:$0xff]
    %v184 = vld [vmem:[#allocation5 + $0x1d8] sm:$0xff]
    %v185 = vld [vmem:[#allocation5 + $0x1e0] sm:$0xff]
    %v186 = vld [vmem:[#allocation5 + $0x1e8] sm:$0xff]
    %v187 = vld [vmem:[#allocation5 + $0x1f0] sm:$0xff]
    %v188 = vld [vmem:[#allocation5 + $0x1f8] sm:$0xff]
    %v189 = vld [vmem:[#allocation5 + $0x200] sm:$0xff]
    %v190 = vld [vmem:[#allocation5 + $0x208] sm:$0xff]
    %v191 = vld [vmem:[#allocation5 + $0x210] sm:$0xff]
    %v192 = vld [vmem:[#allocation5 + $0x218] sm:$0xff]
    %v193 = vld [vmem:[#allocation5 + $0x220] sm:$0xff]
    %v194 = vld [vmem:[#allocation5 + $0x228] sm:$0xff]
    %v195 = vld [vmem:[#allocation5 + $0x230] sm:$0xff]
    %v196 = vld [vmem:[#allocation5 + $0x238] sm:$0xff]
    %v197 = vld [vmem:[#allocation5 + $0x240] sm:$0xff]
    %v198 = vld [vmem:[#allocation5 + $0x248] sm:$0xff]
    %v199 = vld [vmem:[#allocation5 + $0x250] sm:$0xff]
    %v200 = vld [vmem:[#allocation5 + $0x258] sm:$0xff]
    %v201 = vld [vmem:[#allocation5 + $0x260] sm:$0xff]
    %v202 = vld [vmem:[#allocation5 + $0x268] sm:$0xff]
    %v203 = vld [vmem:[#allocation5 + $0x270] sm:$0xff]
    %v204 = vld [vmem:[#allocation5 + $0x278] sm:$0xff]
    %v205 = vld [vmem:[#allocation5 + $0x280] sm:$0xff]
    %v206 = vld [vmem:[#allocation5 + $0x288] sm:$0xff]
    %v207 = vld [vmem:[#allocation5 + $0x290] sm:$0xff]
    %v208 = vld [vmem:[#allocation5 + $0x298] sm:$0xff]
    %v209 = vld [vmem:[#allocation5 + $0x2a0] sm:$0xff]
    %v210 = vld [vmem:[#allocation5 + $0x2a8] sm:$0xff]
    %v211 = vld [vmem:[#allocation5 + $0x2b0] sm:$0xff]
    %v212 = vld [vmem:[#allocation5 + $0x2b8] sm:$0xff]
    %v213 = vld [vmem:[#allocation5 + $0x2c0] sm:$0xff]
    %v214 = vld [vmem:[#allocation5 + $0x2c8] sm:$0xff]
    %v215 = vld [vmem:[#allocation5 + $0x2d0] sm:$0xff]
    %v216 = vld [vmem:[#allocation5 + $0x2d8] sm:$0xff]
    %v217 = vld [vmem:[#allocation5 + $0x2e0] sm:$0xff]
    %v218 = vld [vmem:[#allocation5 + $0x2e8] sm:$0xff]
    %v219 = vld [vmem:[#allocation5 + $0x2f0] sm:$0xff]
    %v220 = vld [vmem:[#allocation5 + $0x2f8] sm:$0xff]
    %v221 = vld [vmem:[#allocation5 + $0x300] sm:$0xff]
    %v222 = vld [vmem:[#allocation5 + $0x308] sm:$0xff]
    %v223 = vld [vmem:[#allocation5 + $0x310] sm:$0xff]
    %v224 = vld [vmem:[#allocation5 + $0x318] sm:$0xff]
    %v225 = vld [vmem:[#allocation5 + $0x320] sm:$0xff]
    %v226 = vld [vmem:[#allocation5 + $0x328] sm:$0xff]
    %v227 = vld [vmem:[#allocation5 + $0x330] sm:$0xff]
    %v228 = vld [vmem:[#allocation5 + $0x338] sm:$0xff]
    %v229 = vld [vmem:[#allocation5 + $0x340] sm:$0xff]
    %v230 = vld [vmem:[#allocation5 + $0x348] sm:$0xff]
    %v231 = vld [vmem:[#allocation5 + $0x350] sm:$0xff]
    %v232 = vld [vmem:[#allocation5 + $0x358] sm:$0xff]
    %v233 = vld [vmem:[#allocation5 + $0x360] sm:$0xff]
    %v234 = vld [vmem:[#allocation5 + $0x368] sm:$0xff]
    %v235 = vld [vmem:[#allocation5 + $0x370] sm:$0xff]
    %v236 = vld [vmem:[#allocation5 + $0x378] sm:$0xff]
    %v237 = vld [vmem:[#allocation5 + $0x380] sm:$0xff]
    %v238 = vld [vmem:[#allocation5 + $0x388] sm:$0xff]
    %v239 = vld [vmem:[#allocation5 + $0x390] sm:$0xff]
    %v240 = vld [vmem:[#allocation5 + $0x398] sm:$0xff]
    %v241 = vld [vmem:[#allocation5 + $0x3a0] sm:$0xff]
    %v242 = vld [vmem:[#allocation5 + $0x3a8] sm:$0xff]
    %v243 = vld [vmem:[#allocation5 + $0x3b0] sm:$0xff]
    %v244 = vld [vmem:[#allocation5 + $0x3b8] sm:$0xff]
    %v245 = vld [vmem:[#allocation5 + $0x3c0] sm:$0xff]
    %v246 = vld [vmem:[#allocation5 + $0x3c8] sm:$0xff]
    %v247 = vld [vmem:[#allocation5 + $0x3d0] sm:$0xff]
    %v248 = vld [vmem:[#allocation5 + $0x3d8] sm:$0xff]
    %v249 = vld [vmem:[#allocation5 + $0x3e0] sm:$0xff]
    %v250 = vld [vmem:[#allocation5 + $0x3e8] sm:$0xff]
    %v251 = vld [vmem:[#allocation5 + $0x3f0] sm:$0xff]
    %v252 = vld [vmem:[#allocation5 + $0x3f8] sm:$0xff]
    %v253 = vld [vmem:[%s5] sm:$0xf]
    %v254 = vld [vmem:[%s0] sm:$0xff]
    %256 = vset.pattern.permute.xlu0 0
    %257 = vperm.xlu0 %256, %v254
    %v258 = vpop.permute.xlu0 %257
    %v261 = vlaneseq
    %v262 = vshrl.u32 %v261, 7
    %v263 = vsub.s32 0, %v262
    %v264 = vrot.slane %v59, %v263
    %v265 = vlaneseq
    %v266 = vshrl.u32 %v265, 7
    %v267 = vsub.s32 1, %v266
    %v268 = vrot.slane %v59, %v267
    %v269 = vlaneseq
    %v270 = vshrl.u32 %v269, 7
    %v271 = vsub.s32 2, %v270
    %v272 = vrot.slane %v59, %v271
    %v273 = vlaneseq
    %v274 = vshrl.u32 %v273, 7
    %v275 = vsub.s32 3, %v274
    %v276 = vrot.slane %v59, %v275
    %v281 = vmul.f32 %v258, %v264
    %v282 = vmul.f32 %v258, %v268
    %v283 = vmul.f32 %v258, %v272
    %v284 = vmul.f32 %v258, %v276
    %285 = vmatprep.subr.mxu0 %v61
    %286 = vmatpush1.msra.mxu0 %v60
    %287 = vmatprep.subr.mxu0 %v65
    %288 = vmatpush1.msra.mxu0 %v64
    %289 = vmatprep.subr.mxu0 %v69
    %290 = vmatpush1.msra.mxu0 %v68
    %291 = vmatprep.subr.mxu0 %v73
    %292 = vmatpush1.msra.mxu0 %v72
    %293 = vmatprep.subr.mxu0 %v77
    %294 = vmatpush1.msra.mxu0 %v76
    %295 = vmatprep.subr.mxu0 %v81
    %296 = vmatpush1.msra.mxu0 %v80
    %297 = vmatprep.subr.mxu0 %v85
    %298 = vmatpush1.msra.mxu0 %v84
    %299 = vmatprep.subr.mxu0 %v89
    %300 = vmatpush1.msra.mxu0 %v88
    %301 = vmatprep.subr.mxu0 %v93
    %302 = vmatpush1.msra.mxu0 %v92
    %303 = vmatprep.subr.mxu0 %v97
    %304 = vmatpush1.msra.mxu0 %v96
    %305 = vmatprep.subr.mxu0 %v101
    %306 = vmatpush1.msra.mxu0 %v100
    %307 = vmatprep.subr.mxu0 %v105
    %308 = vmatpush1.msra.mxu0 %v104
    %309 = vmatprep.subr.mxu0 %v109
    %310 = vmatpush1.msra.mxu0 %v108
    %311 = vmatprep.subr.mxu0 %v113
    %312 = vmatpush1.msra.mxu0 %v112
    %313 = vmatprep.subr.mxu0 %v117
    %314 = vmatpush1.msra.mxu0 %v116
    %315 = vmatprep.subr.mxu0 %v121
    %316 = vmatpush1.msra.mxu0 %v120
    %317 = vmatprep.subr.mxu0 0.0
    %318 = vmatpush1.msra.mxu0 0.0
    %319 = vmatprep.subr.mxu0 0.0
    %320 = vmatpush1.msra.mxu0 0.0
    %321 = vmatprep.subr.mxu0 0.0
    %322 = vmatpush1.msra.mxu0 0.0
    %323 = vmatprep.subr.mxu0 0.0
    %324 = vmatpush1.msra.mxu0 0.0
    %325 = vmatprep.subr.mxu0 0.0
    %326 = vmatpush1.msra.mxu0 0.0
    %327 = vmatprep.subr.mxu0 0.0
    %328 = vmatpush1.msra.mxu0 0.0
    %329 = vmatprep.subr.mxu0 0.0
    %330 = vmatpush1.msra.mxu0 0.0
    %331 = vmatprep.subr.mxu0 0.0
    %332 = vmatpush1.msra.mxu0 0.0
    %333 = vmatprep.subr.mxu0 0.0
    %334 = vmatpush1.msra.mxu0 0.0
    %335 = vmatprep.subr.mxu0 0.0
    %336 = vmatpush1.msra.mxu0 0.0
    %337 = vmatprep.subr.mxu0 0.0
    %338 = vmatpush1.msra.mxu0 0.0
    %339 = vmatprep.subr.mxu0 0.0
    %340 = vmatpush1.msra.mxu0 0.0
    %341 = vmatprep.subr.mxu0 0.0
    %342 = vmatpush1.msra.mxu0 0.0
    %343 = vmatprep.subr.mxu0 0.0
    %344 = vmatpush1.msra.mxu0 0.0
    %345 = vmatprep.subr.mxu0 0.0
    %346 = vmatpush1.msra.mxu0 0.0
    %347 = vmatprep.subr.mxu0 0.0
    %348 = vmatpush1.msra.mxu0 0.0
    %349 = vmatprep.mubr.f32.mxu0 0.0
    %350 = vmatmul.mubr.f32.gmra.mrb[0].mxu0 0.0
    %v351 = vpop.f32.mrb[0].mxu0
    %v352 = vadd.f32 0.0, %v351
    %v353 = vpop.f32.mrb[0].mxu0
    %v354 = vadd.f32 0.0, %v353
    %355 = vdwg.mxu0
    %356 = vmatprep.subr.mxu0 %v63
    %357 = vmatpush1.msra.mxu0 %v62
    %358 = vmatprep.subr.mxu0 %v67
    %359 = vmatpush1.msra.mxu0 %v66
    %360 = vmatprep.subr.mxu0 %v71
    %361 = vmatpush1.msra.mxu0 %v70
    %362 = vmatprep.subr.mxu0 %v75
    %363 = vmatpush1.msra.mxu0 %v74
    %364 = vmatprep.subr.mxu0 %v79
    %365 = vmatpush1.msra.mxu0 %v78
    %366 = vmatprep.subr.mxu0 %v83
    %367 = vmatpush1.msra.mxu0 %v82
    %368 = vmatprep.subr.mxu0 %v87
    %369 = vmatpush1.msra.mxu0 %v86
    %370 = vmatprep.subr.mxu0 %v91
    %371 = vmatpush1.msra.mxu0 %v90
    %372 = vmatprep.subr.mxu0 %v95
    %373 = vmatpush1.msra.mxu0 %v94
    %374 = vmatprep.subr.mxu0 %v99
    %375 = vmatpush1.msra.mxu0 %v98
    %376 = vmatprep.subr.mxu0 %v103
    %377 = vmatpush1.msra.mxu0 %v102
    %378 = vmatprep.subr.mxu0 %v107
    %379 = vmatpush1.msra.mxu0 %v106
    %380 = vmatprep.subr.mxu0 %v111
    %381 = vmatpush1.msra.mxu0 %v110
    %382 = vmatprep.subr.mxu0 %v115
    %383 = vmatpush1.msra.mxu0 %v114
    %384 = vmatprep.subr.mxu0 %v119
    %385 = vmatpush1.msra.mxu0 %v118
    %386 = vmatprep.subr.mxu0 %v123
    %387 = vmatpush1.msra.mxu0 %v122
    %388 = vmatprep.subr.mxu0 0.0
    %389 = vmatpush1.msra.mxu0 0.0
    %390 = vmatprep.subr.mxu0 0.0
    %391 = vmatpush1.msra.mxu0 0.0
    %392 = vmatprep.subr.mxu0 0.0
    %393 = vmatpush1.msra.mxu0 0.0
    %394 = vmatprep.subr.mxu0 0.0
    %395 = vmatpush1.msra.mxu0 0.0
    %396 = vmatprep.subr.mxu0 0.0
    %397 = vmatpush1.msra.mxu0 0.0
    %398 = vmatprep.subr.mxu0 0.0
    %399 = vmatpush1.msra.mxu0 0.0
    %400 = vmatprep.subr.mxu0 0.0
    %401 = vmatpush1.msra.mxu0 0.0
    %402 = vmatprep.subr.mxu0 0.0
    %403 = vmatpush1.msra.mxu0 0.0
    %404 = vmatprep.subr.mxu0 0.0
    %405 = vmatpush1.msra.mxu0 0.0
    %406 = vmatprep.subr.mxu0 0.0
    %407 = vmatpush1.msra.mxu0 0.0
    %408 = vmatprep.subr.mxu0 0.0
    %409 = vmatpush1.msra.mxu0 0.0
    %410 = vmatprep.subr.mxu0 0.0
    %411 = vmatpush1.msra.mxu0 0.0
    %412 = vmatprep.subr.mxu0 0.0
    %413 = vmatpush1.msra.mxu0 0.0
    %414 = vmatprep.subr.mxu0 0.0
    %415 = vmatpush1.msra.mxu0 0.0
    %416 = vmatprep.subr.mxu0 0.0
    %417 = vmatpush1.msra.mxu0 0.0
    %418 = vmatprep.subr.mxu0 0.0
    %419 = vmatpush1.msra.mxu0 0.0
    %420 = vmatprep.mubr.f32.mxu0 0.0
    %421 = vmatmul.mubr.f32.gmra.mrb[0].mxu0 0.0
    %v422 = vpop.f32.mrb[0].mxu0
    %v423 = vadd.f32 0.0, %v422
    %v424 = vpop.f32.mrb[0].mxu0
    %v425 = vadd.f32 0.0, %v424
    %426 = vdwg.mxu0
    %v427 = vadd.f32 %v281, %v352
    %v428 = vadd.f32 %v282, %v354
    %v429 = vadd.f32 %v283, %v423
    %v430 = vadd.f32 %v284, %v425
    %v432 = vlaneseq
    %v433 = vshrl.u32 %v432, 7
    %v434 = vsub.s32 0, %v433
    %v435 = vrot.slane %v124, %v434
    %v436 = vlaneseq
    %v437 = vshrl.u32 %v436, 7
    %v438 = vsub.s32 1, %v437
    %v439 = vrot.slane %v124, %v438
    %v440 = vlaneseq
    %v441 = vshrl.u32 %v440, 7
    %v442 = vsub.s32 2, %v441
    %v443 = vrot.slane %v124, %v442
    %v444 = vlaneseq
    %v445 = vshrl.u32 %v444, 7
    %v446 = vsub.s32 3, %v445
    %v447 = vrot.slane %v124, %v446
    %v452 = vadd.f32 %v427, %v435
    %v453 = vadd.f32 %v428, %v439
    %v454 = vadd.f32 %v429, %v443
    %v455 = vadd.f32 %v430, %v447
    %v456 = vxor.u32 %v452, 2147483648
    %v457 = vmul.f32 %v456, 1.442695
    %v458 = vpow.pop %v457
    %v459 = vadd.f32 %v458, 1.0
    %v460 = vrcp.pop %v459
    %v461 = vmul.f32 1.0, %v460
    %v462 = vxor.u32 %v453, 2147483648
    %v463 = vmul.f32 %v462, 1.442695
    %v464 = vpow.pop %v463
    %v465 = vadd.f32 %v464, 1.0
    %v466 = vrcp.pop %v465
    %v467 = vmul.f32 1.0, %v466
    %v468 = vtanh.pop %v454
    %v469 = vxor.u32 %v455, 2147483648
    %v470 = vmul.f32 %v469, 1.442695
    %v471 = vpow.pop %v470
    %v472 = vadd.f32 %v471, 1.0
    %v473 = vrcp.pop %v472
    %v474 = vmul.f32 1.0, %v473
    %v475 = vmul.f32 %v467, 0.0
    %v476 = vmul.f32 %v461, %v468
    %v477 = vadd.f32 %v475, %v476
    %v478 = vtanh.pop %v477
    %v479 = vmul.f32 %v474, %v478
    %v481 = vlaneseq
    %v482 = vshrl.u32 %v481, 7
    %v483 = vsub.s32 0, %v482
    %v484 = vrot.slane %v253, %v483
    %v485 = vlaneseq
    %v486 = vshrl.u32 %v485, 7
    %v487 = vsub.s32 1, %v486
    %v488 = vrot.slane %v253, %v487
    %v489 = vlaneseq
    %v490 = vshrl.u32 %v489, 7
    %v491 = vsub.s32 2, %v490
    %v492 = vrot.slane %v253, %v491
    %v493 = vlaneseq
    %v494 = vshrl.u32 %v493, 7
    %v495 = vsub.s32 3, %v494
    %v496 = vrot.slane %v253, %v495
    %501 = vmatprep.subr.mxu0 %v126
    %502 = vmatpush1.msra.mxu0 %v125
    %503 = vmatprep.subr.mxu0 %v130
    %504 = vmatpush1.msra.mxu0 %v129
    %505 = vmatprep.subr.mxu0 %v134
    %506 = vmatpush1.msra.mxu0 %v133
    %507 = vmatprep.subr.mxu0 %v138
    %508 = vmatpush1.msra.mxu0 %v137
    %509 = vmatprep.subr.mxu0 %v142
    %510 = vmatpush1.msra.mxu0 %v141
    %511 = vmatprep.subr.mxu0 %v146
    %512 = vmatpush1.msra.mxu0 %v145
    %513 = vmatprep.subr.mxu0 %v150
    %514 = vmatpush1.msra.mxu0 %v149
    %515 = vmatprep.subr.mxu0 %v154
    %516 = vmatpush1.msra.mxu0 %v153
    %517 = vmatprep.subr.mxu0 %v158
    %518 = vmatpush1.msra.mxu0 %v157
    %519 = vmatprep.subr.mxu0 %v162
    %520 = vmatpush1.msra.mxu0 %v161
    %521 = vmatprep.subr.mxu0 %v166
    %522 = vmatpush1.msra.mxu0 %v165
    %523 = vmatprep.subr.mxu0 %v170
    %524 = vmatpush1.msra.mxu0 %v169
    %525 = vmatprep.subr.mxu0 %v174
    %526 = vmatpush1.msra.mxu0 %v173
    %527 = vmatprep.subr.mxu0 %v178
    %528 = vmatpush1.msra.mxu0 %v177
    %529 = vmatprep.subr.mxu0 %v182
    %530 = vmatpush1.msra.mxu0 %v181
    %531 = vmatprep.subr.mxu0 %v186
    %532 = vmatpush1.msra.mxu0 %v185
    %533 = vmatprep.subr.mxu0 %v190
    %534 = vmatpush1.msra.mxu0 %v189
    %535 = vmatprep.subr.mxu0 %v194
    %536 = vmatpush1.msra.mxu0 %v193
    %537 = vmatprep.subr.mxu0 %v198
    %538 = vmatpush1.msra.mxu0 %v197
    %539 = vmatprep.subr.mxu0 %v202
    %540 = vmatpush1.msra.mxu0 %v201
    %541 = vmatprep.subr.mxu0 %v206
    %542 = vmatpush1.msra.mxu0 %v205
    %543 = vmatprep.subr.mxu0 %v210
    %544 = vmatpush1.msra.mxu0 %v209
    %545 = vmatprep.subr.mxu0 %v214
    %546 = vmatpush1.msra.mxu0 %v213
    %547 = vmatprep.subr.mxu0 %v218
    %548 = vmatpush1.msra.mxu0 %v217
    %549 = vmatprep.subr.mxu0 %v222
    %550 = vmatpush1.msra.mxu0 %v221
    %551 = vmatprep.subr.mxu0 %v226
    %552 = vmatpush1.msra.mxu0 %v225
    %553 = vmatprep.subr.mxu0 %v230
    %554 = vmatpush1.msra.mxu0 %v229
    %555 = vmatprep.subr.mxu0 %v234
    %556 = vmatpush1.msra.mxu0 %v233
    %557 = vmatprep.subr.mxu0 %v238
    %558 = vmatpush1.msra.mxu0 %v237
    %559 = vmatprep.subr.mxu0 %v242
    %560 = vmatpush1.msra.mxu0 %v241
    %561 = vmatprep.subr.mxu0 %v246
    %562 = vmatpush1.msra.mxu0 %v245
    %563 = vmatprep.subr.mxu0 %v250
    %564 = vmatpush1.msra.mxu0 %v249
    %565 = vmatprep.mubr.f32.mxu0 0.0
    %566 = vmatmul.mubr.f32.gmra.mrb[0].mxu0 %v479
    %v567 = vpop.f32.mrb[0].mxu0
    %v568 = vadd.f32 %v484, %v567
    %v569 = vpop.f32.mrb[0].mxu0
    %v570 = vadd.f32 %v488, %v569
    %571 = vdwg.mxu0
    %572 = vmatprep.subr.mxu0 %v128
    %573 = vmatpush1.msra.mxu0 %v127
    %574 = vmatprep.subr.mxu0 %v132
    %575 = vmatpush1.msra.mxu0 %v131
    %576 = vmatprep.subr.mxu0 %v136
    %577 = vmatpush1.msra.mxu0 %v135
    %578 = vmatprep.subr.mxu0 %v140
    %579 = vmatpush1.msra.mxu0 %v139
    %580 = vmatprep.subr.mxu0 %v144
    %581 = vmatpush1.msra.mxu0 %v143
    %582 = vmatprep.subr.mxu0 %v148
    %583 = vmatpush1.msra.mxu0 %v147
    %584 = vmatprep.subr.mxu0 %v152
    %585 = vmatpush1.msra.mxu0 %v151
    %586 = vmatprep.subr.mxu0 %v156
    %587 = vmatpush1.msra.mxu0 %v155
    %588 = vmatprep.subr.mxu0 %v160
    %589 = vmatpush1.msra.mxu0 %v159
    %590 = vmatprep.subr.mxu0 %v164
    %591 = vmatpush1.msra.mxu0 %v163
    %592 = vmatprep.subr.mxu0 %v168
    %593 = vmatpush1.msra.mxu0 %v167
    %594 = vmatprep.subr.mxu0 %v172
    %595 = vmatpush1.msra.mxu0 %v171
    %596 = vmatprep.subr.mxu0 %v176
    %597 = vmatpush1.msra.mxu0 %v175
    %598 = vmatprep.subr.mxu0 %v180
    %599 = vmatpush1.msra.mxu0 %v179
    %600 = vmatprep.subr.mxu0 %v184
    %601 = vmatpush1.msra.mxu0 %v183
    %602 = vmatprep.subr.mxu0 %v188
    %603 = vmatpush1.msra.mxu0 %v187
    %604 = vmatprep.subr.mxu0 %v192
    %605 = vmatpush1.msra.mxu0 %v191
    %606 = vmatprep.subr.mxu0 %v196
    %607 = vmatpush1.msra.mxu0 %v195
    %608 = vmatprep.subr.mxu0 %v200
    %609 = vmatpush1.msra.mxu0 %v199
    %610 = vmatprep.subr.mxu0 %v204
    %611 = vmatpush1.msra.mxu0 %v203
    %612 = vmatprep.subr.mxu0 %v208
    %613 = vmatpush1.msra.mxu0 %v207
    %614 = vmatprep.subr.mxu0 %v212
    %615 = vmatpush1.msra.mxu0 %v211
    %616 = vmatprep.subr.mxu0 %v216
    %617 = vmatpush1.msra.mxu0 %v215
    %618 = vmatprep.subr.mxu0 %v220
    %619 = vmatpush1.msra.mxu0 %v219
    %620 = vmatprep.subr.mxu0 %v224
    %621 = vmatpush1.msra.mxu0 %v223
    %622 = vmatprep.subr.mxu0 %v228
    %623 = vmatpush1.msra.mxu0 %v227
    %624 = vmatprep.subr.mxu0 %v232
    %625 = vmatpush1.msra.mxu0 %v231
    %626 = vmatprep.subr.mxu0 %v236
    %627 = vmatpush1.msra.mxu0 %v235
    %628 = vmatprep.subr.mxu0 %v240
    %629 = vmatpush1.msra.mxu0 %v239
    %630 = vmatprep.subr.mxu0 %v244
    %631 = vmatpush1.msra.mxu0 %v243
    %632 = vmatprep.subr.mxu0 %v248
    %633 = vmatpush1.msra.mxu0 %v247
    %634 = vmatprep.subr.mxu0 %v252
    %635 = vmatpush1.msra.mxu0 %v251
    %636 = vmatprep.mubr.f32.mxu0 0.0
    %637 = vmatmul.mubr.f32.gmra.mrb[0].mxu0 %v479
    %v638 = vpop.f32.mrb[0].mxu0
    %v639 = vadd.f32 %v492, %v638
    %v640 = vpop.f32.mrb[0].mxu0
    %v641 = vadd.f32 %v496, %v640
    %642 = vdwg.mxu0
    %v643 = vxor.u32 %v568, 2147483648
    %v644 = vmul.f32 %v643, 1.442695
    %v645 = vpow.pop %v644
    %v646 = vadd.f32 %v645, 1.0
    %v647 = vrcp.pop %v646
    %v648 = vmul.f32 1.0, %v647
    %v649 = vxor.u32 %v570, 2147483648
    %v650 = vmul.f32 %v649, 1.442695
    %v651 = vpow.pop %v650
    %v652 = vadd.f32 %v651, 1.0
    %v653 = vrcp.pop %v652
    %v654 = vmul.f32 1.0, %v653
    %v655 = vtanh.pop %v639
    %v656 = vxor.u32 %v641, 2147483648
    %v657 = vmul.f32 %v656, 1.442695
    %v658 = vpow.pop %v657
    %v659 = vadd.f32 %v658, 1.0
    %v660 = vrcp.pop %v659
    %v661 = vmul.f32 1.0, %v660
    %v662 = vmul.f32 %v654, 0.0
    %v663 = vmul.f32 %v648, %v655
    %v664 = vadd.f32 %v662, %v663
    %v665 = vtanh.pop %v664
    %v666 = vmul.f32 %v661, %v665
    %s667 = scalar_lea.vmem %s0, 8
    %v668 = vld [vmem:[%s667] sm:$0xff]
    %670 = vset.pattern.permute.xlu0 0
    %671 = vperm.xlu0 %670, %v668
    %v672 = vpop.permute.xlu0 %671
    %v674 = vmul.f32 %v672, %v264
    %v675 = vmul.f32 %v672, %v268
    %v676 = vmul.f32 %v672, %v272
    %v677 = vmul.f32 %v672, %v276
    %678 = vmatprep.subr.mxu0 %v61
    %679 = vmatpush1.msra.mxu0 %v60
    %680 = vmatprep.subr.mxu0 %v65
    %681 = vmatpush1.msra.mxu0 %v64
    %682 = vmatprep.subr.mxu0 %v69
    %683 = vmatpush1.msra.mxu0 %v68
    %684 = vmatprep.subr.mxu0 %v73
    %685 = vmatpush1.msra.mxu0 %v72
    %686 = vmatprep.subr.mxu0 %v77
    %687 = vmatpush1.msra.mxu0 %v76
    %688 = vmatprep.subr.mxu0 %v81
    %689 = vmatpush1.msra.mxu0 %v80
    %690 = vmatprep.subr.mxu0 %v85
    %691 = vmatpush1.msra.mxu0 %v84
    %692 = vmatprep.subr.mxu0 %v89
    %693 = vmatpush1.msra.mxu0 %v88
    %694 = vmatprep.subr.mxu0 %v93
    %695 = vmatpush1.msra.mxu0 %v92
    %696 = vmatprep.subr.mxu0 %v97
    %697 = vmatpush1.msra.mxu0 %v96
    %698 = vmatprep.subr.mxu0 %v101
    %699 = vmatpush1.msra.mxu0 %v100
    %700 = vmatprep.subr.mxu0 %v105
    %701 = vmatpush1.msra.mxu0 %v104
    %702 = vmatprep.subr.mxu0 %v109
    %703 = vmatpush1.msra.mxu0 %v108
    %704 = vmatprep.subr.mxu0 %v113
    %705 = vmatpush1.msra.mxu0 %v112
    %706 = vmatprep.subr.mxu0 %v117
    %707 = vmatpush1.msra.mxu0 %v116
    %708 = vmatprep.subr.mxu0 %v121
    %709 = vmatpush1.msra.mxu0 %v120
    %710 = vmatprep.subr.mxu0 0.0
    %711 = vmatpush1.msra.mxu0 0.0
    %712 = vmatprep.subr.mxu0 0.0
    %713 = vmatpush1.msra.mxu0 0.0
    %714 = vmatprep.subr.mxu0 0.0
    %715 = vmatpush1.msra.mxu0 0.0
    %716 = vmatprep.subr.mxu0 0.0
    %717 = vmatpush1.msra.mxu0 0.0
    %718 = vmatprep.subr.mxu0 0.0
    %719 = vmatpush1.msra.mxu0 0.0
    %720 = vmatprep.subr.mxu0 0.0
    %721 = vmatpush1.msra.mxu0 0.0
    %722 = vmatprep.subr.mxu0 0.0
    %723 = vmatpush1.msra.mxu0 0.0
    %724 = vmatprep.subr.mxu0 0.0
    %725 = vmatpush1.msra.mxu0 0.0
    %726 = vmatprep.subr.mxu0 0.0
    %727 = vmatpush1.msra.mxu0 0.0
    %728 = vmatprep.subr.mxu0 0.0
    %729 = vmatpush1.msra.mxu0 0.0
    %730 = vmatprep.subr.mxu0 0.0
    %731 = vmatpush1.msra.mxu0 0.0
    %732 = vmatprep.subr.mxu0 0.0
    %733 = vmatpush1.msra.mxu0 0.0
    %734 = vmatprep.subr.mxu0 0.0
    %735 = vmatpush1.msra.mxu0 0.0
    %736 = vmatprep.subr.mxu0 0.0
    %737 = vmatpush1.msra.mxu0 0.0
    %738 = vmatprep.subr.mxu0 0.0
    %739 = vmatpush1.msra.mxu0 0.0
    %740 = vmatprep.subr.mxu0 0.0
    %741 = vmatpush1.msra.mxu0 0.0
    %742 = vmatprep.mubr.f32.mxu0 0.0
    %743 = vmatmul.mubr.f32.gmra.mrb[0].mxu0 %v479
    %v744 = vpop.f32.mrb[0].mxu0
    %v745 = vadd.f32 0.0, %v744
    %v746 = vpop.f32.mrb[0].mxu0
    %v747 = vadd.f32 0.0, %v746
    %748 = vdwg.mxu0
    %749 = vmatprep.subr.mxu0 %v63
    %750 = vmatpush1.msra.mxu0 %v62
    %751 = vmatprep.subr.mxu0 %v67
    %752 = vmatpush1.msra.mxu0 %v66
    %753 = vmatprep.subr.mxu0 %v71
    %754 = vmatpush1.msra.mxu0 %v70
    %755 = vmatprep.subr.mxu0 %v75
    %756 = vmatpush1.msra.mxu0 %v74
    %757 = vmatprep.subr.mxu0 %v79
    %758 = vmatpush1.msra.mxu0 %v78
    %759 = vmatprep.subr.mxu0 %v83
    %760 = vmatpush1.msra.mxu0 %v82
    %761 = vmatprep.subr.mxu0 %v87
    %762 = vmatpush1.msra.mxu0 %v86
    %763 = vmatprep.subr.mxu0 %v91
    %764 = vmatpush1.msra.mxu0 %v90
    %765 = vmatprep.subr.mxu0 %v95
    %766 = vmatpush1.msra.mxu0 %v94
    %767 = vmatprep.subr.mxu0 %v99
    %768 = vmatpush1.msra.mxu0 %v98
    %769 = vmatprep.subr.mxu0 %v103
    %770 = vmatpush1.msra.mxu0 %v102
    %771 = vmatprep.subr.mxu0 %v107
    %772 = vmatpush1.msra.mxu0 %v106
    %773 = vmatprep.subr.mxu0 %v111
    %774 = vmatpush1.msra.mxu0 %v110
    %775 = vmatprep.subr.mxu0 %v115
    %776 = vmatpush1.msra.mxu0 %v114
    %777 = vmatprep.subr.mxu0 %v119
    %778 = vmatpush1.msra.mxu0 %v118
    %779 = vmatprep.subr.mxu0 %v123
    %780 = vmatpush1.msra.mxu0 %v122
    %781 = vmatprep.subr.mxu0 0.0
    %782 = vmatpush1.msra.mxu0 0.0
    %783 = vmatprep.subr.mxu0 0.0
    %784 = vmatpush1.msra.mxu0 0.0
    %785 = vmatprep.subr.mxu0 0.0
    %786 = vmatpush1.msra.mxu0 0.0
    %787 = vmatprep.subr.mxu0 0.0
    %788 = vmatpush1.msra.mxu0 0.0
    %789 = vmatprep.subr.mxu0 0.0
    %790 = vmatpush1.msra.mxu0 0.0
    %791 = vmatprep.subr.mxu0 0.0
    %792 = vmatpush1.msra.mxu0 0.0
    %793 = vmatprep.subr.mxu0 0.0
    %794 = vmatpush1.msra.mxu0 0.0
    %795 = vmatprep.subr.mxu0 0.0
    %796 = vmatpush1.msra.mxu0 0.0
    %797 = vmatprep.subr.mxu0 0.0
    %798 = vmatpush1.msra.mxu0 0.0
    %799 = vmatprep.subr.mxu0 0.0
    %800 = vmatpush1.msra.mxu0 0.0
    %801 = vmatprep.subr.mxu0 0.0
    %802 = vmatpush1.msra.mxu0 0.0
    %803 = vmatprep.subr.mxu0 0.0
    %804 = vmatpush1.msra.mxu0 0.0
    %805 = vmatprep.subr.mxu0 0.0
    %806 = vmatpush1.msra.mxu0 0.0
    %807 = vmatprep.subr.mxu0 0.0
    %808 = vmatpush1.msra.mxu0 0.0
    %809 = vmatprep.subr.mxu0 0.0
    %810 = vmatpush1.msra.mxu0 0.0
    %811 = vmatprep.subr.mxu0 0.0
    %812 = vmatpush1.msra.mxu0 0.0
    %813 = vmatprep.mubr.f32.mxu0 0.0
    %814 = vmatmul.mubr.f32.gmra.mrb[0].mxu0 %v479
    %v815 = vpop.f32.mrb[0].mxu0
    %v816 = vadd.f32 0.0, %v815
    %v817 = vpop.f32.mrb[0].mxu0
    %v818 = vadd.f32 0.0, %v817
    %819 = vdwg.mxu0
    %v820 = vadd.f32 %v674, %v745
    %v821 = vadd.f32 %v675, %v747
    %v822 = vadd.f32 %v676, %v816
    %v823 = vadd.f32 %v677, %v818
    %v824 = vadd.f32 %v820, %v435
    %v825 = vadd.f32 %v821, %v439
    %v826 = vadd.f32 %v822, %v443
    %v827 = vadd.f32 %v823, %v447
    %v828 = vxor.u32 %v824, 2147483648
    %v829 = vmul.f32 %v828, 1.442695
    %v830 = vpow.pop %v829
    %v831 = vadd.f32 %v830, 1.0
    %v832 = vrcp.pop %v831
    %v833 = vmul.f32 1.0, %v832
    %v834 = vxor.u32 %v825, 2147483648
    %v835 = vmul.f32 %v834, 1.442695
    %v836 = vpow.pop %v835
    %v837 = vadd.f32 %v836, 1.0
    %v838 = vrcp.pop %v837
    %v839 = vmul.f32 1.0, %v838
    %v840 = vtanh.pop %v826
    %v841 = vxor.u32 %v827, 2147483648
    %v842 = vmul.f32 %v841, 1.442695
    %v843 = vpow.pop %v842
    %v844 = vadd.f32 %v843, 1.0
    %v845 = vrcp.pop %v844
    %v846 = vmul.f32 1.0, %v845
    %v847 = vmul.f32 %v839, %v477
    %v848 = vmul.f32 %v833, %v840
    %v849 = vadd.f32 %v847, %v848
    %v850 = vtanh.pop %v849
    %v851 = vmul.f32 %v846, %v850
    %852 = vmatprep.subr.mxu0 %v126
    %853 = vmatpush1.msra.mxu0 %v125
    %854 = vmatprep.subr.mxu0 %v130
    %855 = vmatpush1.msra.mxu0 %v129
    %856 = vmatprep.subr.mxu0 %v134
    %857 = vmatpush1.msra.mxu0 %v133
    %858 = vmatprep.subr.mxu0 %v138
    %859 = vmatpush1.msra.mxu0 %v137
    %860 = vmatprep.subr.mxu0 %v142
    %861 = vmatpush1.msra.mxu0 %v141
    %862 = vmatprep.subr.mxu0 %v146
    %863 = vmatpush1.msra.mxu0 %v145
    %864 = vmatprep.subr.mxu0 %v150
    %865 = vmatpush1.msra.mxu0 %v149
    %866 = vmatprep.subr.mxu0 %v154
    %867 = vmatpush1.msra.mxu0 %v153
    %868 = vmatprep.subr.mxu0 %v158
    %869 = vmatpush1.msra.mxu0 %v157
    %870 = vmatprep.subr.mxu0 %v162
    %871 = vmatpush1.msra.mxu0 %v161
    %872 = vmatprep.subr.mxu0 %v166
    %873 = vmatpush1.msra.mxu0 %v165
    %874 = vmatprep.subr.mxu0 %v170
    %875 = vmatpush1.msra.mxu0 %v169
    %876 = vmatprep.subr.mxu0 %v174
    %877 = vmatpush1.msra.mxu0 %v173
    %878 = vmatprep.subr.mxu0 %v178
    %879 = vmatpush1.msra.mxu0 %v177
    %880 = vmatprep.subr.mxu0 %v182
    %881 = vmatpush1.msra.mxu0 %v181
    %882 = vmatprep.subr.mxu0 %v186
    %883 = vmatpush1.msra.mxu0 %v185
    %884 = vmatprep.subr.mxu0 %v190
    %885 = vmatpush1.msra.mxu0 %v189
    %886 = vmatprep.subr.mxu0 %v194
    %887 = vmatpush1.msra.mxu0 %v193
    %888 = vmatprep.subr.mxu0 %v198
    %889 = vmatpush1.msra.mxu0 %v197
    %890 = vmatprep.subr.mxu0 %v202
    %891 = vmatpush1.msra.mxu0 %v201
    %892 = vmatprep.subr.mxu0 %v206
    %893 = vmatpush1.msra.mxu0 %v205
    %894 = vmatprep.subr.mxu0 %v210
    %895 = vmatpush1.msra.mxu0 %v209
    %896 = vmatprep.subr.mxu0 %v214
    %897 = vmatpush1.msra.mxu0 %v213
    %898 = vmatprep.subr.mxu0 %v218
    %899 = vmatpush1.msra.mxu0 %v217
    %900 = vmatprep.subr.mxu0 %v222
    %901 = vmatpush1.msra.mxu0 %v221
    %902 = vmatprep.subr.mxu0 %v226
    %903 = vmatpush1.msra.mxu0 %v225
    %904 = vmatprep.subr.mxu0 %v230
    %905 = vmatpush1.msra.mxu0 %v229
    %906 = vmatprep.subr.mxu0 %v234
    %907 = vmatpush1.msra.mxu0 %v233
    %908 = vmatprep.subr.mxu0 %v238
    %909 = vmatpush1.msra.mxu0 %v237
    %910 = vmatprep.subr.mxu0 %v242
    %911 = vmatpush1.msra.mxu0 %v241
    %912 = vmatprep.subr.mxu0 %v246
    %913 = vmatpush1.msra.mxu0 %v245
    %914 = vmatprep.subr.mxu0 %v250
    %915 = vmatpush1.msra.mxu0 %v249
    %916 = vmatprep.mubr.f32.mxu0 %v666
    %917 = vmatmul.mubr.f32.gmra.mrb[0].mxu0 %v851
    %v918 = vpop.f32.mrb[0].mxu0
    %v919 = vadd.f32 %v484, %v918
    %v920 = vpop.f32.mrb[0].mxu0
    %v921 = vadd.f32 %v488, %v920
    %922 = vdwg.mxu0
    %923 = vmatprep.subr.mxu0 %v128
    %924 = vmatpush1.msra.mxu0 %v127
    %925 = vmatprep.subr.mxu0 %v132
    %926 = vmatpush1.msra.mxu0 %v131
    %927 = vmatprep.subr.mxu0 %v136
    %928 = vmatpush1.msra.mxu0 %v135
    %929 = vmatprep.subr.mxu0 %v140
    %930 = vmatpush1.msra.mxu0 %v139
    %931 = vmatprep.subr.mxu0 %v144
    %932 = vmatpush1.msra.mxu0 %v143
    %933 = vmatprep.subr.mxu0 %v148
    %934 = vmatpush1.msra.mxu0 %v147
    %935 = vmatprep.subr.mxu0 %v152
    %936 = vmatpush1.msra.mxu0 %v151
    %937 = vmatprep.subr.mxu0 %v156
    %938 = vmatpush1.msra.mxu0 %v155
    %939 = vmatprep.subr.mxu0 %v160
    %940 = vmatpush1.msra.mxu0 %v159
    %941 = vmatprep.subr.mxu0 %v164
    %942 = vmatpush1.msra.mxu0 %v163
    %943 = vmatprep.subr.mxu0 %v168
    %944 = vmatpush1.msra.mxu0 %v167
    %945 = vmatprep.subr.mxu0 %v172
    %946 = vmatpush1.msra.mxu0 %v171
    %947 = vmatprep.subr.mxu0 %v176
    %948 = vmatpush1.msra.mxu0 %v175
    %949 = vmatprep.subr.mxu0 %v180
    %950 = vmatpush1.msra.mxu0 %v179
    %951 = vmatprep.subr.mxu0 %v184
    %952 = vmatpush1.msra.mxu0 %v183
    %953 = vmatprep.subr.mxu0 %v188
    %954 = vmatpush1.msra.mxu0 %v187
    %955 = vmatprep.subr.mxu0 %v192
    %956 = vmatpush1.msra.mxu0 %v191
    %957 = vmatprep.subr.mxu0 %v196
    %958 = vmatpush1.msra.mxu0 %v195
    %959 = vmatprep.subr.mxu0 %v200
    %960 = vmatpush1.msra.mxu0 %v199
    %961 = vmatprep.subr.mxu0 %v204
    %962 = vmatpush1.msra.mxu0 %v203
    %963 = vmatprep.subr.mxu0 %v208
    %964 = vmatpush1.msra.mxu0 %v207
    %965 = vmatprep.subr.mxu0 %v212
    %966 = vmatpush1.msra.mxu0 %v211
    %967 = vmatprep.subr.mxu0 %v216
    %968 = vmatpush1.msra.mxu0 %v215
    %969 = vmatprep.subr.mxu0 %v220
    %970 = vmatpush1.msra.mxu0 %v219
    %971 = vmatprep.subr.mxu0 %v224
    %972 = vmatpush1.msra.mxu0 %v223
    %973 = vmatprep.subr.mxu0 %v228
    %974 = vmatpush1.msra.mxu0 %v227
    %975 = vmatprep.subr.mxu0 %v232
    %976 = vmatpush1.msra.mxu0 %v231
    %977 = vmatprep.subr.mxu0 %v236
    %978 = vmatpush1.msra.mxu0 %v235
    %979 = vmatprep.subr.mxu0 %v240
    %980 = vmatpush1.msra.mxu0 %v239
    %981 = vmatprep.subr.mxu0 %v244
    %982 = vmatpush1.msra.mxu0 %v243
    %983 = vmatprep.subr.mxu0 %v248
    %984 = vmatpush1.msra.mxu0 %v247
    %985 = vmatprep.subr.mxu0 %v252
    %986 = vmatpush1.msra.mxu0 %v251
    %987 = vmatprep.mubr.f32.mxu0 %v666
    %988 = vmatmul.mubr.f32.gmra.mrb[0].mxu0 %v851
    %v989 = vpop.f32.mrb[0].mxu0
    %v990 = vadd.f32 %v492, %v989
    %v991 = vpop.f32.mrb[0].mxu0
    %v992 = vadd.f32 %v496, %v991
    %993 = vdwg.mxu0
    %v994 = vxor.u32 %v919, 2147483648
    %v995 = vmul.f32 %v994, 1.442695
    %v996 = vpow.pop %v995
    %v997 = vadd.f32 %v996, 1.0
    %v998 = vrcp.pop %v997
    %v999 = vmul.f32 1.0, %v998
    %v1000 = vxor.u32 %v921, 2147483648
    %v1001 = vmul.f32 %v1000, 1.442695
    %v1002 = vpow.pop %v1001
    %v1003 = vadd.f32 %v1002, 1.0
    %v1004 = vrcp.pop %v1003
    %v1005 = vmul.f32 1.0, %v1004
    %v1006 = vtanh.pop %v990
    %v1007 = vxor.u32 %v992, 2147483648
    %v1008 = vmul.f32 %v1007, 1.442695
    %v1009 = vpow.pop %v1008
    %v1010 = vadd.f32 %v1009, 1.0
    %v1011 = vrcp.pop %v1010
    %v1012 = vmul.f32 1.0, %v1011
    %v1013 = vmul.f32 %v1005, %v664
    %v1014 = vmul.f32 %v999, %v1006
    %v1015 = vadd.f32 %v1013, %v1014
    %v1016 = vtanh.pop %v1015
    %v1017 = vmul.f32 %v1012, %v1016
    %s1018 = scalar_lea.vmem %s0, 16
    %v1019 = vld [vmem:[%s1018] sm:$0xff]
    %1021 = vset.pattern.permute.xlu0 0
    %1022 = vperm.xlu0 %1021, %v1019
    %v1023 = vpop.permute.xlu0 %1022
    %v1025 = vmul.f32 %v1023, %v264
    %v1026 = vmul.f32 %v1023, %v268
    %v1027 = vmul.f32 %v1023, %v272
    %v1028 = vmul.f32 %v1023, %v276
    %1029 = vmatprep.subr.mxu0 %v61
    %1030 = vmatpush1.msra.mxu0 %v60
    %1031 = vmatprep.subr.mxu0 %v65
    %1032 = vmatpush1.msra.mxu0 %v64
    %1033 = vmatprep.subr.mxu0 %v69
    %1034 = vmatpush1.msra.mxu0 %v68
    %1035 = vmatprep.subr.mxu0 %v73
    %1036 = vmatpush1.msra.mxu0 %v72
    %1037 = vmatprep.subr.mxu0 %v77
    %1038 = vmatpush1.msra.mxu0 %v76
    %1039 = vmatprep.subr.mxu0 %v81
    %1040 = vmatpush1.msra.mxu0 %v80
    %1041 = vmatprep.subr.mxu0 %v85
    %1042 = vmatpush1.msra.mxu0 %v84
    %1043 = vmatprep.subr.mxu0 %v89
    %1044 = vmatpush1.msra.mxu0 %v88
    %1045 = vmatprep.subr.mxu0 %v93
    %1046 = vmatpush1.msra.mxu0 %v92
    %1047 = vmatprep.subr.mxu0 %v97
    %1048 = vmatpush1.msra.mxu0 %v96
    %1049 = vmatprep.subr.mxu0 %v101
    %1050 = vmatpush1.msra.mxu0 %v100
    %1051 = vmatprep.subr.mxu0 %v105
    %1052 = vmatpush1.msra.mxu0 %v104
    %1053 = vmatprep.subr.mxu0 %v109
    %1054 = vmatpush1.msra.mxu0 %v108
    %1055 = vmatprep.subr.mxu0 %v113
    %1056 = vmatpush1.msra.mxu0 %v112
    %1057 = vmatprep.subr.mxu0 %v117
    %1058 = vmatpush1.msra.mxu0 %v116
    %1059 = vmatprep.subr.mxu0 %v121
    %1060 = vmatpush1.msra.mxu0 %v120
    %1061 = vmatprep.subr.mxu0 0.0
    %1062 = vmatpush1.msra.mxu0 0.0
    %1063 = vmatprep.subr.mxu0 0.0
    %1064 = vmatpush1.msra.mxu0 0.0
    %1065 = vmatprep.subr.mxu0 0.0
    %1066 = vmatpush1.msra.mxu0 0.0
    %1067 = vmatprep.subr.mxu0 0.0
    %1068 = vmatpush1.msra.mxu0 0.0
    %1069 = vmatprep.subr.mxu0 0.0
    %1070 = vmatpush1.msra.mxu0 0.0
    %1071 = vmatprep.subr.mxu0 0.0
    %1072 = vmatpush1.msra.mxu0 0.0
    %1073 = vmatprep.subr.mxu0 0.0
    %1074 = vmatpush1.msra.mxu0 0.0
    %1075 = vmatprep.subr.mxu0 0.0
    %1076 = vmatpush1.msra.mxu0 0.0
    %1077 = vmatprep.subr.mxu0 0.0
    %1078 = vmatpush1.msra.mxu0 0.0
    %1079 = vmatprep.subr.mxu0 0.0
    %1080 = vmatpush1.msra.mxu0 0.0
    %1081 = vmatprep.subr.mxu0 0.0
    %1082 = vmatpush1.msra.mxu0 0.0
    %1083 = vmatprep.subr.mxu0 0.0
    %1084 = vmatpush1.msra.mxu0 0.0
    %1085 = vmatprep.subr.mxu0 0.0
    %1086 = vmatpush1.msra.mxu0 0.0
    %1087 = vmatprep.subr.mxu0 0.0
    %1088 = vmatpush1.msra.mxu0 0.0
    %1089 = vmatprep.subr.mxu0 0.0
    %1090 = vmatpush1.msra.mxu0 0.0
    %1091 = vmatprep.subr.mxu0 0.0
    %1092 = vmatpush1.msra.mxu0 0.0
    %1093 = vmatprep.mubr.f32.mxu0 0.0
    %1094 = vmatmul.mubr.f32.gmra.mrb[0].mxu0 %v851
    %v1095 = vpop.f32.mrb[0].mxu0
    %v1096 = vadd.f32 0.0, %v1095
    %v1097 = vpop.f32.mrb[0].mxu0
    %v1098 = vadd.f32 0.0, %v1097
    %1099 = vdwg.mxu0
    %1100 = vmatprep.subr.mxu0 %v63
    %1101 = vmatpush1.msra.mxu0 %v62
    %1102 = vmatprep.subr.mxu0 %v67
    %1103 = vmatpush1.msra.mxu0 %v66
    %1104 = vmatprep.subr.mxu0 %v71
    %1105 = vmatpush1.msra.mxu0 %v70
    %1106 = vmatprep.subr.mxu0 %v75
    %1107 = vmatpush1.msra.mxu0 %v74
    %1108 = vmatprep.subr.mxu0 %v79
    %1109 = vmatpush1.msra.mxu0 %v78
    %1110 = vmatprep.subr.mxu0 %v83
    %1111 = vmatpush1.msra.mxu0 %v82
    %1112 = vmatprep.subr.mxu0 %v87
    %1113 = vmatpush1.msra.mxu0 %v86
    %1114 = vmatprep.subr.mxu0 %v91
    %1115 = vmatpush1.msra.mxu0 %v90
    %1116 = vmatprep.subr.mxu0 %v95
    %1117 = vmatpush1.msra.mxu0 %v94
    %1118 = vmatprep.subr.mxu0 %v99
    %1119 = vmatpush1.msra.mxu0 %v98
    %1120 = vmatprep.subr.mxu0 %v103
    %1121 = vmatpush1.msra.mxu0 %v102
    %1122 = vmatprep.subr.mxu0 %v107
    %1123 = vmatpush1.msra.mxu0 %v106
    %1124 = vmatprep.subr.mxu0 %v111
    %1125 = vmatpush1.msra.mxu0 %v110
    %1126 = vmatprep.subr.mxu0 %v115
    %1127 = vmatpush1.msra.mxu0 %v114
    %1128 = vmatprep.subr.mxu0 %v119
    %1129 = vmatpush1.msra.mxu0 %v118
    %1130 = vmatprep.subr.mxu0 %v123
    %1131 = vmatpush1.msra.mxu0 %v122
    %1132 = vmatprep.subr.mxu0 0.0
    %1133 = vmatpush1.msra.mxu0 0.0
    %1134 = vmatprep.subr.mxu0 0.0
    %1135 = vmatpush1.msra.mxu0 0.0
    %1136 = vmatprep.subr.mxu0 0.0
    %1137 = vmatpush1.msra.mxu0 0.0
    %1138 = vmatprep.subr.mxu0 0.0
    %1139 = vmatpush1.msra.mxu0 0.0
    %1140 = vmatprep.subr.mxu0 0.0
    %1141 = vmatpush1.msra.mxu0 0.0
    %1142 = vmatprep.subr.mxu0 0.0
    %1143 = vmatpush1.msra.mxu0 0.0
    %1144 = vmatprep.subr.mxu0 0.0
    %1145 = vmatpush1.msra.mxu0 0.0
    %1146 = vmatprep.subr.mxu0 0.0
    %1147 = vmatpush1.msra.mxu0 0.0
    %1148 = vmatprep.subr.mxu0 0.0
    %1149 = vmatpush1.msra.mxu0 0.0
    %1150 = vmatprep.subr.mxu0 0.0
    %1151 = vmatpush1.msra.mxu0 0.0
    %1152 = vmatprep.subr.mxu0 0.0
    %1153 = vmatpush1.msra.mxu0 0.0
    %1154 = vmatprep.subr.mxu0 0.0
    %1155 = vmatpush1.msra.mxu0 0.0
    %1156 = vmatprep.subr.mxu0 0.0
    %1157 = vmatpush1.msra.mxu0 0.0
    %1158 = vmatprep.subr.mxu0 0.0
    %1159 = vmatpush1.msra.mxu0 0.0
    %1160 = vmatprep.subr.mxu0 0.0
    %1161 = vmatpush1.msra.mxu0 0.0
    %1162 = vmatprep.subr.mxu0 0.0
    %1163 = vmatpush1.msra.mxu0 0.0
    %1164 = vmatprep.mubr.f32.mxu0 0.0
    %1165 = vmatmul.mubr.f32.gmra.mrb[0].mxu0 %v851
    %v1166 = vpop.f32.mrb[0].mxu0
    %v1167 = vadd.f32 0.0, %v1166
    %v1168 = vpop.f32.mrb[0].mxu0
    %v1169 = vadd.f32 0.0, %v1168
    %1170 = vdwg.mxu0
    %v1171 = vadd.f32 %v1025, %v1096
    %v1172 = vadd.f32 %v1026, %v1098
    %v1173 = vadd.f32 %v1027, %v1167
    %v1174 = vadd.f32 %v1028, %v1169
    %v1175 = vadd.f32 %v1171, %v435
    %v1176 = vadd.f32 %v1172, %v439
    %v1177 = vadd.f32 %v1173, %v443
    %v1178 = vadd.f32 %v1174, %v447
    %v1179 = vxor.u32 %v1175, 2147483648
    %v1180 = vmul.f32 %v1179, 1.442695
    %v1181 = vpow.pop %v1180
    %v1182 = vadd.f32 %v1181, 1.0
    %v1183 = vrcp.pop %v1182
    %v1184 = vmul.f32 1.0, %v1183
    %v1185 = vxor.u32 %v1176, 2147483648
    %v1186 = vmul.f32 %v1185, 1.442695
    %v1187 = vpow.pop %v1186
    %v1188 = vadd.f32 %v1187, 1.0
    %v1189 = vrcp.pop %v1188
    %v1190 = vmul.f32 1.0, %v1189
    %v1191 = vtanh.pop %v1177
    %v1192 = vxor.u32 %v1178, 2147483648
    %v1193 = vmul.f32 %v1192, 1.442695
    %v1194 = vpow.pop %v1193
    %v1195 = vadd.f32 %v1194, 1.0
    %v1196 = vrcp.pop %v1195
    %v1197 = vmul.f32 1.0, %v1196
    %v1198 = vmul.f32 %v1190, %v849
    %v1199 = vmul.f32 %v1184, %v1191
    %v1200 = vadd.f32 %v1198, %v1199
    %v1201 = vtanh.pop %v1200
    %v1202 = vmul.f32 %v1197, %v1201
    %1203 = vmatprep.subr.mxu0 %v126
    %1204 = vmatpush1.msra.mxu0 %v125
    %1205 = vmatprep.subr.mxu0 %v130
    %1206 = vmatpush1.msra.mxu0 %v129
    %1207 = vmatprep.subr.mxu0 %v134
    %1208 = vmatpush1.msra.mxu0 %v133
    %1209 = vmatprep.subr.mxu0 %v138
    %1210 = vmatpush1.msra.mxu0 %v137
    %1211 = vmatprep.subr.mxu0 %v142
    %1212 = vmatpush1.msra.mxu0 %v141
    %1213 = vmatprep.subr.mxu0 %v146
    %1214 = vmatpush1.msra.mxu0 %v145
    %1215 = vmatprep.subr.mxu0 %v150
    %1216 = vmatpush1.msra.mxu0 %v149
    %1217 = vmatprep.subr.mxu0 %v154
    %1218 = vmatpush1.msra.mxu0 %v153
    %1219 = vmatprep.subr.mxu0 %v158
    %1220 = vmatpush1.msra.mxu0 %v157
    %1221 = vmatprep.subr.mxu0 %v162
    %1222 = vmatpush1.msra.mxu0 %v161
    %1223 = vmatprep.subr.mxu0 %v166
    %1224 = vmatpush1.msra.mxu0 %v165
    %1225 = vmatprep.subr.mxu0 %v170
    %1226 = vmatpush1.msra.mxu0 %v169
    %1227 = vmatprep.subr.mxu0 %v174
    %1228 = vmatpush1.msra.mxu0 %v173
    %1229 = vmatprep.subr.mxu0 %v178
    %1230 = vmatpush1.msra.mxu0 %v177
    %1231 = vmatprep.subr.mxu0 %v182
    %1232 = vmatpush1.msra.mxu0 %v181
    %1233 = vmatprep.subr.mxu0 %v186
    %1234 = vmatpush1.msra.mxu0 %v185
    %1235 = vmatprep.subr.mxu0 %v190
    %1236 = vmatpush1.msra.mxu0 %v189
    %1237 = vmatprep.subr.mxu0 %v194
    %1238 = vmatpush1.msra.mxu0 %v193
    %1239 = vmatprep.subr.mxu0 %v198
    %1240 = vmatpush1.msra.mxu0 %v197
    %1241 = vmatprep.subr.mxu0 %v202
    %1242 = vmatpush1.msra.mxu0 %v201
    %1243 = vmatprep.subr.mxu0 %v206
    %1244 = vmatpush1.msra.mxu0 %v205
    %1245 = vmatprep.subr.mxu0 %v210
    %1246 = vmatpush1.msra.mxu0 %v209
    %1247 = vmatprep.subr.mxu0 %v214
    %1248 = vmatpush1.msra.mxu0 %v213
    %1249 = vmatprep.subr.mxu0 %v218
    %1250 = vmatpush1.msra.mxu0 %v217
    %1251 = vmatprep.subr.mxu0 %v222
    %1252 = vmatpush1.msra.mxu0 %v221
    %1253 = vmatprep.subr.mxu0 %v226
    %1254 = vmatpush1.msra.mxu0 %v225
    %1255 = vmatprep.subr.mxu0 %v230
    %1256 = vmatpush1.msra.mxu0 %v229
    %1257 = vmatprep.subr.mxu0 %v234
    %1258 = vmatpush1.msra.mxu0 %v233
    %1259 = vmatprep.subr.mxu0 %v238
    %1260 = vmatpush1.msra.mxu0 %v237
    %1261 = vmatprep.subr.mxu0 %v242
    %1262 = vmatpush1.msra.mxu0 %v241
    %1263 = vmatprep.subr.mxu0 %v246
    %1264 = vmatpush1.msra.mxu0 %v245
    %1265 = vmatprep.subr.mxu0 %v250
    %1266 = vmatpush1.msra.mxu0 %v249
    %1267 = vmatprep.mubr.f32.mxu0 %v1017
    %1268 = vmatmul.mubr.f32.gmra.mrb[0].mxu0 %v1202
    %v1269 = vpop.f32.mrb[0].mxu0
    %v1270 = vadd.f32 %v484, %v1269
    %v1271 = vpop.f32.mrb[0].mxu0
    %v1272 = vadd.f32 %v488, %v1271
    %1273 = vdwg.mxu0
    %1274 = vmatprep.subr.mxu0 %v128
    %1275 = vmatpush1.msra.mxu0 %v127
    %1276 = vmatprep.subr.mxu0 %v132
    %1277 = vmatpush1.msra.mxu0 %v131
    %1278 = vmatprep.subr.mxu0 %v136
    %1279 = vmatpush1.msra.mxu0 %v135
    %1280 = vmatprep.subr.mxu0 %v140
    %1281 = vmatpush1.msra.mxu0 %v139
    %1282 = vmatprep.subr.mxu0 %v144
    %1283 = vmatpush1.msra.mxu0 %v143
    %1284 = vmatprep.subr.mxu0 %v148
    %1285 = vmatpush1.msra.mxu0 %v147
    %1286 = vmatprep.subr.mxu0 %v152
    %1287 = vmatpush1.msra.mxu0 %v151
    %1288 = vmatprep.subr.mxu0 %v156
    %1289 = vmatpush1.msra.mxu0 %v155
    %1290 = vmatprep.subr.mxu0 %v160
    %1291 = vmatpush1.msra.mxu0 %v159
    %1292 = vmatprep.subr.mxu0 %v164
    %1293 = vmatpush1.msra.mxu0 %v163
    %1294 = vmatprep.subr.mxu0 %v168
    %1295 = vmatpush1.msra.mxu0 %v167
    %1296 = vmatprep.subr.mxu0 %v172
    %1297 = vmatpush1.msra.mxu0 %v171
    %1298 = vmatprep.subr.mxu0 %v176
    %1299 = vmatpush1.msra.mxu0 %v175
    %1300 = vmatprep.subr.mxu0 %v180
    %1301 = vmatpush1.msra.mxu0 %v179
    %1302 = vmatprep.subr.mxu0 %v184
    %1303 = vmatpush1.msra.mxu0 %v183
    %1304 = vmatprep.subr.mxu0 %v188
    %1305 = vmatpush1.msra.mxu0 %v187
    %1306 = vmatprep.subr.mxu0 %v192
    %1307 = vmatpush1.msra.mxu0 %v191
    %1308 = vmatprep.subr.mxu0 %v196
    %1309 = vmatpush1.msra.mxu0 %v195
    %1310 = vmatprep.subr.mxu0 %v200
    %1311 = vmatpush1.msra.mxu0 %v199
    %1312 = vmatprep.subr.mxu0 %v204
    %1313 = vmatpush1.msra.mxu0 %v203
    %1314 = vmatprep.subr.mxu0 %v208
    %1315 = vmatpush1.msra.mxu0 %v207
    %1316 = vmatprep.subr.mxu0 %v212
    %1317 = vmatpush1.msra.mxu0 %v211
    %1318 = vmatprep.subr.mxu0 %v216
    %1319 = vmatpush1.msra.mxu0 %v215
    %1320 = vmatprep.subr.mxu0 %v220
    %1321 = vmatpush1.msra.mxu0 %v219
    %1322 = vmatprep.subr.mxu0 %v224
    %1323 = vmatpush1.msra.mxu0 %v223
    %1324 = vmatprep.subr.mxu0 %v228
    %1325 = vmatpush1.msra.mxu0 %v227
    %1326 = vmatprep.subr.mxu0 %v232
    %1327 = vmatpush1.msra.mxu0 %v231
    %1328 = vmatprep.subr.mxu0 %v236
    %1329 = vmatpush1.msra.mxu0 %v235
    %1330 = vmatprep.subr.mxu0 %v240
    %1331 = vmatpush1.msra.mxu0 %v239
    %1332 = vmatprep.subr.mxu0 %v244
    %1333 = vmatpush1.msra.mxu0 %v243
    %1334 = vmatprep.subr.mxu0 %v248
    %1335 = vmatpush1.msra.mxu0 %v247
    %1336 = vmatprep.subr.mxu0 %v252
    %1337 = vmatpush1.msra.mxu0 %v251
    %1338 = vmatprep.mubr.f32.mxu0 %v1017
    %1339 = vmatmul.mubr.f32.gmra.mrb[0].mxu0 %v1202
    %v1340 = vpop.f32.mrb[0].mxu0
    %v1341 = vadd.f32 %v492, %v1340
    %v1342 = vpop.f32.mrb[0].mxu0
    %v1343 = vadd.f32 %v496, %v1342
    %1344 = vdwg.mxu0
    %v1345 = vxor.u32 %v1270, 2147483648
    %v1346 = vmul.f32 %v1345, 1.442695
    %v1347 = vpow.pop %v1346
    %v1348 = vadd.f32 %v1347, 1.0
    %v1349 = vrcp.pop %v1348
    %v1350 = vmul.f32 1.0, %v1349
    %v1351 = vxor.u32 %v1272, 2147483648
    %v1352 = vmul.f32 %v1351, 1.442695
    %v1353 = vpow.pop %v1352
    %v1354 = vadd.f32 %v1353, 1.0
    %v1355 = vrcp.pop %v1354
    %v1356 = vmul.f32 1.0, %v1355
    %v1357 = vtanh.pop %v1341
    %v1358 = vxor.u32 %v1343, 2147483648
    %v1359 = vmul.f32 %v1358, 1.442695
    %v1360 = vpow.pop %v1359
    %v1361 = vadd.f32 %v1360, 1.0
    %v1362 = vrcp.pop %v1361
    %v1363 = vmul.f32 1.0, %v1362
    %v1364 = vmul.f32 %v1356, %v1015
    %v1365 = vmul.f32 %v1350, %v1357
    %v1366 = vadd.f32 %v1364, %v1365
    %v1367 = vtanh.pop %v1366
    %v1368 = vmul.f32 %v1363, %v1367
    %s1369 = scalar_lea.vmem %s0, 24
    %v1370 = vld [vmem:[%s1369] sm:$0xff]
    %1372 = vset.pattern.permute.xlu0 0
    %1373 = vperm.xlu0 %1372, %v1370
    %v1374 = vpop.permute.xlu0 %1373
    %v1376 = vmul.f32 %v1374, %v264
    %v1377 = vmul.f32 %v1374, %v268
    %v1378 = vmul.f32 %v1374, %v272
    %v1379 = vmul.f32 %v1374, %v276
    %1380 = vmatprep.subr.mxu0 %v61
    %1381 = vmatpush1.msra.mxu0 %v60
    %1382 = vmatprep.subr.mxu0 %v65
    %1383 = vmatpush1.msra.mxu0 %v64
    %1384 = vmatprep.subr.mxu0 %v69
    %1385 = vmatpush1.msra.mxu0 %v68
    %1386 = vmatprep.subr.mxu0 %v73
    %1387 = vmatpush1.msra.mxu0 %v72
    %1388 = vmatprep.subr.mxu0 %v77
    %1389 = vmatpush1.msra.mxu0 %v76
    %1390 = vmatprep.subr.mxu0 %v81
    %1391 = vmatpush1.msra.mxu0 %v80
    %1392 = vmatprep.subr.mxu0 %v85
    %1393 = vmatpush1.msra.mxu0 %v84
    %1394 = vmatprep.subr.mxu0 %v89
    %1395 = vmatpush1.msra.mxu0 %v88
    %1396 = vmatprep.subr.mxu0 %v93
    %1397 = vmatpush1.msra.mxu0 %v92
    %1398 = vmatprep.subr.mxu0 %v97
    %1399 = vmatpush1.msra.mxu0 %v96
    %1400 = vmatprep.subr.mxu0 %v101
    %1401 = vmatpush1.msra.mxu0 %v100
    %1402 = vmatprep.subr.mxu0 %v105
    %1403 = vmatpush1.msra.mxu0 %v104
    %1404 = vmatprep.subr.mxu0 %v109
    %1405 = vmatpush1.msra.mxu0 %v108
    %1406 = vmatprep.subr.mxu0 %v113
    %1407 = vmatpush1.msra.mxu0 %v112
    %1408 = vmatprep.subr.mxu0 %v117
    %1409 = vmatpush1.msra.mxu0 %v116
    %1410 = vmatprep.subr.mxu0 %v121
    %1411 = vmatpush1.msra.mxu0 %v120
    %1412 = vmatprep.subr.mxu0 0.0
    %1413 = vmatpush1.msra.mxu0 0.0
    %1414 = vmatprep.subr.mxu0 0.0
    %1415 = vmatpush1.msra.mxu0 0.0
    %1416 = vmatprep.subr.mxu0 0.0
    %1417 = vmatpush1.msra.mxu0 0.0
    %1418 = vmatprep.subr.mxu0 0.0
    %1419 = vmatpush1.msra.mxu0 0.0
    %1420 = vmatprep.subr.mxu0 0.0
    %1421 = vmatpush1.msra.mxu0 0.0
    %1422 = vmatprep.subr.mxu0 0.0
    %1423 = vmatpush1.msra.mxu0 0.0
    %1424 = vmatprep.subr.mxu0 0.0
    %1425 = vmatpush1.msra.mxu0 0.0
    %1426 = vmatprep.subr.mxu0 0.0
    %1427 = vmatpush1.msra.mxu0 0.0
    %1428 = vmatprep.subr.mxu0 0.0
    %1429 = vmatpush1.msra.mxu0 0.0
    %1430 = vmatprep.subr.mxu0 0.0
    %1431 = vmatpush1.msra.mxu0 0.0
    %1432 = vmatprep.subr.mxu0 0.0
    %1433 = vmatpush1.msra.mxu0 0.0
    %1434 = vmatprep.subr.mxu0 0.0
    %1435 = vmatpush1.msra.mxu0 0.0
    %1436 = vmatprep.subr.mxu0 0.0
    %1437 = vmatpush1.msra.mxu0 0.0
    %1438 = vmatprep.subr.mxu0 0.0
    %1439 = vmatpush1.msra.mxu0 0.0
    %1440 = vmatprep.subr.mxu0 0.0
    %1441 = vmatpush1.msra.mxu0 0.0
    %1442 = vmatprep.subr.mxu0 0.0
    %1443 = vmatpush1.msra.mxu0 0.0
    %1444 = vmatprep.mubr.f32.mxu0 0.0
    %1445 = vmatmul.mubr.f32.gmra.mrb[0].mxu0 %v1202
    %v1446 = vpop.f32.mrb[0].mxu0
    %v1447 = vadd.f32 0.0, %v1446
    %v1448 = vpop.f32.mrb[0].mxu0
    %v1449 = vadd.f32 0.0, %v1448
    %1450 = vdwg.mxu0
    %1451 = vmatprep.subr.mxu0 %v63
    %1452 = vmatpush1.msra.mxu0 %v62
    %1453 = vmatprep.subr.mxu0 %v67
    %1454 = vmatpush1.msra.mxu0 %v66
    %1455 = vmatprep.subr.mxu0 %v71
    %1456 = vmatpush1.msra.mxu0 %v70
    %1457 = vmatprep.subr.mxu0 %v75
    %1458 = vmatpush1.msra.mxu0 %v74
    %1459 = vmatprep.subr.mxu0 %v79
    %1460 = vmatpush1.msra.mxu0 %v78
    %1461 = vmatprep.subr.mxu0 %v83
    %1462 = vmatpush1.msra.mxu0 %v82
    %1463 = vmatprep.subr.mxu0 %v87
    %1464 = vmatpush1.msra.mxu0 %v86
    %1465 = vmatprep.subr.mxu0 %v91
    %1466 = vmatpush1.msra.mxu0 %v90
    %1467 = vmatprep.subr.mxu0 %v95
    %1468 = vmatpush1.msra.mxu0 %v94
    %1469 = vmatprep.subr.mxu0 %v99
    %1470 = vmatpush1.msra.mxu0 %v98
    %1471 = vmatprep.subr.mxu0 %v103
    %1472 = vmatpush1.msra.mxu0 %v102
    %1473 = vmatprep.subr.mxu0 %v107
    %1474 = vmatpush1.msra.mxu0 %v106
    %1475 = vmatprep.subr.mxu0 %v111
    %1476 = vmatpush1.msra.mxu0 %v110
    %1477 = vmatprep.subr.mxu0 %v115
    %1478 = vmatpush1.msra.mxu0 %v114
    %1479 = vmatprep.subr.mxu0 %v119
    %1480 = vmatpush1.msra.mxu0 %v118
    %1481 = vmatprep.subr.mxu0 %v123
    %1482 = vmatpush1.msra.mxu0 %v122
    %1483 = vmatprep.subr.mxu0 0.0
    %1484 = vmatpush1.msra.mxu0 0.0
    %1485 = vmatprep.subr.mxu0 0.0
    %1486 = vmatpush1.msra.mxu0 0.0
    %1487 = vmatprep.subr.mxu0 0.0
    %1488 = vmatpush1.msra.mxu0 0.0
    %1489 = vmatprep.subr.mxu0 0.0
    %1490 = vmatpush1.msra.mxu0 0.0
    %1491 = vmatprep.subr.mxu0 0.0
    %1492 = vmatpush1.msra.mxu0 0.0
    %1493 = vmatprep.subr.mxu0 0.0
    %1494 = vmatpush1.msra.mxu0 0.0
    %1495 = vmatprep.subr.mxu0 0.0
    %1496 = vmatpush1.msra.mxu0 0.0
    %1497 = vmatprep.subr.mxu0 0.0
    %1498 = vmatpush1.msra.mxu0 0.0
    %1499 = vmatprep.subr.mxu0 0.0
    %1500 = vmatpush1.msra.mxu0 0.0
    %1501 = vmatprep.subr.mxu0 0.0
    %1502 = vmatpush1.msra.mxu0 0.0
    %1503 = vmatprep.subr.mxu0 0.0
    %1504 = vmatpush1.msra.mxu0 0.0
    %1505 = vmatprep.subr.mxu0 0.0
    %1506 = vmatpush1.msra.mxu0 0.0
    %1507 = vmatprep.subr.mxu0 0.0
    %1508 = vmatpush1.msra.mxu0 0.0
    %1509 = vmatprep.subr.mxu0 0.0
    %1510 = vmatpush1.msra.mxu0 0.0
    %1511 = vmatprep.subr.mxu0 0.0
    %1512 = vmatpush1.msra.mxu0 0.0
    %1513 = vmatprep.subr.mxu0 0.0
    %1514 = vmatpush1.msra.mxu0 0.0
    %1515 = vmatprep.mubr.f32.mxu0 0.0
    %1516 = vmatmul.mubr.f32.gmra.mrb[0].mxu0 %v1202
    %v1517 = vpop.f32.mrb[0].mxu0
    %v1518 = vadd.f32 0.0, %v1517
    %v1519 = vpop.f32.mrb[0].mxu0
    %v1520 = vadd.f32 0.0, %v1519
    %1521 = vdwg.mxu0
    %v1522 = vadd.f32 %v1376, %v1447
    %v1523 = vadd.f32 %v1377, %v1449
    %v1524 = vadd.f32 %v1378, %v1518
    %v1525 = vadd.f32 %v1379, %v1520
    %v1526 = vadd.f32 %v1522, %v435
    %v1527 = vadd.f32 %v1523, %v439
    %v1528 = vadd.f32 %v1524, %v443
    %v1529 = vadd.f32 %v1525, %v447
    %v1530 = vxor.u32 %v1526, 2147483648
    %v1531 = vmul.f32 %v1530, 1.442695
    %v1532 = vpow.pop %v1531
    %v1533 = vadd.f32 %v1532, 1.0
    %v1534 = vrcp.pop %v1533
    %v1535 = vmul.f32 1.0, %v1534
    %v1536 = vxor.u32 %v1527, 2147483648
    %v1537 = vmul.f32 %v1536, 1.442695
    %v1538 = vpow.pop %v1537
    %v1539 = vadd.f32 %v1538, 1.0
    %v1540 = vrcp.pop %v1539
    %v1541 = vmul.f32 1.0, %v1540
    %v1542 = vtanh.pop %v1528
    %v1543 = vxor.u32 %v1529, 2147483648
    %v1544 = vmul.f32 %v1543, 1.442695
    %v1545 = vpow.pop %v1544
    %v1546 = vadd.f32 %v1545, 1.0
    %v1547 = vrcp.pop %v1546
    %v1548 = vmul.f32 1.0, %v1547
    %v1549 = vmul.f32 %v1541, %v1200
    %v1550 = vmul.f32 %v1535, %v1542
    %v1551 = vadd.f32 %v1549, %v1550
    %v1552 = vtanh.pop %v1551
    %v1553 = vmul.f32 %v1548, %v1552
    %1554 = vmatprep.subr.mxu0 %v126
    %1555 = vmatpush1.msra.mxu0 %v125
    %1556 = vmatprep.subr.mxu0 %v130
    %1557 = vmatpush1.msra.mxu0 %v129
    %1558 = vmatprep.subr.mxu0 %v134
    %1559 = vmatpush1.msra.mxu0 %v133
    %1560 = vmatprep.subr.mxu0 %v138
    %1561 = vmatpush1.msra.mxu0 %v137
    %1562 = vmatprep.subr.mxu0 %v142
    %1563 = vmatpush1.msra.mxu0 %v141
    %1564 = vmatprep.subr.mxu0 %v146
    %1565 = vmatpush1.msra.mxu0 %v145
    %1566 = vmatprep.subr.mxu0 %v150
    %1567 = vmatpush1.msra.mxu0 %v149
    %1568 = vmatprep.subr.mxu0 %v154
    %1569 = vmatpush1.msra.mxu0 %v153
    %1570 = vmatprep.subr.mxu0 %v158
    %1571 = vmatpush1.msra.mxu0 %v157
    %1572 = vmatprep.subr.mxu0 %v162
    %1573 = vmatpush1.msra.mxu0 %v161
    %1574 = vmatprep.subr.mxu0 %v166
    %1575 = vmatpush1.msra.mxu0 %v165
    %1576 = vmatprep.subr.mxu0 %v170
    %1577 = vmatpush1.msra.mxu0 %v169
    %1578 = vmatprep.subr.mxu0 %v174
    %1579 = vmatpush1.msra.mxu0 %v173
    %1580 = vmatprep.subr.mxu0 %v178
    %1581 = vmatpush1.msra.mxu0 %v177
    %1582 = vmatprep.subr.mxu0 %v182
    %1583 = vmatpush1.msra.mxu0 %v181
    %1584 = vmatprep.subr.mxu0 %v186
    %1585 = vmatpush1.msra.mxu0 %v185
    %1586 = vmatprep.subr.mxu0 %v190
    %1587 = vmatpush1.msra.mxu0 %v189
    %1588 = vmatprep.subr.mxu0 %v194
    %1589 = vmatpush1.msra.mxu0 %v193
    %1590 = vmatprep.subr.mxu0 %v198
    %1591 = vmatpush1.msra.mxu0 %v197
    %1592 = vmatprep.subr.mxu0 %v202
    %1593 = vmatpush1.msra.mxu0 %v201
    %1594 = vmatprep.subr.mxu0 %v206
    %1595 = vmatpush1.msra.mxu0 %v205
    %1596 = vmatprep.subr.mxu0 %v210
    %1597 = vmatpush1.msra.mxu0 %v209
    %1598 = vmatprep.subr.mxu0 %v214
    %1599 = vmatpush1.msra.mxu0 %v213
    %1600 = vmatprep.subr.mxu0 %v218
    %1601 = vmatpush1.msra.mxu0 %v217
    %1602 = vmatprep.subr.mxu0 %v222
    %1603 = vmatpush1.msra.mxu0 %v221
    %1604 = vmatprep.subr.mxu0 %v226
    %1605 = vmatpush1.msra.mxu0 %v225
    %1606 = vmatprep.subr.mxu0 %v230
    %1607 = vmatpush1.msra.mxu0 %v229
    %1608 = vmatprep.subr.mxu0 %v234
    %1609 = vmatpush1.msra.mxu0 %v233
    %1610 = vmatprep.subr.mxu0 %v238
    %1611 = vmatpush1.msra.mxu0 %v237
    %1612 = vmatprep.subr.mxu0 %v242
    %1613 = vmatpush1.msra.mxu0 %v241
    %1614 = vmatprep.subr.mxu0 %v246
    %1615 = vmatpush1.msra.mxu0 %v245
    %1616 = vmatprep.subr.mxu0 %v250
    %1617 = vmatpush1.msra.mxu0 %v249
    %1618 = vmatprep.mubr.f32.mxu0 %v1368
    %1619 = vmatmul.mubr.f32.gmra.mrb[0].mxu0 %v1553
    %v1620 = vpop.f32.mrb[0].mxu0
    %v1621 = vadd.f32 %v484, %v1620
    %v1622 = vpop.f32.mrb[0].mxu0
    %v1623 = vadd.f32 %v488, %v1622
    %1624 = vdwg.mxu0
    %1625 = vmatprep.subr.mxu0 %v128
    %1626 = vmatpush1.msra.mxu0 %v127
    %1627 = vmatprep.subr.mxu0 %v132
    %1628 = vmatpush1.msra.mxu0 %v131
    %1629 = vmatprep.subr.mxu0 %v136
    %1630 = vmatpush1.msra.mxu0 %v135
    %1631 = vmatprep.subr.mxu0 %v140
    %1632 = vmatpush1.msra.mxu0 %v139
    %1633 = vmatprep.subr.mxu0 %v144
    %1634 = vmatpush1.msra.mxu0 %v143
    %1635 = vmatprep.subr.mxu0 %v148
    %1636 = vmatpush1.msra.mxu0 %v147
    %1637 = vmatprep.subr.mxu0 %v152
    %1638 = vmatpush1.msra.mxu0 %v151
    %1639 = vmatprep.subr.mxu0 %v156
    %1640 = vmatpush1.msra.mxu0 %v155
    %1641 = vmatprep.subr.mxu0 %v160
    %1642 = vmatpush1.msra.mxu0 %v159
    %1643 = vmatprep.subr.mxu0 %v164
    %1644 = vmatpush1.msra.mxu0 %v163
    %1645 = vmatprep.subr.mxu0 %v168
    %1646 = vmatpush1.msra.mxu0 %v167
    %1647 = vmatprep.subr.mxu0 %v172
    %1648 = vmatpush1.msra.mxu0 %v171
    %1649 = vmatprep.subr.mxu0 %v176
    %1650 = vmatpush1.msra.mxu0 %v175
    %1651 = vmatprep.subr.mxu0 %v180
    %1652 = vmatpush1.msra.mxu0 %v179
    %1653 = vmatprep.subr.mxu0 %v184
    %1654 = vmatpush1.msra.mxu0 %v183
    %1655 = vmatprep.subr.mxu0 %v188
    %1656 = vmatpush1.msra.mxu0 %v187
    %1657 = vmatprep.subr.mxu0 %v192
    %1658 = vmatpush1.msra.mxu0 %v191
    %1659 = vmatprep.subr.mxu0 %v196
    %1660 = vmatpush1.msra.mxu0 %v195
    %1661 = vmatprep.subr.mxu0 %v200
    %1662 = vmatpush1.msra.mxu0 %v199
    %1663 = vmatprep.subr.mxu0 %v204
    %1664 = vmatpush1.msra.mxu0 %v203
    %1665 = vmatprep.subr.mxu0 %v208
    %1666 = vmatpush1.msra.mxu0 %v207
    %1667 = vmatprep.subr.mxu0 %v212
    %1668 = vmatpush1.msra.mxu0 %v211
    %1669 = vmatprep.subr.mxu0 %v216
    %1670 = vmatpush1.msra.mxu0 %v215
    %1671 = vmatprep.subr.mxu0 %v220
    %1672 = vmatpush1.msra.mxu0 %v219
    %1673 = vmatprep.subr.mxu0 %v224
    %1674 = vmatpush1.msra.mxu0 %v223
    %1675 = vmatprep.subr.mxu0 %v228
    %1676 = vmatpush1.msra.mxu0 %v227
    %1677 = vmatprep.subr.mxu0 %v232
    %1678 = vmatpush1.msra.mxu0 %v231
    %1679 = vmatprep.subr.mxu0 %v236
    %1680 = vmatpush1.msra.mxu0 %v235
    %1681 = vmatprep.subr.mxu0 %v240
    %1682 = vmatpush1.msra.mxu0 %v239
    %1683 = vmatprep.subr.mxu0 %v244
    %1684 = vmatpush1.msra.mxu0 %v243
    %1685 = vmatprep.subr.mxu0 %v248
    %1686 = vmatpush1.msra.mxu0 %v247
    %1687 = vmatprep.subr.mxu0 %v252
    %1688 = vmatpush1.msra.mxu0 %v251
    %1689 = vmatprep.mubr.f32.mxu0 %v1368
    %1690 = vmatmul.mubr.f32.gmra.mrb[0].mxu0 %v1553
    %v1691 = vpop.f32.mrb[0].mxu0
    %v1692 = vadd.f32 %v492, %v1691
    %v1693 = vpop.f32.mrb[0].mxu0
    %v1694 = vadd.f32 %v496, %v1693
    %1695 = vdwg.mxu0
    %v1696 = vxor.u32 %v1621, 2147483648
    %v1697 = vmul.f32 %v1696, 1.442695
    %v1698 = vpow.pop %v1697
    %v1699 = vadd.f32 %v1698, 1.0
    %v1700 = vrcp.pop %v1699
    %v1701 = vmul.f32 1.0, %v1700
    %v1702 = vxor.u32 %v1623, 2147483648
    %v1703 = vmul.f32 %v1702, 1.442695
    %v1704 = vpow.pop %v1703
    %v1705 = vadd.f32 %v1704, 1.0
    %v1706 = vrcp.pop %v1705
    %v1707 = vmul.f32 1.0, %v1706
    %v1708 = vtanh.pop %v1692
    %v1709 = vxor.u32 %v1694, 2147483648
    %v1710 = vmul.f32 %v1709, 1.442695
    %v1711 = vpow.pop %v1710
    %v1712 = vadd.f32 %v1711, 1.0
    %v1713 = vrcp.pop %v1712
    %v1714 = vmul.f32 1.0, %v1713
    %v1715 = vmul.f32 %v1707, %v1366
    %v1716 = vmul.f32 %v1701, %v1708
    %v1717 = vadd.f32 %v1715, %v1716
    %v1718 = vtanh.pop %v1717
    %v1719 = vmul.f32 %v1714, %v1718
    %s1720 = scalar_lea.vmem %s0, 32
    %v1721 = vld [vmem:[%s1720] sm:$0xff]
    %1723 = vset.pattern.permute.xlu0 0
    %1724 = vperm.xlu0 %1723, %v1721
    %v1725 = vpop.permute.xlu0 %1724
    %v1727 = vmul.f32 %v1725, %v264
    %v1728 = vmul.f32 %v1725, %v268
    %v1729 = vmul.f32 %v1725, %v272
    %v1730 = vmul.f32 %v1725, %v276
    %1731 = vmatprep.subr.mxu0 %v61
    %1732 = vmatpush1.msra.mxu0 %v60
    %1733 = vmatprep.subr.mxu0 %v65
    %1734 = vmatpush1.msra.mxu0 %v64
    %1735 = vmatprep.subr.mxu0 %v69
    %1736 = vmatpush1.msra.mxu0 %v68
    %1737 = vmatprep.subr.mxu0 %v73
    %1738 = vmatpush1.msra.mxu0 %v72
    %1739 = vmatprep.subr.mxu0 %v77
    %1740 = vmatpush1.msra.mxu0 %v76
    %1741 = vmatprep.subr.mxu0 %v81
    %1742 = vmatpush1.msra.mxu0 %v80
    %1743 = vmatprep.subr.mxu0 %v85
    %1744 = vmatpush1.msra.mxu0 %v84
    %1745 = vmatprep.subr.mxu0 %v89
    %1746 = vmatpush1.msra.mxu0 %v88
    %1747 = vmatprep.subr.mxu0 %v93
    %1748 = vmatpush1.msra.mxu0 %v92
    %1749 = vmatprep.subr.mxu0 %v97
    %1750 = vmatpush1.msra.mxu0 %v96
    %1751 = vmatprep.subr.mxu0 %v101
    %1752 = vmatpush1.msra.mxu0 %v100
    %1753 = vmatprep.subr.mxu0 %v105
    %1754 = vmatpush1.msra.mxu0 %v104
    %1755 = vmatprep.subr.mxu0 %v109
    %1756 = vmatpush1.msra.mxu0 %v108
    %1757 = vmatprep.subr.mxu0 %v113
    %1758 = vmatpush1.msra.mxu0 %v112
    %1759 = vmatprep.subr.mxu0 %v117
    %1760 = vmatpush1.msra.mxu0 %v116
    %1761 = vmatprep.subr.mxu0 %v121
    %1762 = vmatpush1.msra.mxu0 %v120
    %1763 = vmatprep.subr.mxu0 0.0
    %1764 = vmatpush1.msra.mxu0 0.0
    %1765 = vmatprep.subr.mxu0 0.0
    %1766 = vmatpush1.msra.mxu0 0.0
    %1767 = vmatprep.subr.mxu0 0.0
    %1768 = vmatpush1.msra.mxu0 0.0
    %1769 = vmatprep.subr.mxu0 0.0
    %1770 = vmatpush1.msra.mxu0 0.0
    %1771 = vmatprep.subr.mxu0 0.0
    %1772 = vmatpush1.msra.mxu0 0.0
    %1773 = vmatprep.subr.mxu0 0.0
    %1774 = vmatpush1.msra.mxu0 0.0
    %1775 = vmatprep.subr.mxu0 0.0
    %1776 = vmatpush1.msra.mxu0 0.0
    %1777 = vmatprep.subr.mxu0 0.0
    %1778 = vmatpush1.msra.mxu0 0.0
    %1779 = vmatprep.subr.mxu0 0.0
    %1780 = vmatpush1.msra.mxu0 0.0
    %1781 = vmatprep.subr.mxu0 0.0
    %1782 = vmatpush1.msra.mxu0 0.0
    %1783 = vmatprep.subr.mxu0 0.0
    %1784 = vmatpush1.msra.mxu0 0.0
    %1785 = vmatprep.subr.mxu0 0.0
    %1786 = vmatpush1.msra.mxu0 0.0
    %1787 = vmatprep.subr.mxu0 0.0
    %1788 = vmatpush1.msra.mxu0 0.0
    %1789 = vmatprep.subr.mxu0 0.0
    %1790 = vmatpush1.msra.mxu0 0.0
    %1791 = vmatprep.subr.mxu0 0.0
    %1792 = vmatpush1.msra.mxu0 0.0
    %1793 = vmatprep.subr.mxu0 0.0
    %1794 = vmatpush1.msra.mxu0 0.0
    %1795 = vmatprep.mubr.f32.mxu0 0.0
    %1796 = vmatmul.mubr.f32.gmra.mrb[0].mxu0 %v1553
    %v1797 = vpop.f32.mrb[0].mxu0
    %v1798 = vadd.f32 0.0, %v1797
    %v1799 = vpop.f32.mrb[0].mxu0
    %v1800 = vadd.f32 0.0, %v1799
    %1801 = vdwg.mxu0
    %1802 = vmatprep.subr.mxu0 %v63
    %1803 = vmatpush1.msra.mxu0 %v62
    %1804 = vmatprep.subr.mxu0 %v67
    %1805 = vmatpush1.msra.mxu0 %v66
    %1806 = vmatprep.subr.mxu0 %v71
    %1807 = vmatpush1.msra.mxu0 %v70
    %1808 = vmatprep.subr.mxu0 %v75
    %1809 = vmatpush1.msra.mxu0 %v74
    %1810 = vmatprep.subr.mxu0 %v79
    %1811 = vmatpush1.msra.mxu0 %v78
    %1812 = vmatprep.subr.mxu0 %v83
    %1813 = vmatpush1.msra.mxu0 %v82
    %1814 = vmatprep.subr.mxu0 %v87
    %1815 = vmatpush1.msra.mxu0 %v86
    %1816 = vmatprep.subr.mxu0 %v91
    %1817 = vmatpush1.msra.mxu0 %v90
    %1818 = vmatprep.subr.mxu0 %v95
    %1819 = vmatpush1.msra.mxu0 %v94
    %1820 = vmatprep.subr.mxu0 %v99
    %1821 = vmatpush1.msra.mxu0 %v98
    %1822 = vmatprep.subr.mxu0 %v103
    %1823 = vmatpush1.msra.mxu0 %v102
    %1824 = vmatprep.subr.mxu0 %v107
    %1825 = vmatpush1.msra.mxu0 %v106
    %1826 = vmatprep.subr.mxu0 %v111
    %1827 = vmatpush1.msra.mxu0 %v110
    %1828 = vmatprep.subr.mxu0 %v115
    %1829 = vmatpush1.msra.mxu0 %v114
    %1830 = vmatprep.subr.mxu0 %v119
    %1831 = vmatpush1.msra.mxu0 %v118
    %1832 = vmatprep.subr.mxu0 %v123
    %1833 = vmatpush1.msra.mxu0 %v122
    %1834 = vmatprep.subr.mxu0 0.0
    %1835 = vmatpush1.msra.mxu0 0.0
    %1836 = vmatprep.subr.mxu0 0.0
    %1837 = vmatpush1.msra.mxu0 0.0
    %1838 = vmatprep.subr.mxu0 0.0
    %1839 = vmatpush1.msra.mxu0 0.0
    %1840 = vmatprep.subr.mxu0 0.0
    %1841 = vmatpush1.msra.mxu0 0.0
    %1842 = vmatprep.subr.mxu0 0.0
    %1843 = vmatpush1.msra.mxu0 0.0
    %1844 = vmatprep.subr.mxu0 0.0
    %1845 = vmatpush1.msra.mxu0 0.0
    %1846 = vmatprep.subr.mxu0 0.0
    %1847 = vmatpush1.msra.mxu0 0.0
    %1848 = vmatprep.subr.mxu0 0.0
    %1849 = vmatpush1.msra.mxu0 0.0
    %1850 = vmatprep.subr.mxu0 0.0
    %1851 = vmatpush1.msra.mxu0 0.0
    %1852 = vmatprep.subr.mxu0 0.0
    %1853 = vmatpush1.msra.mxu0 0.0
    %1854 = vmatprep.subr.mxu0 0.0
    %1855 = vmatpush1.msra.mxu0 0.0
    %1856 = vmatprep.subr.mxu0 0.0
    %1857 = vmatpush1.msra.mxu0 0.0
    %1858 = vmatprep.subr.mxu0 0.0
    %1859 = vmatpush1.msra.mxu0 0.0
    %1860 = vmatprep.subr.mxu0 0.0
    %1861 = vmatpush1.msra.mxu0 0.0
    %1862 = vmatprep.subr.mxu0 0.0
    %1863 = vmatpush1.msra.mxu0 0.0
    %1864 = vmatprep.subr.mxu0 0.0
    %1865 = vmatpush1.msra.mxu0 0.0
    %1866 = vmatprep.mubr.f32.mxu0 0.0
    %1867 = vmatmul.mubr.f32.gmra.mrb[0].mxu0 %v1553
    %v1868 = vpop.f32.mrb[0].mxu0
    %v1869 = vadd.f32 0.0, %v1868
    %v1870 = vpop.f32.mrb[0].mxu0
    %v1871 = vadd.f32 0.0, %v1870
    %1872 = vdwg.mxu0
    %v1873 = vadd.f32 %v1727, %v1798
    %v1874 = vadd.f32 %v1728, %v1800
    %v1875 = vadd.f32 %v1729, %v1869
    %v1876 = vadd.f32 %v1730, %v1871
    %v1877 = vadd.f32 %v1873, %v435
    %v1878 = vadd.f32 %v1874, %v439
    %v1879 = vadd.f32 %v1875, %v443
    %v1880 = vadd.f32 %v1876, %v447
    %v1881 = vxor.u32 %v1877, 2147483648
    %v1882 = vmul.f32 %v1881, 1.442695
    %v1883 = vpow.pop %v1882
    %v1884 = vadd.f32 %v1883, 1.0
    %v1885 = vrcp.pop %v1884
    %v1886 = vmul.f32 1.0, %v1885
    %v1887 = vxor.u32 %v1878, 2147483648
    %v1888 = vmul.f32 %v1887, 1.442695
    %v1889 = vpow.pop %v1888
    %v1890 = vadd.f32 %v1889, 1.0
    %v1891 = vrcp.pop %v1890
    %v1892 = vmul.f32 1.0, %v1891
    %v1893 = vtanh.pop %v1879
    %v1894 = vxor.u32 %v1880, 2147483648
    %v1895 = vmul.f32 %v1894, 1.442695
    %v1896 = vpow.pop %v1895
    %v1897 = vadd.f32 %v1896, 1.0
    %v1898 = vrcp.pop %v1897
    %v1899 = vmul.f32 1.0, %v1898
    %v1900 = vmul.f32 %v1892, %v1551
    %v1901 = vmul.f32 %v1886, %v1893
    %v1902 = vadd.f32 %v1900, %v1901
    %v1903 = vtanh.pop %v1902
    %v1904 = vmul.f32 %v1899, %v1903
    %1905 = vmatprep.subr.mxu0 %v126
    %1906 = vmatpush1.msra.mxu0 %v125
    %1907 = vmatprep.subr.mxu0 %v130
    %1908 = vmatpush1.msra.mxu0 %v129
    %1909 = vmatprep.subr.mxu0 %v134
    %1910 = vmatpush1.msra.mxu0 %v133
    %1911 = vmatprep.subr.mxu0 %v138
    %1912 = vmatpush1.msra.mxu0 %v137
    %1913 = vmatprep.subr.mxu0 %v142
    %1914 = vmatpush1.msra.mxu0 %v141
    %1915 = vmatprep.subr.mxu0 %v146
    %1916 = vmatpush1.msra.mxu0 %v145
    %1917 = vmatprep.subr.mxu0 %v150
    %1918 = vmatpush1.msra.mxu0 %v149
    %1919 = vmatprep.subr.mxu0 %v154
    %1920 = vmatpush1.msra.mxu0 %v153
    %1921 = vmatprep.subr.mxu0 %v158
    %1922 = vmatpush1.msra.mxu0 %v157
    %1923 = vmatprep.subr.mxu0 %v162
    %1924 = vmatpush1.msra.mxu0 %v161
    %1925 = vmatprep.subr.mxu0 %v166
    %1926 = vmatpush1.msra.mxu0 %v165
    %1927 = vmatprep.subr.mxu0 %v170
    %1928 = vmatpush1.msra.mxu0 %v169
    %1929 = vmatprep.subr.mxu0 %v174
    %1930 = vmatpush1.msra.mxu0 %v173
    %1931 = vmatprep.subr.mxu0 %v178
    %1932 = vmatpush1.msra.mxu0 %v177
    %1933 = vmatprep.subr.mxu0 %v182
    %1934 = vmatpush1.msra.mxu0 %v181
    %1935 = vmatprep.subr.mxu0 %v186
    %1936 = vmatpush1.msra.mxu0 %v185
    %1937 = vmatprep.subr.mxu0 %v190
    %1938 = vmatpush1.msra.mxu0 %v189
    %1939 = vmatprep.subr.mxu0 %v194
    %1940 = vmatpush1.msra.mxu0 %v193
    %1941 = vmatprep.subr.mxu0 %v198
    %1942 = vmatpush1.msra.mxu0 %v197
    %1943 = vmatprep.subr.mxu0 %v202
    %1944 = vmatpush1.msra.mxu0 %v201
    %1945 = vmatprep.subr.mxu0 %v206
    %1946 = vmatpush1.msra.mxu0 %v205
    %1947 = vmatprep.subr.mxu0 %v210
    %1948 = vmatpush1.msra.mxu0 %v209
    %1949 = vmatprep.subr.mxu0 %v214
    %1950 = vmatpush1.msra.mxu0 %v213
    %1951 = vmatprep.subr.mxu0 %v218
    %1952 = vmatpush1.msra.mxu0 %v217
    %1953 = vmatprep.subr.mxu0 %v222
    %1954 = vmatpush1.msra.mxu0 %v221
    %1955 = vmatprep.subr.mxu0 %v226
    %1956 = vmatpush1.msra.mxu0 %v225
    %1957 = vmatprep.subr.mxu0 %v230
    %1958 = vmatpush1.msra.mxu0 %v229
    %1959 = vmatprep.subr.mxu0 %v234
    %1960 = vmatpush1.msra.mxu0 %v233
    %1961 = vmatprep.subr.mxu0 %v238
    %1962 = vmatpush1.msra.mxu0 %v237
    %1963 = vmatprep.subr.mxu0 %v242
    %1964 = vmatpush1.msra.mxu0 %v241
    %1965 = vmatprep.subr.mxu0 %v246
    %1966 = vmatpush1.msra.mxu0 %v245
    %1967 = vmatprep.subr.mxu0 %v250
    %1968 = vmatpush1.msra.mxu0 %v249
    %1969 = vmatprep.mubr.f32.mxu0 %v1719
    %1970 = vmatmul.mubr.f32.gmra.mrb[0].mxu0 %v1904
    %v1971 = vpop.f32.mrb[0].mxu0
    %v1972 = vadd.f32 %v484, %v1971
    %v1973 = vpop.f32.mrb[0].mxu0
    %v1974 = vadd.f32 %v488, %v1973
    %1975 = vdwg.mxu0
    %1976 = vmatprep.subr.mxu0 %v128
    %1977 = vmatpush1.msra.mxu0 %v127
    %1978 = vmatprep.subr.mxu0 %v132
    %1979 = vmatpush1.msra.mxu0 %v131
    %1980 = vmatprep.subr.mxu0 %v136
    %1981 = vmatpush1.msra.mxu0 %v135
    %1982 = vmatprep.subr.mxu0 %v140
    %1983 = vmatpush1.msra.mxu0 %v139
    %1984 = vmatprep.subr.mxu0 %v144
    %1985 = vmatpush1.msra.mxu0 %v143
    %1986 = vmatprep.subr.mxu0 %v148
    %1987 = vmatpush1.msra.mxu0 %v147
    %1988 = vmatprep.subr.mxu0 %v152
    %1989 = vmatpush1.msra.mxu0 %v151
    %1990 = vmatprep.subr.mxu0 %v156
    %1991 = vmatpush1.msra.mxu0 %v155
    %1992 = vmatprep.subr.mxu0 %v160
    %1993 = vmatpush1.msra.mxu0 %v159
    %1994 = vmatprep.subr.mxu0 %v164
    %1995 = vmatpush1.msra.mxu0 %v163
    %1996 = vmatprep.subr.mxu0 %v168
    %1997 = vmatpush1.msra.mxu0 %v167
    %1998 = vmatprep.subr.mxu0 %v172
    %1999 = vmatpush1.msra.mxu0 %v171
    %2000 = vmatprep.subr.mxu0 %v176
    %2001 = vmatpush1.msra.mxu0 %v175
    %2002 = vmatprep.subr.mxu0 %v180
    %2003 = vmatpush1.msra.mxu0 %v179
    %2004 = vmatprep.subr.mxu0 %v184
    %2005 = vmatpush1.msra.mxu0 %v183
    %2006 = vmatprep.subr.mxu0 %v188
    %2007 = vmatpush1.msra.mxu0 %v187
    %2008 = vmatprep.subr.mxu0 %v192
    %2009 = vmatpush1.msra.mxu0 %v191
    %2010 = vmatprep.subr.mxu0 %v196
    %2011 = vmatpush1.msra.mxu0 %v195
    %2012 = vmatprep.subr.mxu0 %v200
    %2013 = vmatpush1.msra.mxu0 %v199
    %2014 = vmatprep.subr.mxu0 %v204
    %2015 = vmatpush1.msra.mxu0 %v203
    %2016 = vmatprep.subr.mxu0 %v208
    %2017 = vmatpush1.msra.mxu0 %v207
    %2018 = vmatprep.subr.mxu0 %v212
    %2019 = vmatpush1.msra.mxu0 %v211
    %2020 = vmatprep.subr.mxu0 %v216
    %2021 = vmatpush1.msra.mxu0 %v215
    %2022 = vmatprep.subr.mxu0 %v220
    %2023 = vmatpush1.msra.mxu0 %v219
    %2024 = vmatprep.subr.mxu0 %v224
    %2025 = vmatpush1.msra.mxu0 %v223
    %2026 = vmatprep.subr.mxu0 %v228
    %2027 = vmatpush1.msra.mxu0 %v227
    %2028 = vmatprep.subr.mxu0 %v232
    %2029 = vmatpush1.msra.mxu0 %v231
    %2030 = vmatprep.subr.mxu0 %v236
    %2031 = vmatpush1.msra.mxu0 %v235
    %2032 = vmatprep.subr.mxu0 %v240
    %2033 = vmatpush1.msra.mxu0 %v239
    %2034 = vmatprep.subr.mxu0 %v244
    %2035 = vmatpush1.msra.mxu0 %v243
    %2036 = vmatprep.subr.mxu0 %v248
    %2037 = vmatpush1.msra.mxu0 %v247
    %2038 = vmatprep.subr.mxu0 %v252
    %2039 = vmatpush1.msra.mxu0 %v251
    %2040 = vmatprep.mubr.f32.mxu0 %v1719
    %2041 = vmatmul.mubr.f32.gmra.mrb[0].mxu0 %v1904
    %v2042 = vpop.f32.mrb[0].mxu0
    %v2043 = vadd.f32 %v492, %v2042
    %v2044 = vpop.f32.mrb[0].mxu0
    %v2045 = vadd.f32 %v496, %v2044
    %2046 = vdwg.mxu0
    %v2047 = vxor.u32 %v1972, 2147483648
    %v2048 = vmul.f32 %v2047, 1.442695
    %v2049 = vpow.pop %v2048
    %v2050 = vadd.f32 %v2049, 1.0
    %v2051 = vrcp.pop %v2050
    %v2052 = vmul.f32 1.0, %v2051
    %v2053 = vxor.u32 %v1974, 2147483648
    %v2054 = vmul.f32 %v2053, 1.442695
    %v2055 = vpow.pop %v2054
    %v2056 = vadd.f32 %v2055, 1.0
    %v2057 = vrcp.pop %v2056
    %v2058 = vmul.f32 1.0, %v2057
    %v2059 = vtanh.pop %v2043
    %v2060 = vxor.u32 %v2045, 2147483648
    %v2061 = vmul.f32 %v2060, 1.442695
    %v2062 = vpow.pop %v2061
    %v2063 = vadd.f32 %v2062, 1.0
    %v2064 = vrcp.pop %v2063
    %v2065 = vmul.f32 1.0, %v2064
    %v2066 = vmul.f32 %v2058, %v1717
    %v2067 = vmul.f32 %v2052, %v2059
    %v2068 = vadd.f32 %v2066, %v2067
    %v2069 = vtanh.pop %v2068
    %v2070 = vmul.f32 %v2065, %v2069
    %s2071 = scalar_lea.vmem %s0, 40
    %v2072 = vld [vmem:[%s2071] sm:$0xff]
    %2074 = vset.pattern.permute.xlu0 0
    %2075 = vperm.xlu0 %2074, %v2072
    %v2076 = vpop.permute.xlu0 %2075
    %v2078 = vmul.f32 %v2076, %v264
    %v2079 = vmul.f32 %v2076, %v268
    %v2080 = vmul.f32 %v2076, %v272
    %v2081 = vmul.f32 %v2076, %v276
    %2082 = vmatprep.subr.mxu0 %v61
    %2083 = vmatpush1.msra.mxu0 %v60
    %2084 = vmatprep.subr.mxu0 %v65
    %2085 = vmatpush1.msra.mxu0 %v64
    %2086 = vmatprep.subr.mxu0 %v69
    %2087 = vmatpush1.msra.mxu0 %v68
    %2088 = vmatprep.subr.mxu0 %v73
    %2089 = vmatpush1.msra.mxu0 %v72
    %2090 = vmatprep.subr.mxu0 %v77
    %2091 = vmatpush1.msra.mxu0 %v76
    %2092 = vmatprep.subr.mxu0 %v81
    %2093 = vmatpush1.msra.mxu0 %v80
    %2094 = vmatprep.subr.mxu0 %v85
    %2095 = vmatpush1.msra.mxu0 %v84
    %2096 = vmatprep.subr.mxu0 %v89
    %2097 = vmatpush1.msra.mxu0 %v88
    %2098 = vmatprep.subr.mxu0 %v93
    %2099 = vmatpush1.msra.mxu0 %v92
    %2100 = vmatprep.subr.mxu0 %v97
    %2101 = vmatpush1.msra.mxu0 %v96
    %2102 = vmatprep.subr.mxu0 %v101
    %2103 = vmatpush1.msra.mxu0 %v100
    %2104 = vmatprep.subr.mxu0 %v105
    %2105 = vmatpush1.msra.mxu0 %v104
    %2106 = vmatprep.subr.mxu0 %v109
    %2107 = vmatpush1.msra.mxu0 %v108
    %2108 = vmatprep.subr.mxu0 %v113
    %2109 = vmatpush1.msra.mxu0 %v112
    %2110 = vmatprep.subr.mxu0 %v117
    %2111 = vmatpush1.msra.mxu0 %v116
    %2112 = vmatprep.subr.mxu0 %v121
    %2113 = vmatpush1.msra.mxu0 %v120
    %2114 = vmatprep.subr.mxu0 0.0
    %2115 = vmatpush1.msra.mxu0 0.0
    %2116 = vmatprep.subr.mxu0 0.0
    %2117 = vmatpush1.msra.mxu0 0.0
    %2118 = vmatprep.subr.mxu0 0.0
    %2119 = vmatpush1.msra.mxu0 0.0
    %2120 = vmatprep.subr.mxu0 0.0
    %2121 = vmatpush1.msra.mxu0 0.0
    %2122 = vmatprep.subr.mxu0 0.0
    %2123 = vmatpush1.msra.mxu0 0.0
    %2124 = vmatprep.subr.mxu0 0.0
    %2125 = vmatpush1.msra.mxu0 0.0
    %2126 = vmatprep.subr.mxu0 0.0
    %2127 = vmatpush1.msra.mxu0 0.0
    %2128 = vmatprep.subr.mxu0 0.0
    %2129 = vmatpush1.msra.mxu0 0.0
    %2130 = vmatprep.subr.mxu0 0.0
    %2131 = vmatpush1.msra.mxu0 0.0
    %2132 = vmatprep.subr.mxu0 0.0
    %2133 = vmatpush1.msra.mxu0 0.0
    %2134 = vmatprep.subr.mxu0 0.0
    %2135 = vmatpush1.msra.mxu0 0.0
    %2136 = vmatprep.subr.mxu0 0.0
    %2137 = vmatpush1.msra.mxu0 0.0
    %2138 = vmatprep.subr.mxu0 0.0
    %2139 = vmatpush1.msra.mxu0 0.0
    %2140 = vmatprep.subr.mxu0 0.0
    %2141 = vmatpush1.msra.mxu0 0.0
    %2142 = vmatprep.subr.mxu0 0.0
    %2143 = vmatpush1.msra.mxu0 0.0
    %2144 = vmatprep.subr.mxu0 0.0
    %2145 = vmatpush1.msra.mxu0 0.0
    %2146 = vmatprep.mubr.f32.mxu0 0.0
    %2147 = vmatmul.mubr.f32.gmra.mrb[0].mxu0 %v1904
    %v2148 = vpop.f32.mrb[0].mxu0
    %v2149 = vadd.f32 0.0, %v2148
    %v2150 = vpop.f32.mrb[0].mxu0
    %v2151 = vadd.f32 0.0, %v2150
    %2152 = vdwg.mxu0
    %2153 = vmatprep.subr.mxu0 %v63
    %2154 = vmatpush1.msra.mxu0 %v62
    %2155 = vmatprep.subr.mxu0 %v67
    %2156 = vmatpush1.msra.mxu0 %v66
    %2157 = vmatprep.subr.mxu0 %v71
    %2158 = vmatpush1.msra.mxu0 %v70
    %2159 = vmatprep.subr.mxu0 %v75
    %2160 = vmatpush1.msra.mxu0 %v74
    %2161 = vmatprep.subr.mxu0 %v79
    %2162 = vmatpush1.msra.mxu0 %v78
    %2163 = vmatprep.subr.mxu0 %v83
    %2164 = vmatpush1.msra.mxu0 %v82
    %2165 = vmatprep.subr.mxu0 %v87
    %2166 = vmatpush1.msra.mxu0 %v86
    %2167 = vmatprep.subr.mxu0 %v91
    %2168 = vmatpush1.msra.mxu0 %v90
    %2169 = vmatprep.subr.mxu0 %v95
    %2170 = vmatpush1.msra.mxu0 %v94
    %2171 = vmatprep.subr.mxu0 %v99
    %2172 = vmatpush1.msra.mxu0 %v98
    %2173 = vmatprep.subr.mxu0 %v103
    %2174 = vmatpush1.msra.mxu0 %v102
    %2175 = vmatprep.subr.mxu0 %v107
    %2176 = vmatpush1.msra.mxu0 %v106
    %2177 = vmatprep.subr.mxu0 %v111
    %2178 = vmatpush1.msra.mxu0 %v110
    %2179 = vmatprep.subr.mxu0 %v115
    %2180 = vmatpush1.msra.mxu0 %v114
    %2181 = vmatprep.subr.mxu0 %v119
    %2182 = vmatpush1.msra.mxu0 %v118
    %2183 = vmatprep.subr.mxu0 %v123
    %2184 = vmatpush1.msra.mxu0 %v122
    %2185 = vmatprep.subr.mxu0 0.0
    %2186 = vmatpush1.msra.mxu0 0.0
    %2187 = vmatprep.subr.mxu0 0.0
    %2188 = vmatpush1.msra.mxu0 0.0
    %2189 = vmatprep.subr.mxu0 0.0
    %2190 = vmatpush1.msra.mxu0 0.0
    %2191 = vmatprep.subr.mxu0 0.0
    %2192 = vmatpush1.msra.mxu0 0.0
    %2193 = vmatprep.subr.mxu0 0.0
    %2194 = vmatpush1.msra.mxu0 0.0
    %2195 = vmatprep.subr.mxu0 0.0
    %2196 = vmatpush1.msra.mxu0 0.0
    %2197 = vmatprep.subr.mxu0 0.0
    %2198 = vmatpush1.msra.mxu0 0.0
    %2199 = vmatprep.subr.mxu0 0.0
    %2200 = vmatpush1.msra.mxu0 0.0
    %2201 = vmatprep.subr.mxu0 0.0
    %2202 = vmatpush1.msra.mxu0 0.0
    %2203 = vmatprep.subr.mxu0 0.0
    %2204 = vmatpush1.msra.mxu0 0.0
    %2205 = vmatprep.subr.mxu0 0.0
    %2206 = vmatpush1.msra.mxu0 0.0
    %2207 = vmatprep.subr.mxu0 0.0
    %2208 = vmatpush1.msra.mxu0 0.0
    %2209 = vmatprep.subr.mxu0 0.0
    %2210 = vmatpush1.msra.mxu0 0.0
    %2211 = vmatprep.subr.mxu0 0.0
    %2212 = vmatpush1.msra.mxu0 0.0
    %2213 = vmatprep.subr.mxu0 0.0
    %2214 = vmatpush1.msra.mxu0 0.0
    %2215 = vmatprep.subr.mxu0 0.0
    %2216 = vmatpush1.msra.mxu0 0.0
    %2217 = vmatprep.mubr.f32.mxu0 0.0
    %2218 = vmatmul.mubr.f32.gmra.mrb[0].mxu0 %v1904
    %v2219 = vpop.f32.mrb[0].mxu0
    %v2220 = vadd.f32 0.0, %v2219
    %v2221 = vpop.f32.mrb[0].mxu0
    %v2222 = vadd.f32 0.0, %v2221
    %2223 = vdwg.mxu0
    %v2224 = vadd.f32 %v2078, %v2149
    %v2225 = vadd.f32 %v2079, %v2151
    %v2226 = vadd.f32 %v2080, %v2220
    %v2227 = vadd.f32 %v2081, %v2222
    %v2228 = vadd.f32 %v2224, %v435
    %v2229 = vadd.f32 %v2225, %v439
    %v2230 = vadd.f32 %v2226, %v443
    %v2231 = vadd.f32 %v2227, %v447
    %v2232 = vxor.u32 %v2228, 2147483648
    %v2233 = vmul.f32 %v2232, 1.442695
    %v2234 = vpow.pop %v2233
    %v2235 = vadd.f32 %v2234, 1.0
    %v2236 = vrcp.pop %v2235
    %v2237 = vmul.f32 1.0, %v2236
    %v2238 = vxor.u32 %v2229, 2147483648
    %v2239 = vmul.f32 %v2238, 1.442695
    %v2240 = vpow.pop %v2239
    %v2241 = vadd.f32 %v2240, 1.0
    %v2242 = vrcp.pop %v2241
    %v2243 = vmul.f32 1.0, %v2242
    %v2244 = vtanh.pop %v2230
    %v2245 = vxor.u32 %v2231, 2147483648
    %v2246 = vmul.f32 %v2245, 1.442695
    %v2247 = vpow.pop %v2246
    %v2248 = vadd.f32 %v2247, 1.0
    %v2249 = vrcp.pop %v2248
    %v2250 = vmul.f32 1.0, %v2249
    %v2251 = vmul.f32 %v2243, %v1902
    %v2252 = vmul.f32 %v2237, %v2244
    %v2253 = vadd.f32 %v2251, %v2252
    %v2254 = vtanh.pop %v2253
    %v2255 = vmul.f32 %v2250, %v2254
    %2256 = vmatprep.subr.mxu0 %v126
    %2257 = vmatpush1.msra.mxu0 %v125
    %2258 = vmatprep.subr.mxu0 %v130
    %2259 = vmatpush1.msra.mxu0 %v129
    %2260 = vmatprep.subr.mxu0 %v134
    %2261 = vmatpush1.msra.mxu0 %v133
    %2262 = vmatprep.subr.mxu0 %v138
    %2263 = vmatpush1.msra.mxu0 %v137
    %2264 = vmatprep.subr.mxu0 %v142
    %2265 = vmatpush1.msra.mxu0 %v141
    %2266 = vmatprep.subr.mxu0 %v146
    %2267 = vmatpush1.msra.mxu0 %v145
    %2268 = vmatprep.subr.mxu0 %v150
    %2269 = vmatpush1.msra.mxu0 %v149
    %2270 = vmatprep.subr.mxu0 %v154
    %2271 = vmatpush1.msra.mxu0 %v153
    %2272 = vmatprep.subr.mxu0 %v158
    %2273 = vmatpush1.msra.mxu0 %v157
    %2274 = vmatprep.subr.mxu0 %v162
    %2275 = vmatpush1.msra.mxu0 %v161
    %2276 = vmatprep.subr.mxu0 %v166
    %2277 = vmatpush1.msra.mxu0 %v165
    %2278 = vmatprep.subr.mxu0 %v170
    %2279 = vmatpush1.msra.mxu0 %v169
    %2280 = vmatprep.subr.mxu0 %v174
    %2281 = vmatpush1.msra.mxu0 %v173
    %2282 = vmatprep.subr.mxu0 %v178
    %2283 = vmatpush1.msra.mxu0 %v177
    %2284 = vmatprep.subr.mxu0 %v182
    %2285 = vmatpush1.msra.mxu0 %v181
    %2286 = vmatprep.subr.mxu0 %v186
    %2287 = vmatpush1.msra.mxu0 %v185
    %2288 = vmatprep.subr.mxu0 %v190
    %2289 = vmatpush1.msra.mxu0 %v189
    %2290 = vmatprep.subr.mxu0 %v194
    %2291 = vmatpush1.msra.mxu0 %v193
    %2292 = vmatprep.subr.mxu0 %v198
    %2293 = vmatpush1.msra.mxu0 %v197
    %2294 = vmatprep.subr.mxu0 %v202
    %2295 = vmatpush1.msra.mxu0 %v201
    %2296 = vmatprep.subr.mxu0 %v206
    %2297 = vmatpush1.msra.mxu0 %v205
    %2298 = vmatprep.subr.mxu0 %v210
    %2299 = vmatpush1.msra.mxu0 %v209
    %2300 = vmatprep.subr.mxu0 %v214
    %2301 = vmatpush1.msra.mxu0 %v213
    %2302 = vmatprep.subr.mxu0 %v218
    %2303 = vmatpush1.msra.mxu0 %v217
    %2304 = vmatprep.subr.mxu0 %v222
    %2305 = vmatpush1.msra.mxu0 %v221
    %2306 = vmatprep.subr.mxu0 %v226
    %2307 = vmatpush1.msra.mxu0 %v225
    %2308 = vmatprep.subr.mxu0 %v230
    %2309 = vmatpush1.msra.mxu0 %v229
    %2310 = vmatprep.subr.mxu0 %v234
    %2311 = vmatpush1.msra.mxu0 %v233
    %2312 = vmatprep.subr.mxu0 %v238
    %2313 = vmatpush1.msra.mxu0 %v237
    %2314 = vmatprep.subr.mxu0 %v242
    %2315 = vmatpush1.msra.mxu0 %v241
    %2316 = vmatprep.subr.mxu0 %v246
    %2317 = vmatpush1.msra.mxu0 %v245
    %2318 = vmatprep.subr.mxu0 %v250
    %2319 = vmatpush1.msra.mxu0 %v249
    %2320 = vmatprep.mubr.f32.mxu0 %v2070
    %2321 = vmatmul.mubr.f32.gmra.mrb[0].mxu0 %v2255
    %v2322 = vpop.f32.mrb[0].mxu0
    %v2323 = vadd.f32 %v484, %v2322
    %v2324 = vpop.f32.mrb[0].mxu0
    %v2325 = vadd.f32 %v488, %v2324
    %2326 = vdwg.mxu0
    %2327 = vmatprep.subr.mxu0 %v128
    %2328 = vmatpush1.msra.mxu0 %v127
    %2329 = vmatprep.subr.mxu0 %v132
    %2330 = vmatpush1.msra.mxu0 %v131
    %2331 = vmatprep.subr.mxu0 %v136
    %2332 = vmatpush1.msra.mxu0 %v135
    %2333 = vmatprep.subr.mxu0 %v140
    %2334 = vmatpush1.msra.mxu0 %v139
    %2335 = vmatprep.subr.mxu0 %v144
    %2336 = vmatpush1.msra.mxu0 %v143
    %2337 = vmatprep.subr.mxu0 %v148
    %2338 = vmatpush1.msra.mxu0 %v147
    %2339 = vmatprep.subr.mxu0 %v152
    %2340 = vmatpush1.msra.mxu0 %v151
    %2341 = vmatprep.subr.mxu0 %v156
    %2342 = vmatpush1.msra.mxu0 %v155
    %2343 = vmatprep.subr.mxu0 %v160
    %2344 = vmatpush1.msra.mxu0 %v159
    %2345 = vmatprep.subr.mxu0 %v164
    %2346 = vmatpush1.msra.mxu0 %v163
    %2347 = vmatprep.subr.mxu0 %v168
    %2348 = vmatpush1.msra.mxu0 %v167
    %2349 = vmatprep.subr.mxu0 %v172
    %2350 = vmatpush1.msra.mxu0 %v171
    %2351 = vmatprep.subr.mxu0 %v176
    %2352 = vmatpush1.msra.mxu0 %v175
    %2353 = vmatprep.subr.mxu0 %v180
    %2354 = vmatpush1.msra.mxu0 %v179
    %2355 = vmatprep.subr.mxu0 %v184
    %2356 = vmatpush1.msra.mxu0 %v183
    %2357 = vmatprep.subr.mxu0 %v188
    %2358 = vmatpush1.msra.mxu0 %v187
    %2359 = vmatprep.subr.mxu0 %v192
    %2360 = vmatpush1.msra.mxu0 %v191
    %2361 = vmatprep.subr.mxu0 %v196
    %2362 = vmatpush1.msra.mxu0 %v195
    %2363 = vmatprep.subr.mxu0 %v200
    %2364 = vmatpush1.msra.mxu0 %v199
    %2365 = vmatprep.subr.mxu0 %v204
    %2366 = vmatpush1.msra.mxu0 %v203
    %2367 = vmatprep.subr.mxu0 %v208
    %2368 = vmatpush1.msra.mxu0 %v207
    %2369 = vmatprep.subr.mxu0 %v212
    %2370 = vmatpush1.msra.mxu0 %v211
    %2371 = vmatprep.subr.mxu0 %v216
    %2372 = vmatpush1.msra.mxu0 %v215
    %2373 = vmatprep.subr.mxu0 %v220
    %2374 = vmatpush1.msra.mxu0 %v219
    %2375 = vmatprep.subr.mxu0 %v224
    %2376 = vmatpush1.msra.mxu0 %v223
    %2377 = vmatprep.subr.mxu0 %v228
    %2378 = vmatpush1.msra.mxu0 %v227
    %2379 = vmatprep.subr.mxu0 %v232
    %2380 = vmatpush1.msra.mxu0 %v231
    %2381 = vmatprep.subr.mxu0 %v236
    %2382 = vmatpush1.msra.mxu0 %v235
    %2383 = vmatprep.subr.mxu0 %v240
    %2384 = vmatpush1.msra.mxu0 %v239
    %2385 = vmatprep.subr.mxu0 %v244
    %2386 = vmatpush1.msra.mxu0 %v243
    %2387 = vmatprep.subr.mxu0 %v248
    %2388 = vmatpush1.msra.mxu0 %v247
    %2389 = vmatprep.subr.mxu0 %v252
    %2390 = vmatpush1.msra.mxu0 %v251
    %2391 = vmatprep.mubr.f32.mxu0 %v2070
    %2392 = vmatmul.mubr.f32.gmra.mrb[0].mxu0 %v2255
    %v2393 = vpop.f32.mrb[0].mxu0
    %v2394 = vadd.f32 %v492, %v2393
    %v2395 = vpop.f32.mrb[0].mxu0
    %v2396 = vadd.f32 %v496, %v2395
    %2397 = vdwg.mxu0
    %v2398 = vxor.u32 %v2323, 2147483648
    %v2399 = vmul.f32 %v2398, 1.442695
    %v2400 = vpow.pop %v2399
    %v2401 = vadd.f32 %v2400, 1.0
    %v2402 = vrcp.pop %v2401
    %v2403 = vmul.f32 1.0, %v2402
    %v2404 = vxor.u32 %v2325, 2147483648
    %v2405 = vmul.f32 %v2404, 1.442695
    %v2406 = vpow.pop %v2405
    %v2407 = vadd.f32 %v2406, 1.0
    %v2408 = vrcp.pop %v2407
    %v2409 = vmul.f32 1.0, %v2408
    %v2410 = vtanh.pop %v2394
    %v2411 = vxor.u32 %v2396, 2147483648
    %v2412 = vmul.f32 %v2411, 1.442695
    %v2413 = vpow.pop %v2412
    %v2414 = vadd.f32 %v2413, 1.0
    %v2415 = vrcp.pop %v2414
    %v2416 = vmul.f32 1.0, %v2415
    %v2417 = vmul.f32 %v2409, %v2068
    %v2418 = vmul.f32 %v2403, %v2410
    %v2419 = vadd.f32 %v2417, %v2418
    %v2420 = vtanh.pop %v2419
    %v2421 = vmul.f32 %v2416, %v2420
    %s2422 = scalar_lea.vmem %s0, 48
    %v2423 = vld [vmem:[%s2422] sm:$0xff]
    %2425 = vset.pattern.permute.xlu0 0
    %2426 = vperm.xlu0 %2425, %v2423
    %v2427 = vpop.permute.xlu0 %2426
    %v2429 = vmul.f32 %v2427, %v264
    %v2430 = vmul.f32 %v2427, %v268
    %v2431 = vmul.f32 %v2427, %v272
    %v2432 = vmul.f32 %v2427, %v276
    %2433 = vmatprep.subr.mxu0 %v61
    %2434 = vmatpush1.msra.mxu0 %v60
    %2435 = vmatprep.subr.mxu0 %v65
    %2436 = vmatpush1.msra.mxu0 %v64
    %2437 = vmatprep.subr.mxu0 %v69
    %2438 = vmatpush1.msra.mxu0 %v68
    %2439 = vmatprep.subr.mxu0 %v73
    %2440 = vmatpush1.msra.mxu0 %v72
    %2441 = vmatprep.subr.mxu0 %v77
    %2442 = vmatpush1.msra.mxu0 %v76
    %2443 = vmatprep.subr.mxu0 %v81
    %2444 = vmatpush1.msra.mxu0 %v80
    %2445 = vmatprep.subr.mxu0 %v85
    %2446 = vmatpush1.msra.mxu0 %v84
    %2447 = vmatprep.subr.mxu0 %v89
    %2448 = vmatpush1.msra.mxu0 %v88
    %2449 = vmatprep.subr.mxu0 %v93
    %2450 = vmatpush1.msra.mxu0 %v92
    %2451 = vmatprep.subr.mxu0 %v97
    %2452 = vmatpush1.msra.mxu0 %v96
    %2453 = vmatprep.subr.mxu0 %v101
    %2454 = vmatpush1.msra.mxu0 %v100
    %2455 = vmatprep.subr.mxu0 %v105
    %2456 = vmatpush1.msra.mxu0 %v104
    %2457 = vmatprep.subr.mxu0 %v109
    %2458 = vmatpush1.msra.mxu0 %v108
    %2459 = vmatprep.subr.mxu0 %v113
    %2460 = vmatpush1.msra.mxu0 %v112
    %2461 = vmatprep.subr.mxu0 %v117
    %2462 = vmatpush1.msra.mxu0 %v116
    %2463 = vmatprep.subr.mxu0 %v121
    %2464 = vmatpush1.msra.mxu0 %v120
    %2465 = vmatprep.subr.mxu0 0.0
    %2466 = vmatpush1.msra.mxu0 0.0
    %2467 = vmatprep.subr.mxu0 0.0
    %2468 = vmatpush1.msra.mxu0 0.0
    %2469 = vmatprep.subr.mxu0 0.0
    %2470 = vmatpush1.msra.mxu0 0.0
    %2471 = vmatprep.subr.mxu0 0.0
    %2472 = vmatpush1.msra.mxu0 0.0
    %2473 = vmatprep.subr.mxu0 0.0
    %2474 = vmatpush1.msra.mxu0 0.0
    %2475 = vmatprep.subr.mxu0 0.0
    %2476 = vmatpush1.msra.mxu0 0.0
    %2477 = vmatprep.subr.mxu0 0.0
    %2478 = vmatpush1.msra.mxu0 0.0
    %2479 = vmatprep.subr.mxu0 0.0
    %2480 = vmatpush1.msra.mxu0 0.0
    %2481 = vmatprep.subr.mxu0 0.0
    %2482 = vmatpush1.msra.mxu0 0.0
    %2483 = vmatprep.subr.mxu0 0.0
    %2484 = vmatpush1.msra.mxu0 0.0
    %2485 = vmatprep.subr.mxu0 0.0
    %2486 = vmatpush1.msra.mxu0 0.0
    %2487 = vmatprep.subr.mxu0 0.0
    %2488 = vmatpush1.msra.mxu0 0.0
    %2489 = vmatprep.subr.mxu0 0.0
    %2490 = vmatpush1.msra.mxu0 0.0
    %2491 = vmatprep.subr.mxu0 0.0
    %2492 = vmatpush1.msra.mxu0 0.0
    %2493 = vmatprep.subr.mxu0 0.0
    %2494 = vmatpush1.msra.mxu0 0.0
    %2495 = vmatprep.subr.mxu0 0.0
    %2496 = vmatpush1.msra.mxu0 0.0
    %2497 = vmatprep.mubr.f32.mxu0 0.0
    %2498 = vmatmul.mubr.f32.gmra.mrb[0].mxu0 %v2255
    %v2499 = vpop.f32.mrb[0].mxu0
    %v2500 = vadd.f32 0.0, %v2499
    %v2501 = vpop.f32.mrb[0].mxu0
    %v2502 = vadd.f32 0.0, %v2501
    %2503 = vdwg.mxu0
    %2504 = vmatprep.subr.mxu0 %v63
    %2505 = vmatpush1.msra.mxu0 %v62
    %2506 = vmatprep.subr.mxu0 %v67
    %2507 = vmatpush1.msra.mxu0 %v66
    %2508 = vmatprep.subr.mxu0 %v71
    %2509 = vmatpush1.msra.mxu0 %v70
    %2510 = vmatprep.subr.mxu0 %v75
    %2511 = vmatpush1.msra.mxu0 %v74
    %2512 = vmatprep.subr.mxu0 %v79
    %2513 = vmatpush1.msra.mxu0 %v78
    %2514 = vmatprep.subr.mxu0 %v83
    %2515 = vmatpush1.msra.mxu0 %v82
    %2516 = vmatprep.subr.mxu0 %v87
    %2517 = vmatpush1.msra.mxu0 %v86
    %2518 = vmatprep.subr.mxu0 %v91
    %2519 = vmatpush1.msra.mxu0 %v90
    %2520 = vmatprep.subr.mxu0 %v95
    %2521 = vmatpush1.msra.mxu0 %v94
    %2522 = vmatprep.subr.mxu0 %v99
    %2523 = vmatpush1.msra.mxu0 %v98
    %2524 = vmatprep.subr.mxu0 %v103
    %2525 = vmatpush1.msra.mxu0 %v102
    %2526 = vmatprep.subr.mxu0 %v107
    %2527 = vmatpush1.msra.mxu0 %v106
    %2528 = vmatprep.subr.mxu0 %v111
    %2529 = vmatpush1.msra.mxu0 %v110
    %2530 = vmatprep.subr.mxu0 %v115
    %2531 = vmatpush1.msra.mxu0 %v114
    %2532 = vmatprep.subr.mxu0 %v119
    %2533 = vmatpush1.msra.mxu0 %v118
    %2534 = vmatprep.subr.mxu0 %v123
    %2535 = vmatpush1.msra.mxu0 %v122
    %2536 = vmatprep.subr.mxu0 0.0
    %2537 = vmatpush1.msra.mxu0 0.0
    %2538 = vmatprep.subr.mxu0 0.0
    %2539 = vmatpush1.msra.mxu0 0.0
    %2540 = vmatprep.subr.mxu0 0.0
    %2541 = vmatpush1.msra.mxu0 0.0
    %2542 = vmatprep.subr.mxu0 0.0
    %2543 = vmatpush1.msra.mxu0 0.0
    %2544 = vmatprep.subr.mxu0 0.0
    %2545 = vmatpush1.msra.mxu0 0.0
    %2546 = vmatprep.subr.mxu0 0.0
    %2547 = vmatpush1.msra.mxu0 0.0
    %2548 = vmatprep.subr.mxu0 0.0
    %2549 = vmatpush1.msra.mxu0 0.0
    %2550 = vmatprep.subr.mxu0 0.0
    %2551 = vmatpush1.msra.mxu0 0.0
    %2552 = vmatprep.subr.mxu0 0.0
    %2553 = vmatpush1.msra.mxu0 0.0
    %2554 = vmatprep.subr.mxu0 0.0
    %2555 = vmatpush1.msra.mxu0 0.0
    %2556 = vmatprep.subr.mxu0 0.0
    %2557 = vmatpush1.msra.mxu0 0.0
    %2558 = vmatprep.subr.mxu0 0.0
    %2559 = vmatpush1.msra.mxu0 0.0
    %2560 = vmatprep.subr.mxu0 0.0
    %2561 = vmatpush1.msra.mxu0 0.0
    %2562 = vmatprep.subr.mxu0 0.0
    %2563 = vmatpush1.msra.mxu0 0.0
    %2564 = vmatprep.subr.mxu0 0.0
    %2565 = vmatpush1.msra.mxu0 0.0
    %2566 = vmatprep.subr.mxu0 0.0
    %2567 = vmatpush1.msra.mxu0 0.0
    %2568 = vmatprep.mubr.f32.mxu0 0.0
    %2569 = vmatmul.mubr.f32.gmra.mrb[0].mxu0 %v2255
    %v2570 = vpop.f32.mrb[0].mxu0
    %v2571 = vadd.f32 0.0, %v2570
    %v2572 = vpop.f32.mrb[0].mxu0
    %v2573 = vadd.f32 0.0, %v2572
    %2574 = vdwg.mxu0
    %v2575 = vadd.f32 %v2429, %v2500
    %v2576 = vadd.f32 %v2430, %v2502
    %v2577 = vadd.f32 %v2431, %v2571
    %v2578 = vadd.f32 %v2432, %v2573
    %v2579 = vadd.f32 %v2575, %v435
    %v2580 = vadd.f32 %v2576, %v439
    %v2581 = vadd.f32 %v2577, %v443
    %v2582 = vadd.f32 %v2578, %v447
    %v2583 = vxor.u32 %v2579, 2147483648
    %v2584 = vmul.f32 %v2583, 1.442695
    %v2585 = vpow.pop %v2584
    %v2586 = vadd.f32 %v2585, 1.0
    %v2587 = vrcp.pop %v2586
    %v2588 = vmul.f32 1.0, %v2587
    %v2589 = vxor.u32 %v2580, 2147483648
    %v2590 = vmul.f32 %v2589, 1.442695
    %v2591 = vpow.pop %v2590
    %v2592 = vadd.f32 %v2591, 1.0
    %v2593 = vrcp.pop %v2592
    %v2594 = vmul.f32 1.0, %v2593
    %v2595 = vtanh.pop %v2581
    %v2596 = vxor.u32 %v2582, 2147483648
    %v2597 = vmul.f32 %v2596, 1.442695
    %v2598 = vpow.pop %v2597
    %v2599 = vadd.f32 %v2598, 1.0
    %v2600 = vrcp.pop %v2599
    %v2601 = vmul.f32 1.0, %v2600
    %v2602 = vmul.f32 %v2594, %v2253
    %v2603 = vmul.f32 %v2588, %v2595
    %v2604 = vadd.f32 %v2602, %v2603
    %v2605 = vtanh.pop %v2604
    %v2606 = vmul.f32 %v2601, %v2605
    %2607 = vmatprep.subr.mxu0 %v126
    %2608 = vmatpush1.msra.mxu0 %v125
    %2609 = vmatprep.subr.mxu0 %v130
    %2610 = vmatpush1.msra.mxu0 %v129
    %2611 = vmatprep.subr.mxu0 %v134
    %2612 = vmatpush1.msra.mxu0 %v133
    %2613 = vmatprep.subr.mxu0 %v138
    %2614 = vmatpush1.msra.mxu0 %v137
    %2615 = vmatprep.subr.mxu0 %v142
    %2616 = vmatpush1.msra.mxu0 %v141
    %2617 = vmatprep.subr.mxu0 %v146
    %2618 = vmatpush1.msra.mxu0 %v145
    %2619 = vmatprep.subr.mxu0 %v150
    %2620 = vmatpush1.msra.mxu0 %v149
    %2621 = vmatprep.subr.mxu0 %v154
    %2622 = vmatpush1.msra.mxu0 %v153
    %2623 = vmatprep.subr.mxu0 %v158
    %2624 = vmatpush1.msra.mxu0 %v157
    %2625 = vmatprep.subr.mxu0 %v162
    %2626 = vmatpush1.msra.mxu0 %v161
    %2627 = vmatprep.subr.mxu0 %v166
    %2628 = vmatpush1.msra.mxu0 %v165
    %2629 = vmatprep.subr.mxu0 %v170
    %2630 = vmatpush1.msra.mxu0 %v169
    %2631 = vmatprep.subr.mxu0 %v174
    %2632 = vmatpush1.msra.mxu0 %v173
    %2633 = vmatprep.subr.mxu0 %v178
    %2634 = vmatpush1.msra.mxu0 %v177
    %2635 = vmatprep.subr.mxu0 %v182
    %2636 = vmatpush1.msra.mxu0 %v181
    %2637 = vmatprep.subr.mxu0 %v186
    %2638 = vmatpush1.msra.mxu0 %v185
    %2639 = vmatprep.subr.mxu0 %v190
    %2640 = vmatpush1.msra.mxu0 %v189
    %2641 = vmatprep.subr.mxu0 %v194
    %2642 = vmatpush1.msra.mxu0 %v193
    %2643 = vmatprep.subr.mxu0 %v198
    %2644 = vmatpush1.msra.mxu0 %v197
    %2645 = vmatprep.subr.mxu0 %v202
    %2646 = vmatpush1.msra.mxu0 %v201
    %2647 = vmatprep.subr.mxu0 %v206
    %2648 = vmatpush1.msra.mxu0 %v205
    %2649 = vmatprep.subr.mxu0 %v210
    %2650 = vmatpush1.msra.mxu0 %v209
    %2651 = vmatprep.subr.mxu0 %v214
    %2652 = vmatpush1.msra.mxu0 %v213
    %2653 = vmatprep.subr.mxu0 %v218
    %2654 = vmatpush1.msra.mxu0 %v217
    %2655 = vmatprep.subr.mxu0 %v222
    %2656 = vmatpush1.msra.mxu0 %v221
    %2657 = vmatprep.subr.mxu0 %v226
    %2658 = vmatpush1.msra.mxu0 %v225
    %2659 = vmatprep.subr.mxu0 %v230
    %2660 = vmatpush1.msra.mxu0 %v229
    %2661 = vmatprep.subr.mxu0 %v234
    %2662 = vmatpush1.msra.mxu0 %v233
    %2663 = vmatprep.subr.mxu0 %v238
    %2664 = vmatpush1.msra.mxu0 %v237
    %2665 = vmatprep.subr.mxu0 %v242
    %2666 = vmatpush1.msra.mxu0 %v241
    %2667 = vmatprep.subr.mxu0 %v246
    %2668 = vmatpush1.msra.mxu0 %v245
    %2669 = vmatprep.subr.mxu0 %v250
    %2670 = vmatpush1.msra.mxu0 %v249
    %2671 = vmatprep.mubr.f32.mxu0 %v2421
    %2672 = vmatmul.mubr.f32.gmra.mrb[0].mxu0 %v2606
    %v2673 = vpop.f32.mrb[0].mxu0
    %v2674 = vadd.f32 %v484, %v2673
    %v2675 = vpop.f32.mrb[0].mxu0
    %v2676 = vadd.f32 %v488, %v2675
    %2677 = vdwg.mxu0
    %2678 = vmatprep.subr.mxu0 %v128
    %2679 = vmatpush1.msra.mxu0 %v127
    %2680 = vmatprep.subr.mxu0 %v132
    %2681 = vmatpush1.msra.mxu0 %v131
    %2682 = vmatprep.subr.mxu0 %v136
    %2683 = vmatpush1.msra.mxu0 %v135
    %2684 = vmatprep.subr.mxu0 %v140
    %2685 = vmatpush1.msra.mxu0 %v139
    %2686 = vmatprep.subr.mxu0 %v144
    %2687 = vmatpush1.msra.mxu0 %v143
    %2688 = vmatprep.subr.mxu0 %v148
    %2689 = vmatpush1.msra.mxu0 %v147
    %2690 = vmatprep.subr.mxu0 %v152
    %2691 = vmatpush1.msra.mxu0 %v151
    %2692 = vmatprep.subr.mxu0 %v156
    %2693 = vmatpush1.msra.mxu0 %v155
    %2694 = vmatprep.subr.mxu0 %v160
    %2695 = vmatpush1.msra.mxu0 %v159
    %2696 = vmatprep.subr.mxu0 %v164
    %2697 = vmatpush1.msra.mxu0 %v163
    %2698 = vmatprep.subr.mxu0 %v168
    %2699 = vmatpush1.msra.mxu0 %v167
    %2700 = vmatprep.subr.mxu0 %v172
    %2701 = vmatpush1.msra.mxu0 %v171
    %2702 = vmatprep.subr.mxu0 %v176
    %2703 = vmatpush1.msra.mxu0 %v175
    %2704 = vmatprep.subr.mxu0 %v180
    %2705 = vmatpush1.msra.mxu0 %v179
    %2706 = vmatprep.subr.mxu0 %v184
    %2707 = vmatpush1.msra.mxu0 %v183
    %2708 = vmatprep.subr.mxu0 %v188
    %2709 = vmatpush1.msra.mxu0 %v187
    %2710 = vmatprep.subr.mxu0 %v192
    %2711 = vmatpush1.msra.mxu0 %v191
    %2712 = vmatprep.subr.mxu0 %v196
    %2713 = vmatpush1.msra.mxu0 %v195
    %2714 = vmatprep.subr.mxu0 %v200
    %2715 = vmatpush1.msra.mxu0 %v199
    %2716 = vmatprep.subr.mxu0 %v204
    %2717 = vmatpush1.msra.mxu0 %v203
    %2718 = vmatprep.subr.mxu0 %v208
    %2719 = vmatpush1.msra.mxu0 %v207
    %2720 = vmatprep.subr.mxu0 %v212
    %2721 = vmatpush1.msra.mxu0 %v211
    %2722 = vmatprep.subr.mxu0 %v216
    %2723 = vmatpush1.msra.mxu0 %v215
    %2724 = vmatprep.subr.mxu0 %v220
    %2725 = vmatpush1.msra.mxu0 %v219
    %2726 = vmatprep.subr.mxu0 %v224
    %2727 = vmatpush1.msra.mxu0 %v223
    %2728 = vmatprep.subr.mxu0 %v228
    %2729 = vmatpush1.msra.mxu0 %v227
    %2730 = vmatprep.subr.mxu0 %v232
    %2731 = vmatpush1.msra.mxu0 %v231
    %2732 = vmatprep.subr.mxu0 %v236
    %2733 = vmatpush1.msra.mxu0 %v235
    %2734 = vmatprep.subr.mxu0 %v240
    %2735 = vmatpush1.msra.mxu0 %v239
    %2736 = vmatprep.subr.mxu0 %v244
    %2737 = vmatpush1.msra.mxu0 %v243
    %2738 = vmatprep.subr.mxu0 %v248
    %2739 = vmatpush1.msra.mxu0 %v247
    %2740 = vmatprep.subr.mxu0 %v252
    %2741 = vmatpush1.msra.mxu0 %v251
    %2742 = vmatprep.mubr.f32.mxu0 %v2421
    %2743 = vmatmul.mubr.f32.gmra.mrb[0].mxu0 %v2606
    %v2744 = vpop.f32.mrb[0].mxu0
    %v2745 = vadd.f32 %v492, %v2744
    %v2746 = vpop.f32.mrb[0].mxu0
    %v2747 = vadd.f32 %v496, %v2746
    %2748 = vdwg.mxu0
    %v2749 = vxor.u32 %v2674, 2147483648
    %v2750 = vmul.f32 %v2749, 1.442695
    %v2751 = vpow.pop %v2750
    %v2752 = vadd.f32 %v2751, 1.0
    %v2753 = vrcp.pop %v2752
    %v2754 = vmul.f32 1.0, %v2753
    %v2755 = vxor.u32 %v2676, 2147483648
    %v2756 = vmul.f32 %v2755, 1.442695
    %v2757 = vpow.pop %v2756
    %v2758 = vadd.f32 %v2757, 1.0
    %v2759 = vrcp.pop %v2758
    %v2760 = vmul.f32 1.0, %v2759
    %v2761 = vtanh.pop %v2745
    %v2762 = vxor.u32 %v2747, 2147483648
    %v2763 = vmul.f32 %v2762, 1.442695
    %v2764 = vpow.pop %v2763
    %v2765 = vadd.f32 %v2764, 1.0
    %v2766 = vrcp.pop %v2765
    %v2767 = vmul.f32 1.0, %v2766
    %v2768 = vmul.f32 %v2760, %v2419
    %v2769 = vmul.f32 %v2754, %v2761
    %v2770 = vadd.f32 %v2768, %v2769
    %v2771 = vtanh.pop %v2770
    %v2772 = vmul.f32 %v2767, %v2771
    %s2773 = scalar_lea.vmem %s0, 56
    %v2774 = vld [vmem:[%s2773] sm:$0xff]
    %2776 = vset.pattern.permute.xlu0 0
    %2777 = vperm.xlu0 %2776, %v2774
    %v2778 = vpop.permute.xlu0 %2777
    %v2780 = vmul.f32 %v2778, %v264
    %v2781 = vmul.f32 %v2778, %v268
    %v2782 = vmul.f32 %v2778, %v272
    %v2783 = vmul.f32 %v2778, %v276
    %2784 = vmatprep.subr.mxu0 %v61
    %2785 = vmatpush1.msra.mxu0 %v60
    %2786 = vmatprep.subr.mxu0 %v65
    %2787 = vmatpush1.msra.mxu0 %v64
    %2788 = vmatprep.subr.mxu0 %v69
    %2789 = vmatpush1.msra.mxu0 %v68
    %2790 = vmatprep.subr.mxu0 %v73
    %2791 = vmatpush1.msra.mxu0 %v72
    %2792 = vmatprep.subr.mxu0 %v77
    %2793 = vmatpush1.msra.mxu0 %v76
    %2794 = vmatprep.subr.mxu0 %v81
    %2795 = vmatpush1.msra.mxu0 %v80
    %2796 = vmatprep.subr.mxu0 %v85
    %2797 = vmatpush1.msra.mxu0 %v84
    %2798 = vmatprep.subr.mxu0 %v89
    %2799 = vmatpush1.msra.mxu0 %v88
    %2800 = vmatprep.subr.mxu0 %v93
    %2801 = vmatpush1.msra.mxu0 %v92
    %2802 = vmatprep.subr.mxu0 %v97
    %2803 = vmatpush1.msra.mxu0 %v96
    %2804 = vmatprep.subr.mxu0 %v101
    %2805 = vmatpush1.msra.mxu0 %v100
    %2806 = vmatprep.subr.mxu0 %v105
    %2807 = vmatpush1.msra.mxu0 %v104
    %2808 = vmatprep.subr.mxu0 %v109
    %2809 = vmatpush1.msra.mxu0 %v108
    %2810 = vmatprep.subr.mxu0 %v113
    %2811 = vmatpush1.msra.mxu0 %v112
    %2812 = vmatprep.subr.mxu0 %v117
    %2813 = vmatpush1.msra.mxu0 %v116
    %2814 = vmatprep.subr.mxu0 %v121
    %2815 = vmatpush1.msra.mxu0 %v120
    %2816 = vmatprep.subr.mxu0 0.0
    %2817 = vmatpush1.msra.mxu0 0.0
    %2818 = vmatprep.subr.mxu0 0.0
    %2819 = vmatpush1.msra.mxu0 0.0
    %2820 = vmatprep.subr.mxu0 0.0
    %2821 = vmatpush1.msra.mxu0 0.0
    %2822 = vmatprep.subr.mxu0 0.0
    %2823 = vmatpush1.msra.mxu0 0.0
    %2824 = vmatprep.subr.mxu0 0.0
    %2825 = vmatpush1.msra.mxu0 0.0
    %2826 = vmatprep.subr.mxu0 0.0
    %2827 = vmatpush1.msra.mxu0 0.0
    %2828 = vmatprep.subr.mxu0 0.0
    %2829 = vmatpush1.msra.mxu0 0.0
    %2830 = vmatprep.subr.mxu0 0.0
    %2831 = vmatpush1.msra.mxu0 0.0
    %2832 = vmatprep.subr.mxu0 0.0
    %2833 = vmatpush1.msra.mxu0 0.0
    %2834 = vmatprep.subr.mxu0 0.0
    %2835 = vmatpush1.msra.mxu0 0.0
    %2836 = vmatprep.subr.mxu0 0.0
    %2837 = vmatpush1.msra.mxu0 0.0
    %2838 = vmatprep.subr.mxu0 0.0
    %2839 = vmatpush1.msra.mxu0 0.0
    %2840 = vmatprep.subr.mxu0 0.0
    %2841 = vmatpush1.msra.mxu0 0.0
    %2842 = vmatprep.subr.mxu0 0.0
    %2843 = vmatpush1.msra.mxu0 0.0
    %2844 = vmatprep.subr.mxu0 0.0
    %2845 = vmatpush1.msra.mxu0 0.0
    %2846 = vmatprep.subr.mxu0 0.0
    %2847 = vmatpush1.msra.mxu0 0.0
    %2848 = vmatprep.mubr.f32.mxu0 0.0
    %2849 = vmatmul.mubr.f32.gmra.mrb[0].mxu0 %v2606
    %v2850 = vpop.f32.mrb[0].mxu0
    %v2851 = vadd.f32 0.0, %v2850
    %v2852 = vpop.f32.mrb[0].mxu0
    %v2853 = vadd.f32 0.0, %v2852
    %2854 = vdwg.mxu0
    %2855 = vmatprep.subr.mxu0 %v63
    %2856 = vmatpush1.msra.mxu0 %v62
    %2857 = vmatprep.subr.mxu0 %v67
    %2858 = vmatpush1.msra.mxu0 %v66
    %2859 = vmatprep.subr.mxu0 %v71
    %2860 = vmatpush1.msra.mxu0 %v70
    %2861 = vmatprep.subr.mxu0 %v75
    %2862 = vmatpush1.msra.mxu0 %v74
    %2863 = vmatprep.subr.mxu0 %v79
    %2864 = vmatpush1.msra.mxu0 %v78
    %2865 = vmatprep.subr.mxu0 %v83
    %2866 = vmatpush1.msra.mxu0 %v82
    %2867 = vmatprep.subr.mxu0 %v87
    %2868 = vmatpush1.msra.mxu0 %v86
    %2869 = vmatprep.subr.mxu0 %v91
    %2870 = vmatpush1.msra.mxu0 %v90
    %2871 = vmatprep.subr.mxu0 %v95
    %2872 = vmatpush1.msra.mxu0 %v94
    %2873 = vmatprep.subr.mxu0 %v99
    %2874 = vmatpush1.msra.mxu0 %v98
    %2875 = vmatprep.subr.mxu0 %v103
    %2876 = vmatpush1.msra.mxu0 %v102
    %2877 = vmatprep.subr.mxu0 %v107
    %2878 = vmatpush1.msra.mxu0 %v106
    %2879 = vmatprep.subr.mxu0 %v111
    %2880 = vmatpush1.msra.mxu0 %v110
    %2881 = vmatprep.subr.mxu0 %v115
    %2882 = vmatpush1.msra.mxu0 %v114
    %2883 = vmatprep.subr.mxu0 %v119
    %2884 = vmatpush1.msra.mxu0 %v118
    %2885 = vmatprep.subr.mxu0 %v123
    %2886 = vmatpush1.msra.mxu0 %v122
    %2887 = vmatprep.subr.mxu0 0.0
    %2888 = vmatpush1.msra.mxu0 0.0
    %2889 = vmatprep.subr.mxu0 0.0
    %2890 = vmatpush1.msra.mxu0 0.0
    %2891 = vmatprep.subr.mxu0 0.0
    %2892 = vmatpush1.msra.mxu0 0.0
    %2893 = vmatprep.subr.mxu0 0.0
    %2894 = vmatpush1.msra.mxu0 0.0
    %2895 = vmatprep.subr.mxu0 0.0
    %2896 = vmatpush1.msra.mxu0 0.0
    %2897 = vmatprep.subr.mxu0 0.0
    %2898 = vmatpush1.msra.mxu0 0.0
    %2899 = vmatprep.subr.mxu0 0.0
    %2900 = vmatpush1.msra.mxu0 0.0
    %2901 = vmatprep.subr.mxu0 0.0
    %2902 = vmatpush1.msra.mxu0 0.0
    %2903 = vmatprep.subr.mxu0 0.0
    %2904 = vmatpush1.msra.mxu0 0.0
    %2905 = vmatprep.subr.mxu0 0.0
    %2906 = vmatpush1.msra.mxu0 0.0
    %2907 = vmatprep.subr.mxu0 0.0
    %2908 = vmatpush1.msra.mxu0 0.0
    %2909 = vmatprep.subr.mxu0 0.0
    %2910 = vmatpush1.msra.mxu0 0.0
    %2911 = vmatprep.subr.mxu0 0.0
    %2912 = vmatpush1.msra.mxu0 0.0
    %2913 = vmatprep.subr.mxu0 0.0
    %2914 = vmatpush1.msra.mxu0 0.0
    %2915 = vmatprep.subr.mxu0 0.0
    %2916 = vmatpush1.msra.mxu0 0.0
    %2917 = vmatprep.subr.mxu0 0.0
    %2918 = vmatpush1.msra.mxu0 0.0
    %2919 = vmatprep.mubr.f32.mxu0 0.0
    %2920 = vmatmul.mubr.f32.gmra.mrb[0].mxu0 %v2606
    %v2921 = vpop.f32.mrb[0].mxu0
    %v2922 = vadd.f32 0.0, %v2921
    %v2923 = vpop.f32.mrb[0].mxu0
    %v2924 = vadd.f32 0.0, %v2923
    %2925 = vdwg.mxu0
    %v2926 = vadd.f32 %v2780, %v2851
    %v2927 = vadd.f32 %v2781, %v2853
    %v2928 = vadd.f32 %v2782, %v2922
    %v2929 = vadd.f32 %v2783, %v2924
    %v2930 = vadd.f32 %v2926, %v435
    %v2931 = vadd.f32 %v2927, %v439
    %v2932 = vadd.f32 %v2928, %v443
    %v2933 = vadd.f32 %v2929, %v447
    %v2934 = vxor.u32 %v2930, 2147483648
    %v2935 = vmul.f32 %v2934, 1.442695
    %v2936 = vpow.pop %v2935
    %v2937 = vadd.f32 %v2936, 1.0
    %v2938 = vrcp.pop %v2937
    %v2939 = vmul.f32 1.0, %v2938
    %v2940 = vxor.u32 %v2931, 2147483648
    %v2941 = vmul.f32 %v2940, 1.442695
    %v2942 = vpow.pop %v2941
    %v2943 = vadd.f32 %v2942, 1.0
    %v2944 = vrcp.pop %v2943
    %v2945 = vmul.f32 1.0, %v2944
    %v2946 = vtanh.pop %v2932
    %v2947 = vxor.u32 %v2933, 2147483648
    %v2948 = vmul.f32 %v2947, 1.442695
    %v2949 = vpow.pop %v2948
    %v2950 = vadd.f32 %v2949, 1.0
    %v2951 = vrcp.pop %v2950
    %v2952 = vmul.f32 1.0, %v2951
    %v2953 = vmul.f32 %v2945, %v2604
    %v2954 = vmul.f32 %v2939, %v2946
    %v2955 = vadd.f32 %v2953, %v2954
    %v2956 = vtanh.pop %v2955
    %v2957 = vmul.f32 %v2952, %v2956
    %2958 = vmatprep.subr.mxu0 %v126
    %2959 = vmatpush1.msra.mxu0 %v125
    %2960 = vmatprep.subr.mxu0 %v130
    %2961 = vmatpush1.msra.mxu0 %v129
    %2962 = vmatprep.subr.mxu0 %v134
    %2963 = vmatpush1.msra.mxu0 %v133
    %2964 = vmatprep.subr.mxu0 %v138
    %2965 = vmatpush1.msra.mxu0 %v137
    %2966 = vmatprep.subr.mxu0 %v142
    %2967 = vmatpush1.msra.mxu0 %v141
    %2968 = vmatprep.subr.mxu0 %v146
    %2969 = vmatpush1.msra.mxu0 %v145
    %2970 = vmatprep.subr.mxu0 %v150
    %2971 = vmatpush1.msra.mxu0 %v149
    %2972 = vmatprep.subr.mxu0 %v154
    %2973 = vmatpush1.msra.mxu0 %v153
    %2974 = vmatprep.subr.mxu0 %v158
    %2975 = vmatpush1.msra.mxu0 %v157
    %2976 = vmatprep.subr.mxu0 %v162
    %2977 = vmatpush1.msra.mxu0 %v161
    %2978 = vmatprep.subr.mxu0 %v166
    %2979 = vmatpush1.msra.mxu0 %v165
    %2980 = vmatprep.subr.mxu0 %v170
    %2981 = vmatpush1.msra.mxu0 %v169
    %2982 = vmatprep.subr.mxu0 %v174
    %2983 = vmatpush1.msra.mxu0 %v173
    %2984 = vmatprep.subr.mxu0 %v178
    %2985 = vmatpush1.msra.mxu0 %v177
    %2986 = vmatprep.subr.mxu0 %v182
    %2987 = vmatpush1.msra.mxu0 %v181
    %2988 = vmatprep.subr.mxu0 %v186
    %2989 = vmatpush1.msra.mxu0 %v185
    %2990 = vmatprep.subr.mxu0 %v190
    %2991 = vmatpush1.msra.mxu0 %v189
    %2992 = vmatprep.subr.mxu0 %v194
    %2993 = vmatpush1.msra.mxu0 %v193
    %2994 = vmatprep.subr.mxu0 %v198
    %2995 = vmatpush1.msra.mxu0 %v197
    %2996 = vmatprep.subr.mxu0 %v202
    %2997 = vmatpush1.msra.mxu0 %v201
    %2998 = vmatprep.subr.mxu0 %v206
    %2999 = vmatpush1.msra.mxu0 %v205
    %3000 = vmatprep.subr.mxu0 %v210
    %3001 = vmatpush1.msra.mxu0 %v209
    %3002 = vmatprep.subr.mxu0 %v214
    %3003 = vmatpush1.msra.mxu0 %v213
    %3004 = vmatprep.subr.mxu0 %v218
    %3005 = vmatpush1.msra.mxu0 %v217
    %3006 = vmatprep.subr.mxu0 %v222
    %3007 = vmatpush1.msra.mxu0 %v221
    %3008 = vmatprep.subr.mxu0 %v226
    %3009 = vmatpush1.msra.mxu0 %v225
    %3010 = vmatprep.subr.mxu0 %v230
    %3011 = vmatpush1.msra.mxu0 %v229
    %3012 = vmatprep.subr.mxu0 %v234
    %3013 = vmatpush1.msra.mxu0 %v233
    %3014 = vmatprep.subr.mxu0 %v238
    %3015 = vmatpush1.msra.mxu0 %v237
    %3016 = vmatprep.subr.mxu0 %v242
    %3017 = vmatpush1.msra.mxu0 %v241
    %3018 = vmatprep.subr.mxu0 %v246
    %3019 = vmatpush1.msra.mxu0 %v245
    %3020 = vmatprep.subr.mxu0 %v250
    %3021 = vmatpush1.msra.mxu0 %v249
    %3022 = vmatprep.mubr.f32.mxu0 %v2772
    %3023 = vmatmul.mubr.f32.gmra.mrb[0].mxu0 %v2957
    %v3024 = vpop.f32.mrb[0].mxu0
    %v3025 = vadd.f32 %v484, %v3024
    %v3026 = vpop.f32.mrb[0].mxu0
    %v3027 = vadd.f32 %v488, %v3026
    %3028 = vdwg.mxu0
    %3029 = vmatprep.subr.mxu0 %v128
    %3030 = vmatpush1.msra.mxu0 %v127
    %3031 = vmatprep.subr.mxu0 %v132
    %3032 = vmatpush1.msra.mxu0 %v131
    %3033 = vmatprep.subr.mxu0 %v136
    %3034 = vmatpush1.msra.mxu0 %v135
    %3035 = vmatprep.subr.mxu0 %v140
    %3036 = vmatpush1.msra.mxu0 %v139
    %3037 = vmatprep.subr.mxu0 %v144
    %3038 = vmatpush1.msra.mxu0 %v143
    %3039 = vmatprep.subr.mxu0 %v148
    %3040 = vmatpush1.msra.mxu0 %v147
    %3041 = vmatprep.subr.mxu0 %v152
    %3042 = vmatpush1.msra.mxu0 %v151
    %3043 = vmatprep.subr.mxu0 %v156
    %3044 = vmatpush1.msra.mxu0 %v155
    %3045 = vmatprep.subr.mxu0 %v160
    %3046 = vmatpush1.msra.mxu0 %v159
    %3047 = vmatprep.subr.mxu0 %v164
    %3048 = vmatpush1.msra.mxu0 %v163
    %3049 = vmatprep.subr.mxu0 %v168
    %3050 = vmatpush1.msra.mxu0 %v167
    %3051 = vmatprep.subr.mxu0 %v172
    %3052 = vmatpush1.msra.mxu0 %v171
    %3053 = vmatprep.subr.mxu0 %v176
    %3054 = vmatpush1.msra.mxu0 %v175
    %3055 = vmatprep.subr.mxu0 %v180
    %3056 = vmatpush1.msra.mxu0 %v179
    %3057 = vmatprep.subr.mxu0 %v184
    %3058 = vmatpush1.msra.mxu0 %v183
    %3059 = vmatprep.subr.mxu0 %v188
    %3060 = vmatpush1.msra.mxu0 %v187
    %3061 = vmatprep.subr.mxu0 %v192
    %3062 = vmatpush1.msra.mxu0 %v191
    %3063 = vmatprep.subr.mxu0 %v196
    %3064 = vmatpush1.msra.mxu0 %v195
    %3065 = vmatprep.subr.mxu0 %v200
    %3066 = vmatpush1.msra.mxu0 %v199
    %3067 = vmatprep.subr.mxu0 %v204
    %3068 = vmatpush1.msra.mxu0 %v203
    %3069 = vmatprep.subr.mxu0 %v208
    %3070 = vmatpush1.msra.mxu0 %v207
    %3071 = vmatprep.subr.mxu0 %v212
    %3072 = vmatpush1.msra.mxu0 %v211
    %3073 = vmatprep.subr.mxu0 %v216
    %3074 = vmatpush1.msra.mxu0 %v215
    %3075 = vmatprep.subr.mxu0 %v220
    %3076 = vmatpush1.msra.mxu0 %v219
    %3077 = vmatprep.subr.mxu0 %v224
    %3078 = vmatpush1.msra.mxu0 %v223
    %3079 = vmatprep.subr.mxu0 %v228
    %3080 = vmatpush1.msra.mxu0 %v227
    %3081 = vmatprep.subr.mxu0 %v232
    %3082 = vmatpush1.msra.mxu0 %v231
    %3083 = vmatprep.subr.mxu0 %v236
    %3084 = vmatpush1.msra.mxu0 %v235
    %3085 = vmatprep.subr.mxu0 %v240
    %3086 = vmatpush1.msra.mxu0 %v239
    %3087 = vmatprep.subr.mxu0 %v244
    %3088 = vmatpush1.msra.mxu0 %v243
    %3089 = vmatprep.subr.mxu0 %v248
    %3090 = vmatpush1.msra.mxu0 %v247
    %3091 = vmatprep.subr.mxu0 %v252
    %3092 = vmatpush1.msra.mxu0 %v251
    %3093 = vmatprep.mubr.f32.mxu0 %v2772
    %3094 = vmatmul.mubr.f32.gmra.mrb[0].mxu0 %v2957
    %v3095 = vpop.f32.mrb[0].mxu0
    %v3096 = vadd.f32 %v492, %v3095
    %v3097 = vpop.f32.mrb[0].mxu0
    %v3098 = vadd.f32 %v496, %v3097
    %3099 = vdwg.mxu0
    %v3100 = vxor.u32 %v3025, 2147483648
    %v3101 = vmul.f32 %v3100, 1.442695
    %v3102 = vpow.pop %v3101
    %v3103 = vadd.f32 %v3102, 1.0
    %v3104 = vrcp.pop %v3103
    %v3105 = vmul.f32 1.0, %v3104
    %v3106 = vxor.u32 %v3027, 2147483648
    %v3107 = vmul.f32 %v3106, 1.442695
    %v3108 = vpow.pop %v3107
    %v3109 = vadd.f32 %v3108, 1.0
    %v3110 = vrcp.pop %v3109
    %v3111 = vmul.f32 1.0, %v3110
    %v3112 = vtanh.pop %v3096
    %v3113 = vxor.u32 %v3098, 2147483648
    %v3114 = vmul.f32 %v3113, 1.442695
    %v3115 = vpow.pop %v3114
    %v3116 = vadd.f32 %v3115, 1.0
    %v3117 = vrcp.pop %v3116
    %v3118 = vmul.f32 1.0, %v3117
    %v3119 = vmul.f32 %v3111, %v2770
    %v3120 = vmul.f32 %v3105, %v3112
    %v3121 = vadd.f32 %v3119, %v3120
    %v3122 = vtanh.pop %v3121
    %v3123 = vmul.f32 %v3118, %v3122
    %v3124 = vld [vmem:[%s6] sm:$0xff]
    %v3125 = vld [vmem:[%s6 + $0x8] sm:$0xff]
    %v3126 = vld [vmem:[%s6 + $0x10] sm:$0xff]
    %v3127 = vld [vmem:[%s6 + $0x18] sm:$0xff]
    %v3128 = vld [vmem:[%s6 + $0x20] sm:$0xff]
    %v3129 = vld [vmem:[%s6 + $0x28] sm:$0xff]
    %v3130 = vld [vmem:[%s6 + $0x30] sm:$0xff]
    %v3131 = vld [vmem:[%s6 + $0x38] sm:$0xff]
    %v3132 = vld [vmem:[%s6 + $0x40] sm:$0xff]
    %v3133 = vld [vmem:[%s6 + $0x48] sm:$0xff]
    %v3134 = vld [vmem:[%s6 + $0x50] sm:$0xff]
    %v3135 = vld [vmem:[%s6 + $0x58] sm:$0xff]
    %v3136 = vld [vmem:[%s6 + $0x60] sm:$0xff]
    %v3137 = vld [vmem:[%s6 + $0x68] sm:$0xff]
    %v3138 = vld [vmem:[%s6 + $0x70] sm:$0xff]
    %v3139 = vld [vmem:[%s6 + $0x78] sm:$0xff]
    %v3140 = vld [vmem:[#allocation2] sm:$0x1]
    %v3142 = vlaneseq
    %v3143 = vshrl.u32 %v3142, 7
    %v3144 = vsub.s32 0, %v3143
    %v3145 = vrot.slane %v3140, %v3144
    %3147 = vmatprep.subr.mxu0 0.0
    %3148 = vmatpush1.msra.mxu0 %v3124
    %3149 = vmatprep.subr.mxu0 0.0
    %3150 = vmatpush1.msra.mxu0 %v3125
    %3151 = vmatprep.subr.mxu0 0.0
    %3152 = vmatpush1.msra.mxu0 %v3126
    %3153 = vmatprep.subr.mxu0 0.0
    %3154 = vmatpush1.msra.mxu0 %v3127
    %3155 = vmatprep.subr.mxu0 0.0
    %3156 = vmatpush1.msra.mxu0 %v3128
    %3157 = vmatprep.subr.mxu0 0.0
    %3158 = vmatpush1.msra.mxu0 %v3129
    %3159 = vmatprep.subr.mxu0 0.0
    %3160 = vmatpush1.msra.mxu0 %v3130
    %3161 = vmatprep.subr.mxu0 0.0
    %3162 = vmatpush1.msra.mxu0 %v3131
    %3163 = vmatprep.subr.mxu0 0.0
    %3164 = vmatpush1.msra.mxu0 %v3132
    %3165 = vmatprep.subr.mxu0 0.0
    %3166 = vmatpush1.msra.mxu0 %v3133
    %3167 = vmatprep.subr.mxu0 0.0
    %3168 = vmatpush1.msra.mxu0 %v3134
    %3169 = vmatprep.subr.mxu0 0.0
    %3170 = vmatpush1.msra.mxu0 %v3135
    %3171 = vmatprep.subr.mxu0 0.0
    %3172 = vmatpush1.msra.mxu0 %v3136
    %3173 = vmatprep.subr.mxu0 0.0
    %3174 = vmatpush1.msra.mxu0 %v3137
    %3175 = vmatprep.subr.mxu0 0.0
    %3176 = vmatpush1.msra.mxu0 %v3138
    %3177 = vmatprep.subr.mxu0 0.0
    %3178 = vmatpush1.msra.mxu0 %v3139
    %3179 = vmatprep.subr.mxu0 0.0
    %3180 = vmatpush1.msra.mxu0 0.0
    %3181 = vmatprep.subr.mxu0 0.0
    %3182 = vmatpush1.msra.mxu0 0.0
    %3183 = vmatprep.subr.mxu0 0.0
    %3184 = vmatpush1.msra.mxu0 0.0
    %3185 = vmatprep.subr.mxu0 0.0
    %3186 = vmatpush1.msra.mxu0 0.0
    %3187 = vmatprep.subr.mxu0 0.0
    %3188 = vmatpush1.msra.mxu0 0.0
    %3189 = vmatprep.subr.mxu0 0.0
    %3190 = vmatpush1.msra.mxu0 0.0
    %3191 = vmatprep.subr.mxu0 0.0
    %3192 = vmatpush1.msra.mxu0 0.0
    %3193 = vmatprep.subr.mxu0 0.0
    %3194 = vmatpush1.msra.mxu0 0.0
    %3195 = vmatprep.subr.mxu0 0.0
    %3196 = vmatpush1.msra.mxu0 0.0
    %3197 = vmatprep.subr.mxu0 0.0
    %3198 = vmatpush1.msra.mxu0 0.0
    %3199 = vmatprep.subr.mxu0 0.0
    %3200 = vmatpush1.msra.mxu0 0.0
    %3201 = vmatprep.subr.mxu0 0.0
    %3202 = vmatpush1.msra.mxu0 0.0
    %3203 = vmatprep.subr.mxu0 0.0
    %3204 = vmatpush1.msra.mxu0 0.0
    %3205 = vmatprep.subr.mxu0 0.0
    %3206 = vmatpush1.msra.mxu0 0.0
    %3207 = vmatprep.subr.mxu0 0.0
    %3208 = vmatpush1.msra.mxu0 0.0
    %3209 = vmatprep.subr.mxu0 0.0
    %3210 = vmatpush1.msra.mxu0 0.0
    %3211 = vmatprep.mubr.f32.mxu0 0.0
    %3212 = vmatmul.mubr.f32.gmra.mrb[0].mxu0 %v3123
    %v3213 = vpop.f32.mrb[0].mxu0
    %v3214 = vadd.f32 %v3145, %v3213
    %v3215 = vpop.f32.mrb[0].mxu0
    %3216 = vdwg.mxu0
    %vm3217 = vcmask 7168
    %3218 = vst.msk [vmem:[%s8] sm:$0xff] %vm3217, %v3214
    // Predicated region
    $region42: #{tpu_custom_call.1} parent=1 // pred_check
      _
    $region43: #{tpu_custom_call.1} parent=1 // pred_check_branch
      %3220 = sbr.rel (0) target = $region45
    $region44: #{tpu_custom_call.1} parent=1 // pred_region
      _
    $region45: #{tpu_custom_call.1} parent=1 // pred_fallthru
      _
    // Predicated region
    $region46: #{tpu_custom_call.1} parent=1 // pred_check
      _
    $region47: #{tpu_custom_call.1} parent=1 // pred_check_branch
      %3222 = sbr.rel (0) target = $region49
    $region48: #{tpu_custom_call.1} parent=1 // pred_region
      _
    $region49: #{tpu_custom_call.1} parent=1 // pred_fallthru
      _
    %3223 = vsyncpa [#allocation4], 1
    %3224 = vsyncpa [#allocation6], 1

</llo_original>
